<compile_context>
chip_gen: v6e
topology: v6e:2x2x1
jax: 0.10.0
libtpu: 0.0.40
codegen_flags: <defaults>
</compile_context>

<pallas_src>
import jax
import jax.numpy as jnp
from jax.experimental import pallas as pl
from jax.experimental.pallas import tpu as pltpu

BN_EPS = 1e-5                 # torch.nn.BatchNorm1d default
OUT_DIM = 16                  # hard-coded in the reference module ([N, 2, 16])
K_CLUSTER = 19
K_PAD = 80                    # clusters padded so the stats slab is exactly 128 lanes
HEAD_HALF = 128               # fused mu|var head: each half is 128-lane aligned
STATS_W = 3 * OUT_DIM + K_PAD                 # == 128 : [z | z_mu | z_var | q]
VMEM_LIMIT_BYTES = 48 * 1024 * 1024           # explicit scoped-VMEM budget (v7x-safe)


def _round_up(x, m):
    return ((x + m - 1) // m) * m


def prepare_params(raw, matmul_dtype=jnp.bfloat16):
    """Pack / pad / fuse PyTorch-layout parameters into kernel layout (done once)."""
    nhid = raw["enc_rna"]["w1"].shape[1]
    out = raw["cluster"].shape[1]
    assert out == OUT_DIM and raw["cluster"].shape[0] == K_CLUSTER
    nhid_pad = _round_up(nhid, 128)
    nfeat_total = raw["dec"]["w2"].shape[1]
    nfeat_pad = _round_up(nfeat_total, 128)

    def pad_cols(w, cols):
        return jnp.pad(w, ((0, 0), (0, cols - w.shape[1])))

    def pad_row(v, cols, cval=0.0):
        return jnp.pad(v[None, :], ((0, 0), (0, cols - v.shape[0])),
                       constant_values=cval)

    def enc_pack(e):
        # NOTE: the Linear bias b1 provably cancels inside training-mode BatchNorm1d
        # (BN subtracts the batch mean), so it is not needed in the kernels.
        w1 = pad_cols(e["w1"], nhid_pad).astype(matmul_dtype)
        gamma = pad_row(e["gamma"], nhid_pad, 1.0)
        beta = pad_row(e["beta"], nhid_pad, 0.0)
        hw = jnp.zeros((nhid_pad, 2 * HEAD_HALF), jnp.float32)
        hw = hw.at[:nhid, :out].set(e["wmu"])
        hw = hw.at[:nhid, HEAD_HALF:HEAD_HALF + out].set(e["wvar"])
        hb = jnp.zeros((1, 2 * HEAD_HALF), jnp.float32)
        hb = hb.at[0, :out].set(e["bmu"]).at[0, HEAD_HALF:HEAD_HALF + out].set(e["bvar"])
        return w1, gamma, beta, hw.astype(matmul_dtype), hb

    w1r, gr, ber, hwr, hbr = enc_pack(raw["enc_rna"])
    w1a, ga, bea, hwa, hba = enc_pack(raw["enc_atac"])
    bn_enc = jnp.zeros((8, nhid_pad), jnp.float32)
    bn_enc = bn_enc.at[0:1].set(gr).at[1:2].set(ber).at[2:3].set(ga).at[3:4].set(bea)

    c = raw["cluster"].astype(jnp.float32)
    cluster_t = jnp.zeros((out, K_PAD), jnp.float32).at[:, :K_CLUSTER].set(c.T)
    cluster_sq = jnp.full((1, K_PAD), 1e30, jnp.float32)
    cluster_sq = cluster_sq.at[0, :K_CLUSTER].set(jnp.sum(c * c, axis=1))

    d = raw["dec"]
    dec_w1 = pad_cols(d["w1"], nhid_pad)                     # f32: feeds BN statistics
    bn_dec = jnp.zeros((8, nhid_pad), jnp.float32)
    bn_dec = bn_dec.at[0:1].set(pad_row(d["gamma"], nhid_pad, 1.0))
    bn_dec = bn_dec.at[1:2].set(pad_row(d["beta"], nhid_pad, 0.0))
    dec_w2 = jnp.zeros((nhid_pad, nfeat_pad), jnp.float32)
    dec_w2 = dec_w2.at[:nhid, :nfeat_total].set(d["w2"]).astype(matmul_dtype)
    dec_b2 = jnp.zeros((1, nfeat_pad), jnp.float32).at[0, :nfeat_total].set(d["b2"])

    return {"w1_rna": w1r, "w1_atac": w1a, "bn_enc": bn_enc,
            "head_w_rna": hwr, "head_b_rna": hbr,
            "head_w_atac": hwa, "head_b_atac": hba,
            "cluster_t": cluster_t, "cluster_sq": cluster_sq,
            "dec_w1": dec_w1, "bn_dec": bn_dec, "dec_w2": dec_w2, "dec_b2": dec_b2}


def multi_all_forward(kp, rna, atac, index_rna, index_atac, eps, *, tile_rows=256):
    assert tile_rows % 8 == 0
    n, nfeat1 = rna.shape
    nfeat2 = atac.shape[1]
    nfeat_total = nfeat1 + nfeat2
    nhid_pad = kp["bn_enc"].shape[1]
    head_w = 2 * HEAD_HALF
    nfeat_pad = kp["dec_w2"].shape[1]
    mm_dtype = kp["w1_rna"].dtype

    tile = min(tile_rows, _round_up(n, 8))
    n_pad = _round_up(n, tile)
    num_tiles = n_pad // tile
    pad = n_pad - n

    # Pad the batch to a whole number of tiles (masked out of all BN statistics).
    rna_p = jnp.pad(rna.astype(jnp.float32), ((0, pad), (0, 0)))
    atac_p = jnp.pad(atac.astype(jnp.float32), ((0, pad), (0, 0)))
    eps_p = jnp.pad(eps.astype(jnp.float32), ((0, pad), (0, 0)))
    # Reference scatters row i into slot index[i]; slot s therefore reads original
    # row argsort(index)[s].  index_* are assumed to be permutations of range(N).
    inv_rna = jnp.pad(jnp.argsort(index_rna.astype(jnp.int32)).astype(jnp.int32), (0, pad))
    inv_atac = jnp.pad(jnp.argsort(index_atac.astype(jnp.int32)).astype(jnp.int32), (0, pad))

    inv_n = 1.0 / float(n)
    cp_arb = pltpu.CompilerParams(dimension_semantics=("arbitrary",),
                                  vmem_limit_bytes=VMEM_LIMIT_BYTES)
    cp_par = pltpu.CompilerParams(dimension_semantics=("parallel",),
                                  vmem_limit_bytes=VMEM_LIMIT_BYTES)

    # ------------------------- pass A: encoder first linears + BN stats ----------
    def encode_kernel(rna_ref, atac_ref, w1r_ref, w1a_ref, g0r_ref, g0a_ref, es_ref):
        ti = pl.program_id(0)
        gr = jnp.dot(rna_ref[...].astype(mm_dtype), w1r_ref[...],
                     preferred_element_type=jnp.float32)
        ga = jnp.dot(atac_ref[...].astype(mm_dtype), w1a_ref[...],
                     preferred_element_type=jnp.float32)
        g0r_ref[...] = gr
        g0a_ref[...] = ga
        valid = (ti * tile + jax.lax.broadcasted_iota(jnp.int32, (tile, 1), 0)) < n
        grm = jnp.where(valid, gr, 0.0)
        gam = jnp.where(valid, ga, 0.0)

        @pl.when(ti == 0)
        def _init():
            es_ref[...] = jnp.zeros_like(es_ref)

        es_ref[0:1, :] += jnp.sum(grm, axis=0, keepdims=True)
        es_ref[1:2, :] += jnp.sum(grm * grm, axis=0, keepdims=True)
        es_ref[2:3, :] += jnp.sum(gam, axis=0, keepdims=True)
        es_ref[3:4, :] += jnp.sum(gam * gam, axis=0, keepdims=True)

    g0r, g0a, enc_stats = pl.pallas_call(
        encode_kernel,
        out_shape=(jax.ShapeDtypeStruct((n_pad, nhid_pad), jnp.float32),
                   jax.ShapeDtypeStruct((n_pad, nhid_pad), jnp.float32),
                   jax.ShapeDtypeStruct((8, nhid_pad), jnp.float32)),
        grid=(num_tiles,),
        in_specs=[pl.BlockSpec((tile, nfeat1), lambda t: (t, 0)),
                  pl.BlockSpec((tile, nfeat2), lambda t: (t, 0)),
                  pl.BlockSpec((nfeat1, nhid_pad), lambda t: (0, 0)),
                  pl.BlockSpec((nfeat2, nhid_pad), lambda t: (0, 0))],
        out_specs=(pl.BlockSpec((tile, nhid_pad), lambda t: (t, 0)),
                   pl.BlockSpec((tile, nhid_pad), lambda t: (t, 0)),
                   pl.BlockSpec((8, nhid_pad), lambda t: (0, 0))),
        compiler_params=cp_arb,
    )(rna_p, atac_p, kp["w1_rna"], kp["w1_atac"])

    # ----- pass B: gather-by-inverse-perm, BN, heads, PoE, reparam, q, dec stats ---
    def latent_kernel(inv_r_ref, inv_a_ref,                       # scalar prefetch
                      g0r_hbm, g0a_hbm, eps_ref, es_ref, bn_ref,
                      hwr_ref, hbr_ref, hwa_ref, hba_ref,
                      ct_ref, c2_ref, dw1_ref,
                      slab_ref, ds_ref,                           # outputs
                      gr_buf, ga_buf, sem):                       # scratch
        ti = pl.program_id(0)
        base = ti * tile

        # In-kernel row gather of the 128-lane hidden activations (scalar-prefetched
        # inverse permutations; per-row async DMAs from the HBM-resident slabs).
        def issue(r, carry):
            pltpu.make_async_copy(g0r_hbm.at[pl.ds(inv_r_ref[base + r], 1), :],
                                  gr_buf.at[pl.ds(r, 1), :], sem.at[0]).start()
            pltpu.make_async_copy(g0a_hbm.at[pl.ds(inv_a_ref[base + r], 1), :],
                                  ga_buf.at[pl.ds(r, 1), :], sem.at[1]).start()
            return carry
        jax.lax.fori_loop(0, tile, issue, 0)

        def drain(r, carry):
            pltpu.make_async_copy(g0r_hbm.at[pl.ds(0, 1), :],
                                  gr_buf.at[pl.ds(0, 1), :], sem.at[0]).wait()
            pltpu.make_async_copy(g0a_hbm.at[pl.ds(0, 1), :],
                                  ga_buf.at[pl.ds(0, 1), :], sem.at[1]).wait()
            return carry
        jax.lax.fori_loop(0, tile, drain, 0)

        def bn_head(gbuf, row0, hw_ref, hb_ref):
            mean = es_ref[row0:row0 + 1, :] * inv_n
            var = jnp.maximum(es_ref[row0 + 1:row0 + 2, :] * inv_n - mean * mean, 0.0)
            gamma = bn_ref[row0:row0 + 1, :]
            beta = bn_ref[row0 + 1:row0 + 2, :]
            h = gamma * (gbuf[...] - mean) * jax.lax.rsqrt(var + BN_EPS) + beta
            h = jnp.maximum(h, 0.0)
            # TODO(synk): stochastic F.dropout applied as identity.
            head = jnp.dot(h.astype(mm_dtype), hw_ref[...],
                           preferred_element_type=jnp.float32) + hb_ref[...]
            # mu / var halves are 128-lane aligned -> no mid-vreg lane split.
            return head[:, :OUT_DIM], jnp.exp(head[:, HEAD_HALF:HEAD_HALF + OUT_DIM])

        zm_r, zv_r = bn_head(gr_buf, 0, hwr_ref, hbr_ref)
        zm_a, zv_a = bn_head(ga_buf, 2, hwa_ref, hba_ref)

        # Product of Experts (masks == 1 for full permutations).  Exact reciprocals
        # on this path per correctness feedback.
        t_r = 1.0 / zv_r
        t_a = 1.0 / zv_a
        t_sum = t_r + t_a + 1.0
        pd_var = 1.0 / t_sum
        pd_mu = (zm_r * t_r + zm_a * t_a) * pd_var
        # Reference passes the *variance* as torch Normal's scale -> replicated.
        z = pd_mu + pd_var * eps_ref[...]

        # Soft cluster assignment q (cluster matrix pre-transposed in the wrapper).
        zc = jnp.dot(z, ct_ref[...], preferred_element_type=jnp.float32)
        d2 = jnp.maximum(jnp.sum(z * z, axis=1, keepdims=True) - 2.0 * zc + c2_ref[...], 0.0)
        q = 1.0 / (1.0 + d2)
        q = q * pl.reciprocal(jnp.sum(q, axis=1, keepdims=True), approx=True)

        slab_ref[...] = jnp.concatenate([z, pd_mu, pd_var, q], axis=1)  # 128 lanes

        # Decoder first Linear (bias cancels under training-mode BN) + batch stats.
        d0 = jnp.dot(z, dw1_ref[...], preferred_element_type=jnp.float32)
        valid = (base + jax.lax.broadcasted_iota(jnp.int32, (tile, 1), 0)) < n
        d0m = jnp.where(valid, d0, 0.0)

        @pl.when(ti == 0)
        def _init():
            ds_ref[...] = jnp.zeros_like(ds_ref)

        ds_ref[0:1, :] += jnp.sum(d0m, axis=0, keepdims=True)
        ds_ref[1:2, :] += jnp.sum(d0m * d0m, axis=0, keepdims=True)

    grid_spec_b = pltpu.PrefetchScalarGridSpec(
        num_scalar_prefetch=2,
        grid=(num_tiles,),
        in_specs=[pl.BlockSpec(memory_space=pl.ANY),                       # g0 rna (HBM)
                  pl.BlockSpec(memory_space=pl.ANY),                       # g0 atac (HBM)
                  pl.BlockSpec((tile, OUT_DIM), lambda t, *_: (t, 0)),     # eps
                  pl.BlockSpec((8, nhid_pad), lambda t, *_: (0, 0)),       # enc stats
                  pl.BlockSpec((8, nhid_pad), lambda t, *_: (0, 0)),       # bn_enc
                  pl.BlockSpec((nhid_pad, head_w), lambda t, *_: (0, 0)),  # head_w rna
                  pl.BlockSpec((1, head_w), lambda t, *_: (0, 0)),         # head_b rna
                  pl.BlockSpec((nhid_pad, head_w), lambda t, *_: (0, 0)),  # head_w atac
                  pl.BlockSpec((1, head_w), lambda t, *_: (0, 0)),         # head_b atac
                  pl.BlockSpec((OUT_DIM, K_PAD), lambda t, *_: (0, 0)),    # cluster^T
                  pl.BlockSpec((1, K_PAD), lambda t, *_: (0, 0)),          # ||c||^2
                  pl.BlockSpec((OUT_DIM, nhid_pad), lambda t, *_: (0, 0))],  # dec_w1
        out_specs=(pl.BlockSpec((tile, STATS_W), lambda t, *_: (t, 0)),
                   pl.BlockSpec((8, nhid_pad), lambda t, *_: (0, 0))),
        scratch_shapes=[pltpu.VMEM((tile, nhid_pad), jnp.float32),
                        pltpu.VMEM((tile, nhid_pad), jnp.float32),
                        pltpu.SemaphoreType.DMA((2,))],
    )
    slab, dec_stats = pl.pallas_call(
        latent_kernel,
        out_shape=(jax.ShapeDtypeStruct((n_pad, STATS_W), jnp.float32),
                   jax.ShapeDtypeStruct((8, nhid_pad), jnp.float32)),
        grid_spec=grid_spec_b,
        compiler_params=cp_arb,
    )(inv_rna, inv_atac, g0r, g0a, eps_p, enc_stats, kp["bn_enc"],
      kp["head_w_rna"], kp["head_b_rna"], kp["head_w_atac"], kp["head_b_atac"],
      kp["cluster_t"], kp["cluster_sq"], kp["dec_w1"])

    # ------------------------- pass C: decoder (per-tile independent) ------------
    def decode_kernel(slab_ref, ds_ref, bn_ref, dw1_ref, dw2_ref, db2_ref, recon_ref):
        mean = ds_ref[0:1, :] * inv_n
        var = jnp.maximum(ds_ref[1:2, :] * inv_n - mean * mean, 0.0)
        z = slab_ref[:, :OUT_DIM]
        d0 = jnp.dot(z, dw1_ref[...], preferred_element_type=jnp.float32)
        h = bn_ref[0:1, :] * (d0 - mean) * jax.lax.rsqrt(var + BN_EPS) + bn_ref[1:2, :]
        h = jnp.maximum(h, 0.0)
        # TODO(synk): decoder dropout (training-mode, stochastic) applied as identity.
        recon_ref[...] = (jnp.dot(h.astype(mm_dtype), dw2_ref[...],
                                  preferred_element_type=jnp.float32) + db2_ref[...])

    recon = pl.pallas_call(
        decode_kernel,
        out_shape=jax.ShapeDtypeStruct((n_pad, nfeat_pad), jnp.float32),
        grid=(num_tiles,),
        in_specs=[pl.BlockSpec((tile, STATS_W), lambda t: (t, 0)),
                  pl.BlockSpec((8, nhid_pad), lambda t: (0, 0)),
                  pl.BlockSpec((8, nhid_pad), lambda t: (0, 0)),
                  pl.BlockSpec((OUT_DIM, nhid_pad), lambda t: (0, 0)),
                  pl.BlockSpec((nhid_pad, nfeat_pad), lambda t: (0, 0)),
                  pl.BlockSpec((1, nfeat_pad), lambda t: (0, 0))],
        out_specs=pl.BlockSpec((tile, nfeat_pad), lambda t: (t, 0)),
        compiler_params=cp_par,
    )(slab, dec_stats, kp["bn_dec"], kp["dec_w1"], kp["dec_w2"], kp["dec_b2"])

    z = slab[:n, 0:OUT_DIM]
    z_mu = slab[:n, OUT_DIM:2 * OUT_DIM]
    z_var = slab[:n, 2 * OUT_DIM:3 * OUT_DIM]
    q = slab[:n, 3 * OUT_DIM:3 * OUT_DIM + K_CLUSTER]
    recon_x = recon[:n, :nfeat_total]
    return recon_x, z_mu, z_var, z, q


def reference_forward(raw, rna, atac, index_rna, index_atac, eps,
                      matmul_dtype=jnp.bfloat16):
    """Pure-JAX mirror of the PyTorch forward (training-mode BN, dropout=identity),
    with the same mixed-precision policy as the kernels, used as a self-check."""
    f32 = jnp.float32

    def mdot(x, w):
        return jnp.dot(x.astype(matmul_dtype), w.astype(matmul_dtype),
                       preferred_element_type=f32)

    def bn_relu(h, gamma, beta):
        mean = jnp.mean(h, axis=0)
        var = jnp.var(h, axis=0)
        return jnp.maximum(gamma * (h - mean) / jnp.sqrt(var + BN_EPS) + beta, 0.0)

    def encode(x, e):
        h = bn_relu(mdot(x, e["w1"]) + e["b1"], e["gamma"], e["beta"])
        return mdot(h, e["wmu"]) + e["bmu"], jnp.exp(mdot(h, e["wvar"]) + e["bvar"])

    zm_r, zv_r = encode(rna, raw["enc_rna"])
    zm_a, zv_a = encode(atac, raw["enc_atac"])
    inv_r = jnp.argsort(index_rna)
    inv_a = jnp.argsort(index_atac)
    zm_r, zv_r, zm_a, zv_a = zm_r[inv_r], zv_r[inv_r], zm_a[inv_a], zv_a[inv_a]
    t_r, t_a = 1.0 / zv_r, 1.0 / zv_a
    t_sum = t_r + t_a + 1.0
    z_var = 1.0 / t_sum
    z_mu = (zm_r * t_r + zm_a * t_a) * z_var
    z = z_mu + z_var * eps
    d2 = jnp.sum((z[:, None, :] - raw["cluster"][None, :, :]) ** 2, axis=-1)
    q = 1.0 / (1.0 + d2)
    q = q / jnp.sum(q, axis=1, keepdims=True)
    d = raw["dec"]
    hd = bn_relu(jnp.dot(z, d["w1"]) + d["b1"], d["gamma"], d["beta"])
    recon = mdot(hd, d["w2"]) + d["b2"]
    return recon, z_mu, z_var, z, q


if __name__ == "__main__":
    N, NFEAT1, NFEAT2, NHID, OUT, K = 40, 64, 64, 32, OUT_DIM, K_CLUSTER
    key = jax.random.PRNGKey(0)
    ks = iter(jax.random.split(key, 64))

    def linear(kk, fan_in, fan_out):
        bound = 1.0 / jnp.sqrt(float(fan_in))
        kw, kb = jax.random.split(kk)
        return (jax.random.uniform(kw, (fan_in, fan_out), jnp.float32, -bound, bound),
                jax.random.uniform(kb, (fan_out,), jnp.float32, -bound, bound))

    def make_encoder(nfeat):
        w1, b1 = linear(next(ks), nfeat, NHID)
        wmu, bmu = linear(next(ks), NHID, OUT)
        wvar, bvar = linear(next(ks), NHID, OUT)
        # gamma/beta randomized (torch init is 1/0) to exercise the BN affine path.
        gamma = 1.0 + 0.1 * jax.random.normal(next(ks), (NHID,), jnp.float32)
        beta = 0.1 * jax.random.normal(next(ks), (NHID,), jnp.float32)
        return dict(w1=w1, b1=b1, gamma=gamma, beta=beta,
                    wmu=wmu, bmu=bmu, wvar=wvar, bvar=bvar)

    dec_w1, dec_b1 = linear(next(ks), OUT, NHID)
    dec_w2, dec_b2 = linear(next(ks), NHID, NFEAT1 + NFEAT2)
    raw = dict(
        enc_rna=make_encoder(NFEAT1),
        enc_atac=make_encoder(NFEAT2),
        cluster=jax.random.normal(next(ks), (K, OUT), jnp.float32),
        dec=dict(w1=dec_w1, b1=dec_b1,
                 gamma=1.0 + 0.1 * jax.random.normal(next(ks), (NHID,), jnp.float32),
                 beta=0.1 * jax.random.normal(next(ks), (NHID,), jnp.float32),
                 w2=dec_w2, b2=dec_b2))

    kp = prepare_params(raw)

    rna = jax.random.normal(next(ks), (N, NFEAT1), jnp.float32)
    atac = jax.random.normal(next(ks), (N, NFEAT2), jnp.float32)
    index_rna = jax.random.permutation(next(ks), N).astype(jnp.int32)
    index_atac = jax.random.permutation(next(ks), N).astype(jnp.int32)
    eps = jax.random.normal(next(ks), (N, OUT), jnp.float32)

    fwd = jax.jit(multi_all_forward, static_argnames=("tile_rows",))
    outs = jax.block_until_ready(fwd(kp, rna, atac, index_rna, index_atac, eps,
                                     tile_rows=16))
    recon_x, z_mu, z_var, z, q = outs

    assert recon_x.shape == (N, NFEAT1 + NFEAT2)
    assert z_mu.shape == (N, OUT) and z_var.shape == (N, OUT) and z.shape == (N, OUT)
    assert q.shape == (N, K)
    for a in outs:
        assert bool(jnp.all(jnp.isfinite(a)))
    assert bool(jnp.allclose(jnp.sum(q, axis=1), 1.0, atol=1e-2))

    ref = reference_forward(raw, rna, atac, index_rna, index_atac, eps)
    for name, got, want, tol in (("recon_x", recon_x, ref[0], 2e-2),
                                 ("z_mu", z_mu, ref[1], 5e-3),
                                 ("z_var", z_var, ref[2], 5e-3),
                                 ("z", z, ref[3], 5e-3),
                                 ("q", q, ref[4], 5e-3)):
        assert bool(jnp.allclose(got, want, rtol=tol, atol=tol)), name

    print("KERNEL_OK")
</pallas_src>

<mosaic_0001>
module attributes {stable_mosaic.version = 11 : i64} {
  func.func @encode_kernel(%arg0: i32, %arg1: memref<16x64xf32, #tpu.memory_space<vmem>>, %arg2: memref<16x64xf32, #tpu.memory_space<vmem>>, %arg3: memref<64x128xbf16, #tpu.memory_space<vmem>>, %arg4: memref<64x128xbf16, #tpu.memory_space<vmem>>, %arg5: memref<16x128xf32, #tpu.memory_space<vmem>>, %arg6: memref<16x128xf32, #tpu.memory_space<vmem>>, %arg7: memref<8x128xf32, #tpu.memory_space<vmem>>) attributes {dimension_semantics = [#tpu.dimension_semantics<arbitrary>], iteration_bounds = array<i64: 3>, scalar_prefetch = 0 : i64, scratch_operands = 0 : i64, tpu.core_type = #tpu.core_type<tc>, window_params = [{transform_indices = @transform_0, window_bounds = array<i64: 16, 64>}, {transform_indices = @transform_1, window_bounds = array<i64: 16, 64>}, {pipeline_mode = #tpu.pipeline_mode<synchronous>, transform_indices = @transform_2, window_bounds = array<i64: 64, 128>}, {pipeline_mode = #tpu.pipeline_mode<synchronous>, transform_indices = @transform_3, window_bounds = array<i64: 64, 128>}, {transform_indices = @transform_4, window_bounds = array<i64: 16, 128>}, {transform_indices = @transform_5, window_bounds = array<i64: 16, 128>}, {pipeline_mode = #tpu.pipeline_mode<synchronous>, transform_indices = @transform_6, window_bounds = array<i64: 8, 128>}]} {
    %c0 = arith.constant 0 : index
    %c0_0 = arith.constant 0 : index
    %0 = vector.load %arg1[%c0, %c0_0] : memref<16x64xf32, #tpu.memory_space<vmem>>, vector<16x64xf32>
    %1 = arith.truncf %0 : vector<16x64xf32> to vector<16x64xbf16>
    %c0_1 = arith.constant 0 : index
    %c0_2 = arith.constant 0 : index
    %2 = vector.load %arg3[%c0_1, %c0_2] : memref<64x128xbf16, #tpu.memory_space<vmem>>, vector<64x128xbf16>
    %cst = arith.constant dense<0.000000e+00> : vector<16x128xf32>
    %3 = tpu.matmul %1, %2, %cst {dimension_numbers = #tpu.dot_dimension_numbers<[1], [0], [0], [1], [0, 0, 1, 1], [], []>} : vector<16x64xbf16>, vector<64x128xbf16>, vector<16x128xf32> -> vector<16x128xf32>
    %c0_3 = arith.constant 0 : index
    %c0_4 = arith.constant 0 : index
    %4 = vector.load %arg2[%c0_3, %c0_4] : memref<16x64xf32, #tpu.memory_space<vmem>>, vector<16x64xf32>
    %5 = arith.truncf %4 : vector<16x64xf32> to vector<16x64xbf16>
    %c0_5 = arith.constant 0 : index
    %c0_6 = arith.constant 0 : index
    %6 = vector.load %arg4[%c0_5, %c0_6] : memref<64x128xbf16, #tpu.memory_space<vmem>>, vector<64x128xbf16>
    %cst_7 = arith.constant dense<0.000000e+00> : vector<16x128xf32>
    %7 = tpu.matmul %5, %6, %cst_7 {dimension_numbers = #tpu.dot_dimension_numbers<[1], [0], [0], [1], [0, 0, 1, 1], [], []>} : vector<16x64xbf16>, vector<64x128xbf16>, vector<16x128xf32> -> vector<16x128xf32>
    %c0_8 = arith.constant 0 : index
    %c0_9 = arith.constant 0 : index
    %8 = vector.load %arg5[%c0_8, %c0_9] : memref<16x128xf32, #tpu.memory_space<vmem>>, vector<16x128xf32>
    tpu.vector_store %arg5[%c0_8, %c0_9], %3 {strides = array<i32>} : memref<16x128xf32, #tpu.memory_space<vmem>>, vector<16x128xf32>,
    %c0_10 = arith.constant 0 : index
    %c0_11 = arith.constant 0 : index
    %9 = vector.load %arg6[%c0_10, %c0_11] : memref<16x128xf32, #tpu.memory_space<vmem>>, vector<16x128xf32>
    tpu.vector_store %arg6[%c0_10, %c0_11], %7 {strides = array<i32>} : memref<16x128xf32, #tpu.memory_space<vmem>>, vector<16x128xf32>,
    %c16_i32 = arith.constant 16 : i32
    %10 = arith.muli %arg0, %c16_i32 : i32
    %11 = tpu.iota {dimensions = array<i32: 0>} : vector<16x1xi32>
    %12 = vector.broadcast %10 : i32 to vector<16x1xi32>
    %13 = arith.addi %12, %11 : vector<16x1xi32>
    %c40_i32 = arith.constant 40 : i32
    %14 = vector.broadcast %c40_i32 : i32 to vector<16x1xi32>
    %15 = arith.cmpi slt, %13, %14 : vector<16x1xi32>
    %cst_12 = arith.constant 0.000000e+00 : f32
    %16 = vector.shape_cast %15 : vector<16x1xi1> to vector<16x1xi1>
    %17 = vector.broadcast %16 : vector<16x1xi1> to vector<16x128xi1>
    %18 = vector.broadcast %cst_12 : f32 to vector<16x128xf32>
    %19 = arith.select %17, %3, %18 : vector<16x128xi1>, vector<16x128xf32>
    %cst_13 = arith.constant 0.000000e+00 : f32
    %20 = vector.shape_cast %15 : vector<16x1xi1> to vector<16x1xi1>
    %21 = vector.broadcast %20 : vector<16x1xi1> to vector<16x128xi1>
    %22 = vector.broadcast %cst_13 : f32 to vector<16x128xf32>
    %23 = arith.select %21, %7, %22 : vector<16x128xi1>, vector<16x128xf32>
    %c0_i32 = arith.constant 0 : i32
    %24 = arith.cmpi eq, %arg0, %c0_i32 : i32
    %25 = arith.extui %24 : i1 to i32
    %c0_i32_14 = arith.constant 0 : i32
    %26 = arith.cmpi ne, %25, %c0_i32_14 : i32
    scf.if %26 {
      %cst_32 = arith.constant 0.000000e+00 : f32
      %49 = vector.broadcast %cst_32 : f32 to vector<8x128xf32>
      %c0_33 = arith.constant 0 : index
      %c0_34 = arith.constant 0 : index
      %50 = vector.load %arg7[%c0_33, %c0_34] : memref<8x128xf32, #tpu.memory_space<vmem>>, vector<8x128xf32>
      tpu.vector_store %arg7[%c0_33, %c0_34], %49 {strides = array<i32>} : memref<8x128xf32, #tpu.memory_space<vmem>>, vector<8x128xf32>,
    } else {
    }
    %c0_15 = arith.constant 0 : index
    %c0_16 = arith.constant 0 : index
    %27 = vector.load %arg7[%c0_15, %c0_16] : memref<8x128xf32, #tpu.memory_space<vmem>>, vector<1x128xf32>
    %cst_17 = arith.constant dense<0.000000e+00> : vector<128xf32>
    %28 = vector.multi_reduction <add>, %19, %cst_17 [0] : vector<16x128xf32> to vector<128xf32>
    %29 = vector.shape_cast %28 : vector<128xf32> to vector<1x128xf32>
    %30 = arith.addf %27, %29 : vector<1x128xf32>
    %c0_18 = arith.constant 0 : index
    %c0_19 = arith.constant 0 : index
    %31 = vector.load %arg7[%c0_18, %c0_19] : memref<8x128xf32, #tpu.memory_space<vmem>>, vector<1x128xf32>
    tpu.vector_store %arg7[%c0_18, %c0_19], %30 {strides = array<i32>} : memref<8x128xf32, #tpu.memory_space<vmem>>, vector<1x128xf32>,
    %c1 = arith.constant 1 : index
    %c0_20 = arith.constant 0 : index
    %32 = vector.load %arg7[%c1, %c0_20] : memref<8x128xf32, #tpu.memory_space<vmem>>, vector<1x128xf32>
    %33 = arith.mulf %19, %19 : vector<16x128xf32>
    %cst_21 = arith.constant dense<0.000000e+00> : vector<128xf32>
    %34 = vector.multi_reduction <add>, %33, %cst_21 [0] : vector<16x128xf32> to vector<128xf32>
    %35 = vector.shape_cast %34 : vector<128xf32> to vector<1x128xf32>
    %36 = arith.addf %32, %35 : vector<1x128xf32>
    %c1_22 = arith.constant 1 : index
    %c0_23 = arith.constant 0 : index
    %37 = vector.load %arg7[%c1_22, %c0_23] : memref<8x128xf32, #tpu.memory_space<vmem>>, vector<1x128xf32>
    tpu.vector_store %arg7[%c1_22, %c0_23], %36 {strides = array<i32>} : memref<8x128xf32, #tpu.memory_space<vmem>>, vector<1x128xf32>,
    %c2 = arith.constant 2 : index
    %c0_24 = arith.constant 0 : index
    %38 = vector.load %arg7[%c2, %c0_24] : memref<8x128xf32, #tpu.memory_space<vmem>>, vector<1x128xf32>
    %cst_25 = arith.constant dense<0.000000e+00> : vector<128xf32>
    %39 = vector.multi_reduction <add>, %23, %cst_25 [0] : vector<16x128xf32> to vector<128xf32>
    %40 = vector.shape_cast %39 : vector<128xf32> to vector<1x128xf32>
    %41 = arith.addf %38, %40 : vector<1x128xf32>
    %c2_26 = arith.constant 2 : index
    %c0_27 = arith.constant 0 : index
    %42 = vector.load %arg7[%c2_26, %c0_27] : memref<8x128xf32, #tpu.memory_space<vmem>>, vector<1x128xf32>
    tpu.vector_store %arg7[%c2_26, %c0_27], %41 {strides = array<i32>} : memref<8x128xf32, #tpu.memory_space<vmem>>, vector<1x128xf32>,
    %c3 = arith.constant 3 : index
    %c0_28 = arith.constant 0 : index
    %43 = vector.load %arg7[%c3, %c0_28] : memref<8x128xf32, #tpu.memory_space<vmem>>, vector<1x128xf32>
    %44 = arith.mulf %23, %23 : vector<16x128xf32>
    %cst_29 = arith.constant dense<0.000000e+00> : vector<128xf32>
    %45 = vector.multi_reduction <add>, %44, %cst_29 [0] : vector<16x128xf32> to vector<128xf32>
    %46 = vector.shape_cast %45 : vector<128xf32> to vector<1x128xf32>
    %47 = arith.addf %43, %46 : vector<1x128xf32>
    %c3_30 = arith.constant 3 : index
    %c0_31 = arith.constant 0 : index
    %48 = vector.load %arg7[%c3_30, %c0_31] : memref<8x128xf32, #tpu.memory_space<vmem>>, vector<1x128xf32>
    tpu.vector_store %arg7[%c3_30, %c0_31], %47 {strides = array<i32>} : memref<8x128xf32, #tpu.memory_space<vmem>>, vector<1x128xf32>,
    return
  }
  func.func @transform_0(%arg0: i32) -> (i32, i32) {
    %c0_i32 = arith.constant 0 : i32
    %c0_i32_0 = arith.constant 0 : i32
    return %arg0, %c0_i32 : i32, i32
  }
  func.func @transform_1(%arg0: i32) -> (i32, i32) {
    %c0_i32 = arith.constant 0 : i32
    %c0_i32_0 = arith.constant 0 : i32
    return %arg0, %c0_i32 : i32, i32
  }
  func.func @transform_2(%arg0: i32) -> (i32, i32) {
    %c0_i32 = arith.constant 0 : i32
    %c0_i32_0 = arith.constant 0 : i32
    %c0_i32_1 = arith.constant 0 : i32
    return %c0_i32, %c0_i32_0 : i32, i32
  }
  func.func @transform_3(%arg0: i32) -> (i32, i32) {
    %c0_i32 = arith.constant 0 : i32
    %c0_i32_0 = arith.constant 0 : i32
    %c0_i32_1 = arith.constant 0 : i32
    return %c0_i32, %c0_i32_0 : i32, i32
  }
  func.func @transform_4(%arg0: i32) -> (i32, i32) {
    %c0_i32 = arith.constant 0 : i32
    %c0_i32_0 = arith.constant 0 : i32
    return %arg0, %c0_i32 : i32, i32
  }
  func.func @transform_5(%arg0: i32) -> (i32, i32) {
    %c0_i32 = arith.constant 0 : i32
    %c0_i32_0 = arith.constant 0 : i32
    return %arg0, %c0_i32 : i32, i32
  }
  func.func @transform_6(%arg0: i32) -> (i32, i32) {
    %c0_i32 = arith.constant 0 : i32
    %c0_i32_0 = arith.constant 0 : i32
    %c0_i32_1 = arith.constant 0 : i32
    return %c0_i32, %c0_i32_0 : i32, i32
  }
}

module attributes {stable_mosaic.version = 11 : i64} {
  func.func @decode_kernel(%arg0: i32, %arg1: memref<16x128xf32, #tpu.memory_space<vmem>>, %arg2: memref<8x128xf32, #tpu.memory_space<vmem>>, %arg3: memref<8x128xf32, #tpu.memory_space<vmem>>, %arg4: memref<16x128xf32, #tpu.memory_space<vmem>>, %arg5: memref<128x128xbf16, #tpu.memory_space<vmem>>, %arg6: memref<1x128xf32, #tpu.memory_space<vmem>>, %arg7: memref<16x128xf32, #tpu.memory_space<vmem>>) attributes {dimension_semantics = [#tpu.dimension_semantics<parallel>], iteration_bounds = array<i64: 3>, scalar_prefetch = 0 : i64, scratch_operands = 0 : i64, tpu.core_type = #tpu.core_type<tc>, window_params = [{transform_indices = @transform_0, window_bounds = array<i64: 16, 128>}, {pipeline_mode = #tpu.pipeline_mode<synchronous>, transform_indices = @transform_1, window_bounds = array<i64: 8, 128>}, {pipeline_mode = #tpu.pipeline_mode<synchronous>, transform_indices = @transform_2, window_bounds = array<i64: 8, 128>}, {pipeline_mode = #tpu.pipeline_mode<synchronous>, transform_indices = @transform_3, window_bounds = array<i64: 16, 128>}, {pipeline_mode = #tpu.pipeline_mode<synchronous>, transform_indices = @transform_4, window_bounds = array<i64: 128, 128>}, {pipeline_mode = #tpu.pipeline_mode<synchronous>, transform_indices = @transform_5, window_bounds = array<i64: 1, 128>}, {transform_indices = @transform_6, window_bounds = array<i64: 16, 128>}]} {
    %c0 = arith.constant 0 : index
    %c0_0 = arith.constant 0 : index
    %0 = vector.load %arg2[%c0, %c0_0] : memref<8x128xf32, #tpu.memory_space<vmem>>, vector<1x128xf32>
    %cst = arith.constant 2.500000e-02 : f32
    %1 = vector.broadcast %cst : f32 to vector<1x128xf32>
    %2 = arith.mulf %0, %1 : vector<1x128xf32>
    %c1 = arith.constant 1 : index
    %c0_1 = arith.constant 0 : index
    %3 = vector.load %arg2[%c1, %c0_1] : memref<8x128xf32, #tpu.memory_space<vmem>>, vector<1x128xf32>
    %cst_2 = arith.constant 2.500000e-02 : f32
    %4 = vector.broadcast %cst_2 : f32 to vector<1x128xf32>
    %5 = arith.mulf %3, %4 : vector<1x128xf32>
    %6 = arith.mulf %2, %2 : vector<1x128xf32>
    %7 = arith.subf %5, %6 : vector<1x128xf32>
    %cst_3 = arith.constant 0.000000e+00 : f32
    %8 = vector.broadcast %cst_3 : f32 to vector<1x128xf32>
    %9 = arith.maximumf %7, %8 : vector<1x128xf32>
    %c0_4 = arith.constant 0 : index
    %c0_5 = arith.constant 0 : index
    %10 = vector.load %arg1[%c0_4, %c0_5] : memref<16x128xf32, #tpu.memory_space<vmem>>, vector<16x16xf32>
    %c0_6 = arith.constant 0 : index
    %c0_7 = arith.constant 0 : index
    %11 = vector.load %arg4[%c0_6, %c0_7] : memref<16x128xf32, #tpu.memory_space<vmem>>, vector<16x128xf32>
    %cst_8 = arith.constant dense<0.000000e+00> : vector<16x128xf32>
    %12 = tpu.matmul %10, %11, %cst_8 {dimension_numbers = #tpu.dot_dimension_numbers<[1], [0], [0], [1], [0, 0, 1, 1], [], []>} : vector<16x16xf32>, vector<16x128xf32>, vector<16x128xf32> -> vector<16x128xf32>
    %c0_9 = arith.constant 0 : index
    %c0_10 = arith.constant 0 : index
    %13 = vector.load %arg3[%c0_9, %c0_10] : memref<8x128xf32, #tpu.memory_space<vmem>>, vector<1x128xf32>
    %14 = vector.broadcast %2 : vector<1x128xf32> to vector<16x128xf32>
    %15 = arith.subf %12, %14 : vector<16x128xf32>
    %16 = vector.broadcast %13 : vector<1x128xf32> to vector<16x128xf32>
    %17 = arith.mulf %16, %15 : vector<16x128xf32>
    %cst_11 = arith.constant 9.99999974E-6 : f32
    %18 = vector.broadcast %cst_11 : f32 to vector<1x128xf32>
    %19 = arith.addf %9, %18 : vector<1x128xf32>
    %20 = math.rsqrt %19 : vector<1x128xf32>
    %21 = vector.broadcast %20 : vector<1x128xf32> to vector<16x128xf32>
    %22 = arith.mulf %17, %21 : vector<16x128xf32>
    %c1_12 = arith.constant 1 : index
    %c0_13 = arith.constant 0 : index
    %23 = vector.load %arg3[%c1_12, %c0_13] : memref<8x128xf32, #tpu.memory_space<vmem>>, vector<1x128xf32>
    %24 = vector.broadcast %23 : vector<1x128xf32> to vector<16x128xf32>
    %25 = arith.addf %22, %24 : vector<16x128xf32>
    %cst_14 = arith.constant 0.000000e+00 : f32
    %26 = vector.broadcast %cst_14 : f32 to vector<16x128xf32>
    %27 = arith.maximumf %25, %26 : vector<16x128xf32>
    %28 = arith.truncf %27 : vector<16x128xf32> to vector<16x128xbf16>
    %c0_15 = arith.constant 0 : index
    %c0_16 = arith.constant 0 : index
    %29 = vector.load %arg5[%c0_15, %c0_16] : memref<128x128xbf16, #tpu.memory_space<vmem>>, vector<128x128xbf16>
    %cst_17 = arith.constant dense<0.000000e+00> : vector<16x128xf32>
    %30 = tpu.matmul %28, %29, %cst_17 {dimension_numbers = #tpu.dot_dimension_numbers<[1], [0], [0], [1], [0, 0, 1, 1], [], []>} : vector<16x128xbf16>, vector<128x128xbf16>, vector<16x128xf32> -> vector<16x128xf32>
    %c0_18 = arith.constant 0 : index
    %c0_19 = arith.constant 0 : index
    %31 = vector.load %arg6[%c0_18, %c0_19] : memref<1x128xf32, #tpu.memory_space<vmem>>, vector<1x128xf32>
    %32 = vector.broadcast %31 : vector<1x128xf32> to vector<16x128xf32>
    %33 = arith.addf %30, %32 : vector<16x128xf32>
    %c0_20 = arith.constant 0 : index
    %c0_21 = arith.constant 0 : index
    %34 = vector.load %arg7[%c0_20, %c0_21] : memref<16x128xf32, #tpu.memory_space<vmem>>, vector<16x128xf32>
    tpu.vector_store %arg7[%c0_20, %c0_21], %33 {strides = array<i32>} : memref<16x128xf32, #tpu.memory_space<vmem>>, vector<16x128xf32>,
    return
  }
  func.func @transform_0(%arg0: i32) -> (i32, i32) {
    %c0_i32 = arith.constant 0 : i32
    %c0_i32_0 = arith.constant 0 : i32
    return %arg0, %c0_i32 : i32, i32
  }
  func.func @transform_1(%arg0: i32) -> (i32, i32) {
    %c0_i32 = arith.constant 0 : i32
    %c0_i32_0 = arith.constant 0 : i32
    %c0_i32_1 = arith.constant 0 : i32
    return %c0_i32, %c0_i32_0 : i32, i32
  }
  func.func @transform_2(%arg0: i32) -> (i32, i32) {
    %c0_i32 = arith.constant 0 : i32
    %c0_i32_0 = arith.constant 0 : i32
    %c0_i32_1 = arith.constant 0 : i32
    return %c0_i32, %c0_i32_0 : i32, i32
  }
  func.func @transform_3(%arg0: i32) -> (i32, i32) {
    %c0_i32 = arith.constant 0 : i32
    %c0_i32_0 = arith.constant 0 : i32
    %c0_i32_1 = arith.constant 0 : i32
    return %c0_i32, %c0_i32_0 : i32, i32
  }
  func.func @transform_4(%arg0: i32) -> (i32, i32) {
    %c0_i32 = arith.constant 0 : i32
    %c0_i32_0 = arith.constant 0 : i32
    %c0_i32_1 = arith.constant 0 : i32
    return %c0_i32, %c0_i32_0 : i32, i32
  }
  func.func @transform_5(%arg0: i32) -> (i32, i32) {
    %c0_i32 = arith.constant 0 : i32
    %c0_i32_0 = arith.constant 0 : i32
    %c0_i32_1 = arith.constant 0 : i32
    return %c0_i32, %c0_i32_0 : i32, i32
  }
  func.func @transform_6(%arg0: i32) -> (i32, i32) {
    %c0_i32 = arith.constant 0 : i32
    %c0_i32_0 = arith.constant 0 : i32
    return %arg0, %c0_i32 : i32, i32
  }
}

module attributes {stable_mosaic.version = 11 : i64} {
  func.func @latent_kernel(%arg0: i32, %arg1: memref<48xi32, #tpu.memory_space<smem>>, %arg2: memref<48xi32, #tpu.memory_space<smem>>, %arg3: memref<48x128xf32, #tpu.memory_space<any>>, %arg4: memref<48x128xf32, #tpu.memory_space<any>>, %arg5: memref<16x16xf32, #tpu.memory_space<vmem>>, %arg6: memref<8x128xf32, #tpu.memory_space<vmem>>, %arg7: memref<8x128xf32, #tpu.memory_space<vmem>>, %arg8: memref<128x256xbf16, #tpu.memory_space<vmem>>, %arg9: memref<1x256xf32, #tpu.memory_space<vmem>>, %arg10: memref<128x256xbf16, #tpu.memory_space<vmem>>, %arg11: memref<1x256xf32, #tpu.memory_space<vmem>>, %arg12: memref<16x80xf32, #tpu.memory_space<vmem>>, %arg13: memref<1x80xf32, #tpu.memory_space<vmem>>, %arg14: memref<16x128xf32, #tpu.memory_space<vmem>>, %arg15: memref<16x128xf32, #tpu.memory_space<vmem>>, %arg16: memref<8x128xf32, #tpu.memory_space<vmem>>, %arg17: memref<16x128xf32, #tpu.memory_space<vmem>>, %arg18: memref<16x128xf32, #tpu.memory_space<vmem>>, %arg19: memref<2x!tpu.dma_semaphore, #tpu.memory_space<semaphore_mem>>) attributes {dimension_semantics = [#tpu.dimension_semantics<arbitrary>], iteration_bounds = array<i64: 3>, scalar_prefetch = 2 : i64, scratch_operands = 3 : i64, tpu.core_type = #tpu.core_type<tc>, window_params = [{}, {}, {transform_indices = @transform_2, window_bounds = array<i64: 16, 16>}, {pipeline_mode = #tpu.pipeline_mode<synchronous>, transform_indices = @transform_3, window_bounds = array<i64: 8, 128>}, {pipeline_mode = #tpu.pipeline_mode<synchronous>, transform_indices = @transform_4, window_bounds = array<i64: 8, 128>}, {pipeline_mode = #tpu.pipeline_mode<synchronous>, transform_indices = @transform_5, window_bounds = array<i64: 128, 256>}, {pipeline_mode = #tpu.pipeline_mode<synchronous>, transform_indices = @transform_6, window_bounds = array<i64: 1, 256>}, {pipeline_mode = #tpu.pipeline_mode<synchronous>, transform_indices = @transform_7, window_bounds = array<i64: 128, 256>}, {pipeline_mode = #tpu.pipeline_mode<synchronous>, transform_indices = @transform_8, window_bounds = array<i64: 1, 256>}, {pipeline_mode = #tpu.pipeline_mode<synchronous>, transform_indices = @transform_9, window_bounds = array<i64: 16, 80>}, {pipeline_mode = #tpu.pipeline_mode<synchronous>, transform_indices = @transform_10, window_bounds = array<i64: 1, 80>}, {pipeline_mode = #tpu.pipeline_mode<synchronous>, transform_indices = @transform_11, window_bounds = array<i64: 16, 128>}, {transform_indices = @transform_12, window_bounds = array<i64: 16, 128>}, {pipeline_mode = #tpu.pipeline_mode<synchronous>, transform_indices = @transform_13, window_bounds = array<i64: 8, 128>}]} {
    %c16_i32 = arith.constant 16 : i32
    %0 = arith.muli %arg0, %c16_i32 : i32
    %c0_i32 = arith.constant 0 : i32
    %c16_i32_0 = arith.constant 16 : i32
    %1 = arith.addi %c0_i32, %c16_i32_0 : i32
    %c1_i32 = arith.constant 1 : i32
    scf.for %arg20 = %c0_i32 to %1 step %c1_i32  : i32 {
      %139 = arith.addi %0, %arg20 : i32
      %140 = arith.index_cast %139 : i32 to index
      %141 = memref.load %arg1[%140] : memref<48xi32, #tpu.memory_space<smem>>
      %c0_i32_75 = arith.constant 0 : i32
      %c0_i32_76 = arith.constant 0 : i32
      %142 = tpu.memref_slice %arg3[%141, %c0_i32_76] : memref<48x128xf32, #tpu.memory_space<any>> -> memref<1x128xf32, #tpu.memory_space<any>>
      %c0_i32_77 = arith.constant 0 : i32
      %143 = tpu.memref_slice %arg17[%arg20, %c0_i32_77] : memref<16x128xf32, #tpu.memory_space<vmem>> -> memref<1x128xf32, #tpu.memory_space<vmem>>
      %144 = tpu.memref_slice %arg19[%c0_i32_75] : memref<2x!tpu.dma_semaphore, #tpu.memory_space<semaphore_mem>> -> memref<1x!tpu.dma_semaphore, #tpu.memory_space<semaphore_mem>>
      %145 = tpu.memref_squeeze %144 : memref<1x!tpu.dma_semaphore, #tpu.memory_space<semaphore_mem>> -> memref<!tpu.dma_semaphore, #tpu.memory_space<semaphore_mem>>
      tpu.enqueue_dma source(%142 : memref<1x128xf32, #tpu.memory_space<any>>) target(%143 : memref<1x128xf32, #tpu.memory_space<vmem>>) target_semaphore(%145 : memref<!tpu.dma_semaphore, #tpu.memory_space<semaphore_mem>>)
      %146 = arith.addi %0, %arg20 : i32
      %147 = arith.index_cast %146 : i32 to index
      %148 = memref.load %arg2[%147] : memref<48xi32, #tpu.memory_space<smem>>
      %c1_i32_78 = arith.constant 1 : i32
      %c0_i32_79 = arith.constant 0 : i32
      %149 = tpu.memref_slice %arg4[%148, %c0_i32_79] : memref<48x128xf32, #tpu.memory_space<any>> -> memref<1x128xf32, #tpu.memory_space<any>>
      %c0_i32_80 = arith.constant 0 : i32
      %150 = tpu.memref_slice %arg18[%arg20, %c0_i32_80] : memref<16x128xf32, #tpu.memory_space<vmem>> -> memref<1x128xf32, #tpu.memory_space<vmem>>
      %151 = tpu.memref_slice %arg19[%c1_i32_78] : memref<2x!tpu.dma_semaphore, #tpu.memory_space<semaphore_mem>> -> memref<1x!tpu.dma_semaphore, #tpu.memory_space<semaphore_mem>>
      %152 = tpu.memref_squeeze %151 : memref<1x!tpu.dma_semaphore, #tpu.memory_space<semaphore_mem>> -> memref<!tpu.dma_semaphore, #tpu.memory_space<semaphore_mem>>
      tpu.enqueue_dma source(%149 : memref<1x128xf32, #tpu.memory_space<any>>) target(%150 : memref<1x128xf32, #tpu.memory_space<vmem>>) target_semaphore(%152 : memref<!tpu.dma_semaphore, #tpu.memory_space<semaphore_mem>>)
    }
    %c16_i32_1 = arith.constant 16 : i32
    %c0_i32_2 = arith.constant 0 : i32
    %c16_i32_3 = arith.constant 16 : i32
    %2 = arith.addi %c0_i32_2, %c16_i32_3 : i32
    %c1_i32_4 = arith.constant 1 : i32
    scf.for %arg20 = %c0_i32_2 to %2 step %c1_i32_4  : i32 {
      %c0_i32_75 = arith.constant 0 : i32
      %c0_i32_76 = arith.constant 0 : i32
      %c0_i32_77 = arith.constant 0 : i32
      %139 = tpu.memref_slice %arg3[%c0_i32_76, %c0_i32_77] : memref<48x128xf32, #tpu.memory_space<any>> -> memref<1x128xf32, #tpu.memory_space<any>>
      %c0_i32_78 = arith.constant 0 : i32
      %c0_i32_79 = arith.constant 0 : i32
      %140 = tpu.memref_slice %arg17[%c0_i32_78, %c0_i32_79] : memref<16x128xf32, #tpu.memory_space<vmem>> -> memref<1x128xf32, #tpu.memory_space<vmem>>
      %141 = tpu.memref_slice %arg19[%c0_i32_75] : memref<2x!tpu.dma_semaphore, #tpu.memory_space<semaphore_mem>> -> memref<1x!tpu.dma_semaphore, #tpu.memory_space<semaphore_mem>>
      %142 = tpu.memref_squeeze %141 : memref<1x!tpu.dma_semaphore, #tpu.memory_space<semaphore_mem>> -> memref<!tpu.dma_semaphore, #tpu.memory_space<semaphore_mem>>
      tpu.wait_dma2 semaphore(%142 : memref<!tpu.dma_semaphore, #tpu.memory_space<semaphore_mem>>) src(%139 : memref<1x128xf32, #tpu.memory_space<any>>) dst(%140 : memref<1x128xf32, #tpu.memory_space<vmem>>)
      %c1_i32_80 = arith.constant 1 : i32
      %c0_i32_81 = arith.constant 0 : i32
      %c0_i32_82 = arith.constant 0 : i32
      %143 = tpu.memref_slice %arg4[%c0_i32_81, %c0_i32_82] : memref<48x128xf32, #tpu.memory_space<any>> -> memref<1x128xf32, #tpu.memory_space<any>>
      %c0_i32_83 = arith.constant 0 : i32
      %c0_i32_84 = arith.constant 0 : i32
      %144 = tpu.memref_slice %arg18[%c0_i32_83, %c0_i32_84] : memref<16x128xf32, #tpu.memory_space<vmem>> -> memref<1x128xf32, #tpu.memory_space<vmem>>
      %145 = tpu.memref_slice %arg19[%c1_i32_80] : memref<2x!tpu.dma_semaphore, #tpu.memory_space<semaphore_mem>> -> memref<1x!tpu.dma_semaphore, #tpu.memory_space<semaphore_mem>>
      %146 = tpu.memref_squeeze %145 : memref<1x!tpu.dma_semaphore, #tpu.memory_space<semaphore_mem>> -> memref<!tpu.dma_semaphore, #tpu.memory_space<semaphore_mem>>
      tpu.wait_dma2 semaphore(%146 : memref<!tpu.dma_semaphore, #tpu.memory_space<semaphore_mem>>) src(%143 : memref<1x128xf32, #tpu.memory_space<any>>) dst(%144 : memref<1x128xf32, #tpu.memory_space<vmem>>)
    }
    %c0 = arith.constant 0 : index
    %c0_5 = arith.constant 0 : index
    %3 = vector.load %arg6[%c0, %c0_5] : memref<8x128xf32, #tpu.memory_space<vmem>>, vector<1x128xf32>
    %cst = arith.constant 2.500000e-02 : f32
    %4 = vector.broadcast %cst : f32 to vector<1x128xf32>
    %5 = arith.mulf %3, %4 : vector<1x128xf32>
    %c1 = arith.constant 1 : index
    %c0_6 = arith.constant 0 : index
    %6 = vector.load %arg6[%c1, %c0_6] : memref<8x128xf32, #tpu.memory_space<vmem>>, vector<1x128xf32>
    %cst_7 = arith.constant 2.500000e-02 : f32
    %7 = vector.broadcast %cst_7 : f32 to vector<1x128xf32>
    %8 = arith.mulf %6, %7 : vector<1x128xf32>
    %9 = arith.mulf %5, %5 : vector<1x128xf32>
    %10 = arith.subf %8, %9 : vector<1x128xf32>
    %cst_8 = arith.constant 0.000000e+00 : f32
    %11 = vector.broadcast %cst_8 : f32 to vector<1x128xf32>
    %12 = arith.maximumf %10, %11 : vector<1x128xf32>
    %c0_9 = arith.constant 0 : index
    %c0_10 = arith.constant 0 : index
    %13 = vector.load %arg7[%c0_9, %c0_10] : memref<8x128xf32, #tpu.memory_space<vmem>>, vector<1x128xf32>
    %c1_11 = arith.constant 1 : index
    %c0_12 = arith.constant 0 : index
    %14 = vector.load %arg7[%c1_11, %c0_12] : memref<8x128xf32, #tpu.memory_space<vmem>>, vector<1x128xf32>
    %c0_13 = arith.constant 0 : index
    %c0_14 = arith.constant 0 : index
    %15 = vector.load %arg17[%c0_13, %c0_14] : memref<16x128xf32, #tpu.memory_space<vmem>>, vector<16x128xf32>
    %16 = vector.broadcast %5 : vector<1x128xf32> to vector<16x128xf32>
    %17 = arith.subf %15, %16 : vector<16x128xf32>
    %18 = vector.broadcast %13 : vector<1x128xf32> to vector<16x128xf32>
    %19 = arith.mulf %18, %17 : vector<16x128xf32>
    %cst_15 = arith.constant 9.99999974E-6 : f32
    %20 = vector.broadcast %cst_15 : f32 to vector<1x128xf32>
    %21 = arith.addf %12, %20 : vector<1x128xf32>
    %22 = math.rsqrt %21 : vector<1x128xf32>
    %23 = vector.broadcast %22 : vector<1x128xf32> to vector<16x128xf32>
    %24 = arith.mulf %19, %23 : vector<16x128xf32>
    %25 = vector.broadcast %14 : vector<1x128xf32> to vector<16x128xf32>
    %26 = arith.addf %24, %25 : vector<16x128xf32>
    %cst_16 = arith.constant 0.000000e+00 : f32
    %27 = vector.broadcast %cst_16 : f32 to vector<16x128xf32>
    %28 = arith.maximumf %26, %27 : vector<16x128xf32>
    %29 = arith.truncf %28 : vector<16x128xf32> to vector<16x128xbf16>
    %c0_17 = arith.constant 0 : index
    %c0_18 = arith.constant 0 : index
    %30 = vector.load %arg8[%c0_17, %c0_18] : memref<128x256xbf16, #tpu.memory_space<vmem>>, vector<128x256xbf16>
    %cst_19 = arith.constant dense<0.000000e+00> : vector<16x256xf32>
    %31 = tpu.matmul %29, %30, %cst_19 {dimension_numbers = #tpu.dot_dimension_numbers<[1], [0], [0], [1], [0, 0, 1, 1], [], []>} : vector<16x128xbf16>, vector<128x256xbf16>, vector<16x256xf32> -> vector<16x256xf32>
    %c0_20 = arith.constant 0 : index
    %c0_21 = arith.constant 0 : index
    %32 = vector.load %arg9[%c0_20, %c0_21] : memref<1x256xf32, #tpu.memory_space<vmem>>, vector<1x256xf32>
    %33 = vector.broadcast %32 : vector<1x256xf32> to vector<16x256xf32>
    %34 = arith.addf %31, %33 : vector<16x256xf32>
    %35 = vector.extract_strided_slice %34 {offsets = [0, 0], sizes = [16, 16], strides = [1, 1]} : vector<16x256xf32> to vector<16x16xf32>
    %36 = vector.extract_strided_slice %34 {offsets = [0, 128], sizes = [16, 16], strides = [1, 1]} : vector<16x256xf32> to vector<16x16xf32>
    %37 = math.exp %36 : vector<16x16xf32>
    %c2 = arith.constant 2 : index
    %c0_22 = arith.constant 0 : index
    %38 = vector.load %arg6[%c2, %c0_22] : memref<8x128xf32, #tpu.memory_space<vmem>>, vector<1x128xf32>
    %cst_23 = arith.constant 2.500000e-02 : f32
    %39 = vector.broadcast %cst_23 : f32 to vector<1x128xf32>
    %40 = arith.mulf %38, %39 : vector<1x128xf32>
    %c3 = arith.constant 3 : index
    %c0_24 = arith.constant 0 : index
    %41 = vector.load %arg6[%c3, %c0_24] : memref<8x128xf32, #tpu.memory_space<vmem>>, vector<1x128xf32>
    %cst_25 = arith.constant 2.500000e-02 : f32
    %42 = vector.broadcast %cst_25 : f32 to vector<1x128xf32>
    %43 = arith.mulf %41, %42 : vector<1x128xf32>
    %44 = arith.mulf %40, %40 : vector<1x128xf32>
    %45 = arith.subf %43, %44 : vector<1x128xf32>
    %cst_26 = arith.constant 0.000000e+00 : f32
    %46 = vector.broadcast %cst_26 : f32 to vector<1x128xf32>
    %47 = arith.maximumf %45, %46 : vector<1x128xf32>
    %c2_27 = arith.constant 2 : index
    %c0_28 = arith.constant 0 : index
    %48 = vector.load %arg7[%c2_27, %c0_28] : memref<8x128xf32, #tpu.memory_space<vmem>>, vector<1x128xf32>
    %c3_29 = arith.constant 3 : index
    %c0_30 = arith.constant 0 : index
    %49 = vector.load %arg7[%c3_29, %c0_30] : memref<8x128xf32, #tpu.memory_space<vmem>>, vector<1x128xf32>
    %c0_31 = arith.constant 0 : index
    %c0_32 = arith.constant 0 : index
    %50 = vector.load %arg18[%c0_31, %c0_32] : memref<16x128xf32, #tpu.memory_space<vmem>>, vector<16x128xf32>
    %51 = vector.broadcast %40 : vector<1x128xf32> to vector<16x128xf32>
    %52 = arith.subf %50, %51 : vector<16x128xf32>
    %53 = vector.broadcast %48 : vector<1x128xf32> to vector<16x128xf32>
    %54 = arith.mulf %53, %52 : vector<16x128xf32>
    %cst_33 = arith.constant 9.99999974E-6 : f32
    %55 = vector.broadcast %cst_33 : f32 to vector<1x128xf32>
    %56 = arith.addf %47, %55 : vector<1x128xf32>
    %57 = math.rsqrt %56 : vector<1x128xf32>
    %58 = vector.broadcast %57 : vector<1x128xf32> to vector<16x128xf32>
    %59 = arith.mulf %54, %58 : vector<16x128xf32>
    %60 = vector.broadcast %49 : vector<1x128xf32> to vector<16x128xf32>
    %61 = arith.addf %59, %60 : vector<16x128xf32>
    %cst_34 = arith.constant 0.000000e+00 : f32
    %62 = vector.broadcast %cst_34 : f32 to vector<16x128xf32>
    %63 = arith.maximumf %61, %62 : vector<16x128xf32>
    %64 = arith.truncf %63 : vector<16x128xf32> to vector<16x128xbf16>
    %c0_35 = arith.constant 0 : index
    %c0_36 = arith.constant 0 : index
    %65 = vector.load %arg10[%c0_35, %c0_36] : memref<128x256xbf16, #tpu.memory_space<vmem>>, vector<128x256xbf16>
    %cst_37 = arith.constant dense<0.000000e+00> : vector<16x256xf32>
    %66 = tpu.matmul %64, %65, %cst_37 {dimension_numbers = #tpu.dot_dimension_numbers<[1], [0], [0], [1], [0, 0, 1, 1], [], []>} : vector<16x128xbf16>, vector<128x256xbf16>, vector<16x256xf32> -> vector<16x256xf32>
    %c0_38 = arith.constant 0 : index
    %c0_39 = arith.constant 0 : index
    %67 = vector.load %arg11[%c0_38, %c0_39] : memref<1x256xf32, #tpu.memory_space<vmem>>, vector<1x256xf32>
    %68 = vector.broadcast %67 : vector<1x256xf32> to vector<16x256xf32>
    %69 = arith.addf %66, %68 : vector<16x256xf32>
    %70 = vector.extract_strided_slice %69 {offsets = [0, 0], sizes = [16, 16], strides = [1, 1]} : vector<16x256xf32> to vector<16x16xf32>
    %71 = vector.extract_strided_slice %69 {offsets = [0, 128], sizes = [16, 16], strides = [1, 1]} : vector<16x256xf32> to vector<16x16xf32>
    %72 = math.exp %71 : vector<16x16xf32>
    %cst_40 = arith.constant 1.000000e+00 : f32
    %73 = vector.broadcast %cst_40 : f32 to vector<16x16xf32>
    %74 = arith.divf %73, %37 : vector<16x16xf32>
    %cst_41 = arith.constant 1.000000e+00 : f32
    %75 = vector.broadcast %cst_41 : f32 to vector<16x16xf32>
    %76 = arith.divf %75, %72 : vector<16x16xf32>
    %77 = arith.addf %74, %76 : vector<16x16xf32>
    %cst_42 = arith.constant 1.000000e+00 : f32
    %78 = vector.broadcast %cst_42 : f32 to vector<16x16xf32>
    %79 = arith.addf %77, %78 : vector<16x16xf32>
    %cst_43 = arith.constant 1.000000e+00 : f32
    %80 = vector.broadcast %cst_43 : f32 to vector<16x16xf32>
    %81 = arith.divf %80, %79 : vector<16x16xf32>
    %82 = arith.mulf %35, %74 : vector<16x16xf32>
    %83 = arith.mulf %70, %76 : vector<16x16xf32>
    %84 = arith.addf %82, %83 : vector<16x16xf32>
    %85 = arith.mulf %84, %81 : vector<16x16xf32>
    %c0_44 = arith.constant 0 : index
    %c0_45 = arith.constant 0 : index
    %86 = vector.load %arg5[%c0_44, %c0_45] : memref<16x16xf32, #tpu.memory_space<vmem>>, vector<16x16xf32>
    %87 = arith.mulf %81, %86 : vector<16x16xf32>
    %88 = arith.addf %85, %87 : vector<16x16xf32>
    %c0_46 = arith.constant 0 : index
    %c0_47 = arith.constant 0 : index
    %89 = vector.load %arg12[%c0_46, %c0_47] : memref<16x80xf32, #tpu.memory_space<vmem>>, vector<16x80xf32>
    %cst_48 = arith.constant dense<0.000000e+00> : vector<16x80xf32>
    %90 = tpu.matmul %88, %89, %cst_48 {dimension_numbers = #tpu.dot_dimension_numbers<[1], [0], [0], [1], [0, 0, 1, 1], [], []>} : vector<16x16xf32>, vector<16x80xf32>, vector<16x80xf32> -> vector<16x80xf32>
    %91 = arith.mulf %88, %88 : vector<16x16xf32>
    %cst_49 = arith.constant dense<0.000000e+00> : vector<16xf32>
    %92 = vector.multi_reduction <add>, %91, %cst_49 [1] : vector<16x16xf32> to vector<16xf32>
    %93 = vector.shape_cast %92 : vector<16xf32> to vector<16x1xf32>
    %cst_50 = arith.constant 2.000000e+00 : f32
    %94 = vector.broadcast %cst_50 : f32 to vector<16x80xf32>
    %95 = arith.mulf %94, %90 : vector<16x80xf32>
    %96 = vector.broadcast %93 : vector<16x1xf32> to vector<16x80xf32>
    %97 = arith.subf %96, %95 : vector<16x80xf32>
    %c0_51 = arith.constant 0 : index
    %c0_52 = arith.constant 0 : index
    %98 = vector.load %arg13[%c0_51, %c0_52] : memref<1x80xf32, #tpu.memory_space<vmem>>, vector<1x80xf32>
    %99 = vector.broadcast %98 : vector<1x80xf32> to vector<16x80xf32>
    %100 = arith.addf %97, %99 : vector<16x80xf32>
    %cst_53 = arith.constant 0.000000e+00 : f32
    %101 = vector.broadcast %cst_53 : f32 to vector<16x80xf32>
    %102 = arith.maximumf %100, %101 : vector<16x80xf32>
    %cst_54 = arith.constant 1.000000e+00 : f32
    %103 = vector.broadcast %cst_54 : f32 to vector<16x80xf32>
    %104 = arith.addf %103, %102 : vector<16x80xf32>
    %cst_55 = arith.constant 1.000000e+00 : f32
    %105 = vector.broadcast %cst_55 : f32 to vector<16x80xf32>
    %106 = arith.divf %105, %104 : vector<16x80xf32>
    %cst_56 = arith.constant dense<0.000000e+00> : vector<16xf32>
    %107 = vector.multi_reduction <add>, %106, %cst_56 [1] : vector<16x80xf32> to vector<16xf32>
    %108 = vector.shape_cast %107 : vector<16xf32> to vector<16x1xf32>
    %109 = tpu.reciprocal %108 {approx = true} : vector<16x1xf32> -> vector<16x1xf32>
    %110 = vector.broadcast %109 : vector<16x1xf32> to vector<16x80xf32>
    %111 = arith.mulf %106, %110 : vector<16x80xf32>
    %112 = tpu.concatenate %88, %85, %81, %111 in 1 : vector<16x16xf32>, vector<16x16xf32>, vector<16x16xf32>, vector<16x80xf32> -> vector<16x128xf32>
    %c0_57 = arith.constant 0 : index
    %c0_58 = arith.constant 0 : index
    %113 = vector.load %arg15[%c0_57, %c0_58] : memref<16x128xf32, #tpu.memory_space<vmem>>, vector<16x128xf32>
    tpu.vector_store %arg15[%c0_57, %c0_58], %112 {strides = array<i32>} : memref<16x128xf32, #tpu.memory_space<vmem>>, vector<16x128xf32>,
    %c0_59 = arith.constant 0 : index
    %c0_60 = arith.constant 0 : index
    %114 = vector.load %arg14[%c0_59, %c0_60] : memref<16x128xf32, #tpu.memory_space<vmem>>, vector<16x128xf32>
    %cst_61 = arith.constant dense<0.000000e+00> : vector<16x128xf32>
    %115 = tpu.matmul %88, %114, %cst_61 {dimension_numbers = #tpu.dot_dimension_numbers<[1], [0], [0], [1], [0, 0, 1, 1], [], []>} : vector<16x16xf32>, vector<16x128xf32>, vector<16x128xf32> -> vector<16x128xf32>
    %116 = tpu.iota {dimensions = array<i32: 0>} : vector<16x1xi32>
    %117 = vector.broadcast %0 : i32 to vector<16x1xi32>
    %118 = arith.addi %117, %116 : vector<16x1xi32>
    %c40_i32 = arith.constant 40 : i32
    %119 = vector.broadcast %c40_i32 : i32 to vector<16x1xi32>
    %120 = arith.cmpi slt, %118, %119 : vector<16x1xi32>
    %cst_62 = arith.constant 0.000000e+00 : f32
    %121 = vector.shape_cast %120 : vector<16x1xi1> to vector<16x1xi1>
    %122 = vector.broadcast %121 : vector<16x1xi1> to vector<16x128xi1>
    %123 = vector.broadcast %cst_62 : f32 to vector<16x128xf32>
    %124 = arith.select %122, %115, %123 : vector<16x128xi1>, vector<16x128xf32>
    %c0_i32_63 = arith.constant 0 : i32
    %125 = arith.cmpi eq, %arg0, %c0_i32_63 : i32
    %126 = arith.extui %125 : i1 to i32
    %c0_i32_64 = arith.constant 0 : i32
    %127 = arith.cmpi ne, %126, %c0_i32_64 : i32
    scf.if %127 {
      %cst_75 = arith.constant 0.000000e+00 : f32
      %139 = vector.broadcast %cst_75 : f32 to vector<8x128xf32>
      %c0_76 = arith.constant 0 : index
      %c0_77 = arith.constant 0 : index
      %140 = vector.load %arg16[%c0_76, %c0_77] : memref<8x128xf32, #tpu.memory_space<vmem>>, vector<8x128xf32>
      tpu.vector_store %arg16[%c0_76, %c0_77], %139 {strides = array<i32>} : memref<8x128xf32, #tpu.memory_space<vmem>>, vector<8x128xf32>,
    } else {
    }
    %c0_65 = arith.constant 0 : index
    %c0_66 = arith.constant 0 : index
    %128 = vector.load %arg16[%c0_65, %c0_66] : memref<8x128xf32, #tpu.memory_space<vmem>>, vector<1x128xf32>
    %cst_67 = arith.constant dense<0.000000e+00> : vector<128xf32>
    %129 = vector.multi_reduction <add>, %124, %cst_67 [0] : vector<16x128xf32> to vector<128xf32>
    %130 = vector.shape_cast %129 : vector<128xf32> to vector<1x128xf32>
    %131 = arith.addf %128, %130 : vector<1x128xf32>
    %c0_68 = arith.constant 0 : index
    %c0_69 = arith.constant 0 : index
    %132 = vector.load %arg16[%c0_68, %c0_69] : memref<8x128xf32, #tpu.memory_space<vmem>>, vector<1x128xf32>
    tpu.vector_store %arg16[%c0_68, %c0_69], %131 {strides = array<i32>} : memref<8x128xf32, #tpu.memory_space<vmem>>, vector<1x128xf32>,
    %c1_70 = arith.constant 1 : index
    %c0_71 = arith.constant 0 : index
    %133 = vector.load %arg16[%c1_70, %c0_71] : memref<8x128xf32, #tpu.memory_space<vmem>>, vector<1x128xf32>
    %134 = arith.mulf %124, %124 : vector<16x128xf32>
    %cst_72 = arith.constant dense<0.000000e+00> : vector<128xf32>
    %135 = vector.multi_reduction <add>, %134, %cst_72 [0] : vector<16x128xf32> to vector<128xf32>
    %136 = vector.shape_cast %135 : vector<128xf32> to vector<1x128xf32>
    %137 = arith.addf %133, %136 : vector<1x128xf32>
    %c1_73 = arith.constant 1 : index
    %c0_74 = arith.constant 0 : index
    %138 = vector.load %arg16[%c1_73, %c0_74] : memref<8x128xf32, #tpu.memory_space<vmem>>, vector<1x128xf32>
    tpu.vector_store %arg16[%c1_73, %c0_74], %137 {strides = array<i32>} : memref<8x128xf32, #tpu.memory_space<vmem>>, vector<1x128xf32>,
    return
  }
  func.func @transform_2(%arg0: i32, %arg1: memref<48xi32, #tpu.memory_space<smem>>, %arg2: memref<48xi32, #tpu.memory_space<smem>>) -> (i32, i32) {
    %c0_i32 = arith.constant 0 : i32
    %c0_i32_0 = arith.constant 0 : i32
    return %arg0, %c0_i32 : i32, i32
  }
  func.func @transform_3(%arg0: i32, %arg1: memref<48xi32, #tpu.memory_space<smem>>, %arg2: memref<48xi32, #tpu.memory_space<smem>>) -> (i32, i32) {
    %c0_i32 = arith.constant 0 : i32
    %c0_i32_0 = arith.constant 0 : i32
    %c0_i32_1 = arith.constant 0 : i32
    return %c0_i32, %c0_i32_0 : i32, i32
  }
  func.func @transform_4(%arg0: i32, %arg1: memref<48xi32, #tpu.memory_space<smem>>, %arg2: memref<48xi32, #tpu.memory_space<smem>>) -> (i32, i32) {
    %c0_i32 = arith.constant 0 : i32
    %c0_i32_0 = arith.constant 0 : i32
    %c0_i32_1 = arith.constant 0 : i32
    return %c0_i32, %c0_i32_0 : i32, i32
  }
  func.func @transform_5(%arg0: i32, %arg1: memref<48xi32, #tpu.memory_space<smem>>, %arg2: memref<48xi32, #tpu.memory_space<smem>>) -> (i32, i32) {
    %c0_i32 = arith.constant 0 : i32
    %c0_i32_0 = arith.constant 0 : i32
    %c0_i32_1 = arith.constant 0 : i32
    return %c0_i32, %c0_i32_0 : i32, i32
  }
  func.func @transform_6(%arg0: i32, %arg1: memref<48xi32, #tpu.memory_space<smem>>, %arg2: memref<48xi32, #tpu.memory_space<smem>>) -> (i32, i32) {
    %c0_i32 = arith.constant 0 : i32
    %c0_i32_0 = arith.constant 0 : i32
    %c0_i32_1 = arith.constant 0 : i32
    return %c0_i32, %c0_i32_0 : i32, i32
  }
  func.func @transform_7(%arg0: i32, %arg1: memref<48xi32, #tpu.memory_space<smem>>, %arg2: memref<48xi32, #tpu.memory_space<smem>>) -> (i32, i32) {
    %c0_i32 = arith.constant 0 : i32
    %c0_i32_0 = arith.constant 0 : i32
    %c0_i32_1 = arith.constant 0 : i32
    return %c0_i32, %c0_i32_0 : i32, i32
  }
  func.func @transform_8(%arg0: i32, %arg1: memref<48xi32, #tpu.memory_space<smem>>, %arg2: memref<48xi32, #tpu.memory_space<smem>>) -> (i32, i32) {
    %c0_i32 = arith.constant 0 : i32
    %c0_i32_0 = arith.constant 0 : i32
    %c0_i32_1 = arith.constant 0 : i32
    return %c0_i32, %c0_i32_0 : i32, i32
  }
  func.func @transform_9(%arg0: i32, %arg1: memref<48xi32, #tpu.memory_space<smem>>, %arg2: memref<48xi32, #tpu.memory_space<smem>>) -> (i32, i32) {
    %c0_i32 = arith.constant 0 : i32
    %c0_i32_0 = arith.constant 0 : i32
    %c0_i32_1 = arith.constant 0 : i32
    return %c0_i32, %c0_i32_0 : i32, i32
  }
  func.func @transform_10(%arg0: i32, %arg1: memref<48xi32, #tpu.memory_space<smem>>, %arg2: memref<48xi32, #tpu.memory_space<smem>>) -> (i32, i32) {
    %c0_i32 = arith.constant 0 : i32
    %c0_i32_0 = arith.constant 0 : i32
    %c0_i32_1 = arith.constant 0 : i32
    return %c0_i32, %c0_i32_0 : i32, i32
  }
  func.func @transform_11(%arg0: i32, %arg1: memref<48xi32, #tpu.memory_space<smem>>, %arg2: memref<48xi32, #tpu.memory_space<smem>>) -> (i32, i32) {
    %c0_i32 = arith.constant 0 : i32
    %c0_i32_0 = arith.constant 0 : i32
    %c0_i32_1 = arith.constant 0 : i32
    return %c0_i32, %c0_i32_0 : i32, i32
  }
  func.func @transform_12(%arg0: i32, %arg1: memref<48xi32, #tpu.memory_space<smem>>, %arg2: memref<48xi32, #tpu.memory_space<smem>>) -> (i32, i32) {
    %c0_i32 = arith.constant 0 : i32
    %c0_i32_0 = arith.constant 0 : i32
    return %arg0, %c0_i32 : i32, i32
  }
  func.func @transform_13(%arg0: i32, %arg1: memref<48xi32, #tpu.memory_space<smem>>, %arg2: memref<48xi32, #tpu.memory_space<smem>>) -> (i32, i32) {
    %c0_i32 = arith.constant 0 : i32
    %c0_i32_0 = arith.constant 0 : i32
    %c0_i32_1 = arith.constant 0 : i32
    return %c0_i32, %c0_i32_0 : i32, i32
  }
}

</mosaic_0001>

<llo_original>
// kernel: multi_all_forward.3
$region0: #{multi_all_forward.3}
  #allocation0 [shape = 'u32[]', space=smem, size = 0x4, offset = 0x4, fixed_abs, tag = 'smem constant byte address 0x4 - core index']
  #allocation1 [shape = 'u32[144,128]{1,0:T(1,128)}', space=vmem, size = 0x12000, scoped, tag = 'internal scratch']
  %s0 = inlined_call_operand.vmem [shape: f32[48,64], index: 0, kind: input, shape index: {}]
  %s1 = inlined_call_operand.vmem [shape: f32[48,64], index: 1, kind: input, shape index: {}]
  %s2 = inlined_call_operand.vmem [shape: bf16[64,128], index: 2, kind: input, shape index: {}]
  %s3 = inlined_call_operand.vmem [shape: bf16[64,128], index: 3, kind: input, shape index: {}]
  %s4 = inlined_call_operand.vmem [shape: f32[48,128], index: 4, kind: output, shape index: {0}]
  %s5 = inlined_call_operand.vmem [shape: f32[48,128], index: 5, kind: output, shape index: {1}]
  %s6 = inlined_call_operand.vmem [shape: f32[8,128], index: 6, kind: output, shape index: {2}]
  %7 = xla_tuple %s4, %s5, %s6
  %s8 = sld [smem:[#allocation0]]
  $region69: #{multi_all_forward.3} parent=0
    _
  %s10 = ssub.s32 1, %s8
  %s11 = scalar_select 0, %s10, %s8
  loop: start=0, step=1, limit=5
  $region2: #{multi_all_forward.3} parent=0 // loop_pre_header
    _
  $region3: #{multi_all_forward.3} parent=0 // loop_header
    %s13 = sphi 0, %s17
    %p14 = scmp.ge.s32.totalorder %s13, 5
    %s23 = sphi 0, %s25
    %s26 = sphi 0, %s23
    %s27 = sphi 0, %s26
    %s43 = sphi 0, %s27
    %s49 = sphi 0, %s51
    %s52 = sphi 0, %s49
    %s53 = sphi 0, %s52
    %s69 = sphi 0, %s53
    %s73 = sphi 0, %s73
    %s75 = sphi 0, %s73
    %s76 = sphi 0, %s75
    %s90 = sphi 0, %s76
    %s94 = sphi 0, %s94
    %s96 = sphi 0, %s94
    %s97 = sphi 0, %s96
    %s111 = sphi 0, %s97
    %s117 = sphi 0, %s119
    %s120 = sphi 0, %s117
    %s121 = sphi 0, %s120
    %s137 = sphi 0, %s121
    %s143 = sphi 0, %s145
    %s146 = sphi 0, %s143
    %s147 = sphi 0, %s146
    %s163 = sphi 0, %s147
    %s167 = sphi 0, %s167
    %s169 = sphi 0, %s167
    %s170 = sphi 0, %s169
    %s184 = sphi 0, %s170
  $region4: #{multi_all_forward.3} parent=0 // loop_header_branch
    %16 = sbr.rel (%p14) target = $region8
  $region5: #{multi_all_forward.3} parent=0 // loop_body
    %s18 = ssub.s32 %s13, 1
    %s19 = ssub.s32 %s13, 2
    %s20 = sadd.s32 %s13, 1
    %s21 = ssub.s32 %s13, %s20
    %p22 = scmp.eq.s32.totalorder %s21, 0
    %s24 = sadd.s32 %s23, 1
    %s25 = scalar_select %p22, %s23, %s24
    %p28 = pneg %p22
    %p29 = scmp.eq.s32.totalorder %s13, 2
    %p30 = por %p28, %p29
    %p31 = scmp.ne.s32.totalorder %s23, %s26
    %p32 = scmp.eq.s32.totalorder %s13, 0
    %p33 = por %p31, %p32
    %p34 = scmp.ne.s32.totalorder %s23, %s26
    %p35 = scmp.eq.s32.totalorder %s18, 2
    %p36 = por %p34, %p35
    %p37 = scmp.ne.s32.totalorder %s26, %s27
    %p38 = scmp.eq.s32.totalorder %s18, 0
    %p39 = por %p37, %p38
    %p40 = scmp.ne.s32.totalorder %s26, %s27
    %p41 = scmp.eq.s32.totalorder %s19, 2
    %p42 = por %p40, %p41
    %p44 = scmp.ne.s32.totalorder %s27, %s43
    %p45 = scmp.eq.s32.totalorder %s19, 0
    %p46 = por %p44, %p45
    %s47 = ssub.s32 %s13, %s20
    %p48 = scmp.eq.s32.totalorder %s47, 0
    %s50 = sadd.s32 %s49, 1
    %s51 = scalar_select %p48, %s49, %s50
    %p54 = pneg %p48
    %p55 = scmp.eq.s32.totalorder %s13, 2
    %p56 = por %p54, %p55
    %p57 = scmp.ne.s32.totalorder %s49, %s52
    %p58 = scmp.eq.s32.totalorder %s13, 0
    %p59 = por %p57, %p58
    %p60 = scmp.ne.s32.totalorder %s49, %s52
    %p61 = scmp.eq.s32.totalorder %s18, 2
    %p62 = por %p60, %p61
    %p63 = scmp.ne.s32.totalorder %s52, %s53
    %p64 = scmp.eq.s32.totalorder %s18, 0
    %p65 = por %p63, %p64
    %p66 = scmp.ne.s32.totalorder %s52, %s53
    %p67 = scmp.eq.s32.totalorder %s19, 2
    %p68 = por %p66, %p67
    %p70 = scmp.ne.s32.totalorder %s53, %s69
    %p71 = scmp.eq.s32.totalorder %s19, 0
    %p72 = por %p70, %p71
    %s74 = sadd.s32 %s73, 1
    %p77 = scmp.eq.s32.totalorder %s13, 2
    %p78 = scmp.ne.s32.totalorder %s73, %s75
    %p79 = scmp.eq.s32.totalorder %s13, 0
    %p80 = por %p78, %p79
    %p81 = scmp.ne.s32.totalorder %s73, %s75
    %p82 = scmp.eq.s32.totalorder %s18, 2
    %p83 = por %p81, %p82
    %p84 = scmp.ne.s32.totalorder %s75, %s76
    %p85 = scmp.eq.s32.totalorder %s18, 0
    %p86 = por %p84, %p85
    %p87 = scmp.ne.s32.totalorder %s75, %s76
    %p88 = scmp.eq.s32.totalorder %s19, 2
    %p89 = por %p87, %p88
    %p91 = scmp.ne.s32.totalorder %s76, %s90
    %p92 = scmp.eq.s32.totalorder %s19, 0
    %p93 = por %p91, %p92
    %s95 = sadd.s32 %s94, 1
    %p98 = scmp.eq.s32.totalorder %s13, 2
    %p99 = scmp.ne.s32.totalorder %s94, %s96
    %p100 = scmp.eq.s32.totalorder %s13, 0
    %p101 = por %p99, %p100
    %p102 = scmp.ne.s32.totalorder %s94, %s96
    %p103 = scmp.eq.s32.totalorder %s18, 2
    %p104 = por %p102, %p103
    %p105 = scmp.ne.s32.totalorder %s96, %s97
    %p106 = scmp.eq.s32.totalorder %s18, 0
    %p107 = por %p105, %p106
    %p108 = scmp.ne.s32.totalorder %s96, %s97
    %p109 = scmp.eq.s32.totalorder %s19, 2
    %p110 = por %p108, %p109
    %p112 = scmp.ne.s32.totalorder %s97, %s111
    %p113 = scmp.eq.s32.totalorder %s19, 0
    %p114 = por %p112, %p113
    %s115 = ssub.s32 %s13, %s20
    %p116 = scmp.eq.s32.totalorder %s115, 0
    %s118 = sadd.s32 %s117, 1
    %s119 = scalar_select %p116, %s117, %s118
    %p122 = pneg %p116
    %p123 = scmp.eq.s32.totalorder %s13, 2
    %p124 = por %p122, %p123
    %p125 = scmp.ne.s32.totalorder %s117, %s120
    %p126 = scmp.eq.s32.totalorder %s13, 0
    %p127 = por %p125, %p126
    %p128 = scmp.ne.s32.totalorder %s117, %s120
    %p129 = scmp.eq.s32.totalorder %s18, 2
    %p130 = por %p128, %p129
    %p131 = scmp.ne.s32.totalorder %s120, %s121
    %p132 = scmp.eq.s32.totalorder %s18, 0
    %p133 = por %p131, %p132
    %p134 = scmp.ne.s32.totalorder %s120, %s121
    %p135 = scmp.eq.s32.totalorder %s19, 2
    %p136 = por %p134, %p135
    %p138 = scmp.ne.s32.totalorder %s121, %s137
    %p139 = scmp.eq.s32.totalorder %s19, 0
    %p140 = por %p138, %p139
    %s141 = ssub.s32 %s13, %s20
    %p142 = scmp.eq.s32.totalorder %s141, 0
    %s144 = sadd.s32 %s143, 1
    %s145 = scalar_select %p142, %s143, %s144
    %p148 = pneg %p142
    %p149 = scmp.eq.s32.totalorder %s13, 2
    %p150 = por %p148, %p149
    %p151 = scmp.ne.s32.totalorder %s143, %s146
    %p152 = scmp.eq.s32.totalorder %s13, 0
    %p153 = por %p151, %p152
    %p154 = scmp.ne.s32.totalorder %s143, %s146
    %p155 = scmp.eq.s32.totalorder %s18, 2
    %p156 = por %p154, %p155
    %p157 = scmp.ne.s32.totalorder %s146, %s147
    %p158 = scmp.eq.s32.totalorder %s18, 0
    %p159 = por %p157, %p158
    %p160 = scmp.ne.s32.totalorder %s146, %s147
    %p161 = scmp.eq.s32.totalorder %s19, 2
    %p162 = por %p160, %p161
    %p164 = scmp.ne.s32.totalorder %s147, %s163
    %p165 = scmp.eq.s32.totalorder %s19, 0
    %p166 = por %p164, %p165
    %s168 = sadd.s32 %s167, 1
    %p171 = scmp.eq.s32.totalorder %s13, 2
    %p172 = scmp.ne.s32.totalorder %s167, %s169
    %p173 = scmp.eq.s32.totalorder %s13, 0
    %p174 = por %p172, %p173
    %p175 = scmp.ne.s32.totalorder %s167, %s169
    %p176 = scmp.eq.s32.totalorder %s18, 2
    %p177 = por %p175, %p176
    %p178 = scmp.ne.s32.totalorder %s169, %s170
    %p179 = scmp.eq.s32.totalorder %s18, 0
    %p180 = por %p178, %p179
    %p181 = scmp.ne.s32.totalorder %s169, %s170
    %p182 = scmp.eq.s32.totalorder %s19, 2
    %p183 = por %p181, %p182
    %p185 = scmp.ne.s32.totalorder %s170, %s184
    %p186 = scmp.eq.s32.totalorder %s19, 0
    %p187 = por %p185, %p186
    %p188 = scmp.le.s32.totalorder 1, %s13
    %p189 = scmp.lt.s32.totalorder %s13, 4
    %p190 = pnand %p188, %p189
    %p191 = pneg %p190
    // Predicated region
    $region9: #{multi_all_forward.3} parent=5 // pred_check
      _
    $region10: #{multi_all_forward.3} parent=5 // pred_check_branch
      %193 = sbr.rel (%p190) target = $region12
    $region11: #{multi_all_forward.3} parent=5 // pred_region
      %s194 = ssub.s32 %s13, 1
      // Predicated region
      $region13: #{multi_all_forward.3} parent=11 // pred_check
        %p195 = pneg %p86
      $region14: #{multi_all_forward.3} parent=11 // pred_check_branch
        %197 = sbr.rel (%p195) target = $region16
      $region15: #{multi_all_forward.3} parent=11 // pred_region
        _
      $region16: #{multi_all_forward.3} parent=11 // pred_fallthru
        _
      // Predicated region
      $region17: #{multi_all_forward.3} parent=11 // pred_check
        %p198 = pneg %p107
      $region18: #{multi_all_forward.3} parent=11 // pred_check_branch
        %200 = sbr.rel (%p198) target = $region20
      $region19: #{multi_all_forward.3} parent=11 // pred_region
        _
      $region20: #{multi_all_forward.3} parent=11 // pred_fallthru
        _
    $region12: #{multi_all_forward.3} parent=5 // pred_fallthru
      _
    %p201 = scmp.lt.s32.totalorder %s13, 3
    // Predicated region
    $region21: #{multi_all_forward.3} parent=5 // pred_check
      %p202 = pneg %p201
    $region22: #{multi_all_forward.3} parent=5 // pred_check_branch
      %204 = sbr.rel (%p202) target = $region24
    $region23: #{multi_all_forward.3} parent=5 // pred_region
      // Predicated region
      $region25: #{multi_all_forward.3} parent=23 // pred_check
        %p205 = pneg %p33
      $region26: #{multi_all_forward.3} parent=23 // pred_check_branch
        %207 = sbr.rel (%p205) target = $region28
      $region27: #{multi_all_forward.3} parent=23 // pred_region
        %s208 = smul.u32 2, %s13
        %p209 = scmp.lt.s32.totalorder %s208, 5
        %s210 = scalar_select %p209, %s208, 5
        %s211 = smul.addr %s210, 8
        %s212 = scalar_lea.vmem %s0, %s211
        %s213 = smul.u32 2, %s13
      $region28: #{multi_all_forward.3} parent=23 // pred_fallthru
        _
      // Predicated region
      $region29: #{multi_all_forward.3} parent=23 // pred_check
        %p214 = pneg %p59
      $region30: #{multi_all_forward.3} parent=23 // pred_check_branch
        %216 = sbr.rel (%p214) target = $region32
      $region31: #{multi_all_forward.3} parent=23 // pred_region
        %s217 = smul.u32 2, %s13
        %p218 = scmp.lt.s32.totalorder %s217, 5
        %s219 = scalar_select %p218, %s217, 5
        %s220 = smul.addr %s219, 8
        %s221 = scalar_lea.vmem %s1, %s220
        %s222 = smul.u32 2, %s13
      $region32: #{multi_all_forward.3} parent=23 // pred_fallthru
        _
    $region24: #{multi_all_forward.3} parent=5 // pred_fallthru
      _
    %p223 = scmp.le.s32.totalorder 1, %s13
    %p224 = scmp.lt.s32.totalorder %s13, 4
    %p225 = pnand %p223, %p224
    %p226 = pneg %p225
    // Predicated region
    $region33: #{multi_all_forward.3} parent=5 // pred_check
      _
    $region34: #{multi_all_forward.3} parent=5 // pred_check_branch
      %228 = sbr.rel (%p225) target = $region36
    $region35: #{multi_all_forward.3} parent=5 // pred_region
      %s229 = ssub.s32 %s13, 1
      %s230 = smul.u32 2, %s18
      %p231 = scmp.lt.s32.totalorder %s230, 5
      %s232 = scalar_select %p231, %s230, 5
      %s233 = smul.addr %s232, 8
      %s234 = scalar_lea.vmem %s0, %s233
      %p235 = pneg %p39
      %p236 = pneg %p36
      %s237 = smul.u32 2, %s18
      %p238 = scmp.lt.s32.totalorder %s237, 5
      %s239 = scalar_select %p238, %s237, 5
      %s240 = smul.addr %s239, 8
      %s241 = scalar_lea.vmem %s1, %s240
      %p242 = pneg %p65
      %p243 = pneg %p62
      %p244 = pneg %p86
      %p245 = pneg %p83
      %p246 = pneg %p107
      %p247 = pneg %p104
      %p248 = pneg %p133
      %p249 = pneg %p130
      %s250 = smul.u32 2, %s18
      %p251 = scmp.lt.s32.totalorder %s250, 5
      %s252 = scalar_select %p251, %s250, 5
      %s253 = smul.addr %s252, 8
      %s254 = scalar_lea.vmem %s4, %s253
      %p255 = pneg %p159
      %p256 = pneg %p156
      %s257 = smul.u32 2, %s18
      %p258 = scmp.lt.s32.totalorder %s257, 5
      %s259 = scalar_select %p258, %s257, 5
      %s260 = smul.addr %s259, 8
      %s261 = scalar_lea.vmem %s5, %s260
      %p262 = pneg %p180
      %p263 = pneg %p177
      %s264 = smul.u32 2, %s18
      %p265 = scmp.lt.s32.totalorder %s264, 5
      %s266 = scalar_select %p265, %s264, 5
      %s267 = smul.addr %s266, 8
      %s268 = scalar_lea.vmem %s0, %s267
      %s269 = smul.u32 2, %s18
      %s270 = smul.u32 2, %s18
      %p271 = scmp.lt.s32.totalorder %s270, 5
      %s272 = scalar_select %p271, %s270, 5
      %s273 = smul.addr %s272, 8
      %s274 = scalar_lea.vmem %s1, %s273
      %s275 = smul.u32 2, %s18
      %s276 = smul.u32 2, %s18
      %p277 = scmp.lt.s32.totalorder %s276, 5
      %s278 = scalar_select %p277, %s276, 5
      %s279 = smul.addr %s278, 8
      %s280 = scalar_lea.vmem %s4, %s279
      %s281 = smul.u32 2, %s18
      %s282 = smul.u32 2, %s18
      %p283 = scmp.lt.s32.totalorder %s282, 5
      %s284 = scalar_select %p283, %s282, 5
      %s285 = smul.addr %s284, 8
      %s286 = scalar_lea.vmem %s5, %s285
      %s287 = smul.u32 2, %s18
      %v289 = vld [vmem:[%s268] sm:$0xff]
      %v290 = vld [vmem:[%s268 + $0x8] sm:$0xff]
      %v291 = vpack.c.bf16 %v290, %v289
      %v292 = vld [vmem:[%s2] sm:$0xf]
      %v293 = vld [vmem:[%s2 + $0x4] sm:$0xf]
      %v294 = vld [vmem:[%s2 + $0x8] sm:$0xf]
      %v295 = vld [vmem:[%s2 + $0xc] sm:$0xf]
      %v296 = vld [vmem:[%s2 + $0x10] sm:$0xf]
      %v297 = vld [vmem:[%s2 + $0x14] sm:$0xf]
      %v298 = vld [vmem:[%s2 + $0x18] sm:$0xf]
      %v299 = vld [vmem:[%s2 + $0x1c] sm:$0xf]
      %v308 = vunpack.c.l.b16 %v292
      %v309 = vunpack.c.l.b16 %v293
      %v310 = vunpack.c.l.b16 %v294
      %v311 = vunpack.c.l.b16 %v295
      %v312 = vunpack.c.l.b16 %v296
      %v313 = vunpack.c.l.b16 %v297
      %v314 = vunpack.c.l.b16 %v298
      %v315 = vunpack.c.l.b16 %v299
      %v316 = vpack.c.b16 %v309, %v308
      %v317 = vpack.c.b16 %v311, %v310
      %v318 = vpack.c.b16 %v313, %v312
      %v319 = vpack.c.b16 %v315, %v314
      %vm324 = vcmask 523264
      %v326 = vsel %vm324, %v291, 0
      %328 = vmatprep.subr.bf16.mxu0 0
      %329 = vmatpush1.bf16.msra.mxu0 0
      %330 = vmatprep.subr.bf16.mxu0 0
      %331 = vmatpush1.bf16.msra.mxu0 0
      %332 = vmatprep.subr.bf16.mxu0 0
      %333 = vmatpush1.bf16.msra.mxu0 0
      %334 = vmatprep.subr.bf16.mxu0 0
      %335 = vmatpush1.bf16.msra.mxu0 0
      %336 = vmatprep.subr.bf16.mxu0 0
      %337 = vmatpush1.bf16.msra.mxu0 %v319
      %338 = vmatprep.subr.bf16.mxu0 0
      %339 = vmatpush1.bf16.msra.mxu0 %v318
      %340 = vmatprep.subr.bf16.mxu0 0
      %341 = vmatpush1.bf16.msra.mxu0 %v317
      %342 = vmatprep.subr.bf16.mxu0 0
      %343 = vmatpush1.bf16.msra.mxu0 %v316
      %344 = vmatprep.subr.bf16.mxu0 0
      %345 = vmatpush2.bf16.msra.mxu0 0
      %346 = vmatprep.subr.bf16.mxu0 0
      %347 = vmatpush2.bf16.msra.mxu0 0
      %348 = vmatprep.subr.bf16.mxu0 0
      %349 = vmatpush2.bf16.msra.mxu0 0
      %350 = vmatprep.subr.bf16.mxu0 0
      %351 = vmatpush2.bf16.msra.mxu0 0
      %352 = vmatprep.subr.bf16.mxu0 0
      %353 = vmatpush2.bf16.msra.mxu0 0
      %354 = vmatprep.subr.bf16.mxu0 0
      %355 = vmatpush2.bf16.msra.mxu0 0
      %356 = vmatprep.subr.bf16.mxu0 0
      %357 = vmatpush2.bf16.msra.mxu0 0
      %358 = vmatprep.subr.bf16.mxu0 0
      %359 = vmatpush2.bf16.msra.mxu0 0
      %360 = vmatprep.mubr.bf16.mxu0 0
      %361 = vmatmul.mubr.bf16.gmra.mxu0 %v326
      %v362 = vpop.f32.mrf.mxu0
      %v363 = vadd.f32 0.0, %v362
      %v364 = vpop.f32.mrf.mxu0
      %v365 = vpop.f32.mrf.mxu0
      %v366 = vadd.f32 0.0, %v365
      %v367 = vpop.f32.mrf.mxu0
      %368 = vdwg.mxu0
      %v369 = vld [vmem:[%s274] sm:$0xff]
      %v370 = vld [vmem:[%s274 + $0x8] sm:$0xff]
      %v371 = vpack.c.bf16 %v370, %v369
      %v372 = vld [vmem:[%s3] sm:$0xf]
      %v373 = vld [vmem:[%s3 + $0x4] sm:$0xf]
      %v374 = vld [vmem:[%s3 + $0x8] sm:$0xf]
      %v375 = vld [vmem:[%s3 + $0xc] sm:$0xf]
      %v376 = vld [vmem:[%s3 + $0x10] sm:$0xf]
      %v377 = vld [vmem:[%s3 + $0x14] sm:$0xf]
      %v378 = vld [vmem:[%s3 + $0x18] sm:$0xf]
      %v379 = vld [vmem:[%s3 + $0x1c] sm:$0xf]
      %v388 = vunpack.c.l.b16 %v372
      %v389 = vunpack.c.l.b16 %v373
      %v390 = vunpack.c.l.b16 %v374
      %v391 = vunpack.c.l.b16 %v375
      %v392 = vunpack.c.l.b16 %v376
      %v393 = vunpack.c.l.b16 %v377
      %v394 = vunpack.c.l.b16 %v378
      %v395 = vunpack.c.l.b16 %v379
      %v396 = vpack.c.b16 %v389, %v388
      %v397 = vpack.c.b16 %v391, %v390
      %v398 = vpack.c.b16 %v393, %v392
      %v399 = vpack.c.b16 %v395, %v394
      %v405 = vsel %vm324, %v371, 0
      %407 = vmatprep.subr.bf16.mxu0 0
      %408 = vmatpush1.bf16.msra.mxu0 0
      %409 = vmatprep.subr.bf16.mxu0 0
      %410 = vmatpush1.bf16.msra.mxu0 0
      %411 = vmatprep.subr.bf16.mxu0 0
      %412 = vmatpush1.bf16.msra.mxu0 0
      %413 = vmatprep.subr.bf16.mxu0 0
      %414 = vmatpush1.bf16.msra.mxu0 0
      %415 = vmatprep.subr.bf16.mxu0 0
      %416 = vmatpush1.bf16.msra.mxu0 %v399
      %417 = vmatprep.subr.bf16.mxu0 0
      %418 = vmatpush1.bf16.msra.mxu0 %v398
      %419 = vmatprep.subr.bf16.mxu0 0
      %420 = vmatpush1.bf16.msra.mxu0 %v397
      %421 = vmatprep.subr.bf16.mxu0 0
      %422 = vmatpush1.bf16.msra.mxu0 %v396
      %423 = vmatprep.subr.bf16.mxu0 0
      %424 = vmatpush2.bf16.msra.mxu0 0
      %425 = vmatprep.subr.bf16.mxu0 0
      %426 = vmatpush2.bf16.msra.mxu0 0
      %427 = vmatprep.subr.bf16.mxu0 0
      %428 = vmatpush2.bf16.msra.mxu0 0
      %429 = vmatprep.subr.bf16.mxu0 0
      %430 = vmatpush2.bf16.msra.mxu0 0
      %431 = vmatprep.subr.bf16.mxu0 0
      %432 = vmatpush2.bf16.msra.mxu0 0
      %433 = vmatprep.subr.bf16.mxu0 0
      %434 = vmatpush2.bf16.msra.mxu0 0
      %435 = vmatprep.subr.bf16.mxu0 0
      %436 = vmatpush2.bf16.msra.mxu0 0
      %437 = vmatprep.subr.bf16.mxu0 0
      %438 = vmatpush2.bf16.msra.mxu0 0
      %439 = vmatprep.mubr.bf16.mxu0 0
      %440 = vmatmul.mubr.bf16.gmra.mxu0 %v405
      %v441 = vpop.f32.mrf.mxu0
      %v442 = vadd.f32 0.0, %v441
      %v443 = vpop.f32.mrf.mxu0
      %v444 = vpop.f32.mrf.mxu0
      %v445 = vadd.f32 0.0, %v444
      %v446 = vpop.f32.mrf.mxu0
      %447 = vdwg.mxu0
      %448 = vst [vmem:[%s280] sm:$0xff] %v363
      %449 = vst [vmem:[%s280 + $0x8] sm:$0xff] %v366
      %450 = vst [vmem:[%s286] sm:$0xff] %v442
      %451 = vst [vmem:[%s286 + $0x8] sm:$0xff] %v445
      %s452 = smul.u32 %s18, 16
      %v453 = vlaneseq
      %v454 = vshrl.u32 %v453, 7
      %v455 = vadd.s32 %v454, 8
      %v456 = vstv %s452
      %v457 = vadd.s32 %v456, %v454
      %v458 = vadd.s32 %v456, %v455
      %vm459 = vcmp.lt.s32.totalorder %v457, 40
      %vm460 = vcmp.lt.s32.totalorder %v458, 40
      %v461 = vsel %vm459, 1, 0
      %v462 = vsel %vm460, 1, 0
      %vm463 = vcmp.eq.s32.totalorder %v461, 1
      %vm464 = vcmp.eq.s32.totalorder %v462, 1
      %v465 = vsel %vm463, %v363, 0.0
      %v466 = vsel %vm464, %v366, 0.0
      %v467 = vsel %vm463, %v442, 0.0
      %v468 = vsel %vm464, %v445, 0.0
      %p469 = scmp.eq.s32.totalorder %s18, 0
      // Predicated region
      $region37: #{multi_all_forward.3} parent=35 // pred_check
        %p470 = pneg %p469
      $region38: #{multi_all_forward.3} parent=35 // pred_check_branch
        %472 = sbr.rel (%p470) target = $region40
      $region39: #{multi_all_forward.3} parent=35 // pred_region
        %473 = vst [vmem:[%s6] sm:$0xff] 0.0
      $region40: #{multi_all_forward.3} parent=35 // pred_fallthru
        _
      %v474 = vld [vmem:[%s6] sm:$0x1]
      %v475 = vadd.f32 %v465, %v466
      %v476 = vrot.slane %v475, 4
      %v477 = vadd.f32 %v475, %v476
      %v478 = vrot.slane %v477, 2
      %v479 = vadd.f32 %v477, %v478
      %v480 = vrot.slane %v479, 1
      %v481 = vadd.f32 %v479, %v480
      %v482 = vadd.f32 %v474, %v481
      %483 = vst [vmem:[%s6] sm:$0x1] %v482
      %v484 = vld [vmem:[%s6 + $0x1] sm:$0x1]
      %v485 = vmul.f32 %v465, %v465
      %v486 = vmul.f32 %v466, %v466
      %v487 = vadd.f32 %v485, %v486
      %v488 = vrot.slane %v487, 4
      %v489 = vadd.f32 %v487, %v488
      %v490 = vrot.slane %v489, 2
      %v491 = vadd.f32 %v489, %v490
      %v492 = vrot.slane %v491, 1
      %v493 = vadd.f32 %v491, %v492
      %v494 = vadd.f32 %v484, %v493
      %495 = vst [vmem:[%s6 + $0x1] sm:$0x1] %v494
      %v496 = vld [vmem:[%s6 + $0x2] sm:$0x1]
      %v497 = vadd.f32 %v467, %v468
      %v498 = vrot.slane %v497, 4
      %v499 = vadd.f32 %v497, %v498
      %v500 = vrot.slane %v499, 2
      %v501 = vadd.f32 %v499, %v500
      %v502 = vrot.slane %v501, 1
      %v503 = vadd.f32 %v501, %v502
      %v504 = vadd.f32 %v496, %v503
      %505 = vst [vmem:[%s6 + $0x2] sm:$0x1] %v504
      %v506 = vld [vmem:[%s6 + $0x3] sm:$0x1]
      %v507 = vmul.f32 %v467, %v467
      %v508 = vmul.f32 %v468, %v468
      %v509 = vadd.f32 %v507, %v508
      %v510 = vrot.slane %v509, 4
      %v511 = vadd.f32 %v509, %v510
      %v512 = vrot.slane %v511, 2
      %v513 = vadd.f32 %v511, %v512
      %v514 = vrot.slane %v513, 1
      %v515 = vadd.f32 %v513, %v514
      %v516 = vadd.f32 %v506, %v515
      %517 = vst [vmem:[%s6 + $0x3] sm:$0x1] %v516
      %s518 = smul.u32 2, %s18
      %p519 = scmp.lt.s32.totalorder %s518, 5
      %s520 = scalar_select %p519, %s518, 5
      %s521 = smul.addr %s520, 8
      %s522 = scalar_lea.vmem %s4, %s521
      %s523 = smul.u32 2, %s18
      %p524 = scmp.lt.s32.totalorder %s523, 5
      %s525 = scalar_select %p524, %s523, 5
      %s526 = smul.addr %s525, 8
      %s527 = scalar_lea.vmem %s5, %s526
      // Predicated region
      $region41: #{multi_all_forward.3} parent=35 // pred_check
        %p528 = pneg %p130
      $region42: #{multi_all_forward.3} parent=35 // pred_check_branch
        %530 = sbr.rel (%p528) target = $region44
      $region43: #{multi_all_forward.3} parent=35 // pred_region
        %s531 = smul.u32 2, %s18
      $region44: #{multi_all_forward.3} parent=35 // pred_fallthru
        _
      // Predicated region
      $region45: #{multi_all_forward.3} parent=35 // pred_check
        %p532 = pneg %p156
      $region46: #{multi_all_forward.3} parent=35 // pred_check_branch
        %534 = sbr.rel (%p532) target = $region48
      $region47: #{multi_all_forward.3} parent=35 // pred_region
        %s535 = smul.u32 2, %s18
      $region48: #{multi_all_forward.3} parent=35 // pred_fallthru
        _
      // Predicated region
      $region49: #{multi_all_forward.3} parent=35 // pred_check
        %p536 = pneg %p177
      $region50: #{multi_all_forward.3} parent=35 // pred_check_branch
        %538 = sbr.rel (%p536) target = $region52
      $region51: #{multi_all_forward.3} parent=35 // pred_region
        _
      $region52: #{multi_all_forward.3} parent=35 // pred_fallthru
        _
      // Predicated region
      $region53: #{multi_all_forward.3} parent=35 // pred_check
        %p539 = pneg %p177
      $region54: #{multi_all_forward.3} parent=35 // pred_check_branch
        %541 = sbr.rel (%p539) target = $region56
      $region55: #{multi_all_forward.3} parent=35 // pred_region
        _
      $region56: #{multi_all_forward.3} parent=35 // pred_fallthru
        _
    $region36: #{multi_all_forward.3} parent=5 // pred_fallthru
      _
    %p542 = scmp.le.s32.totalorder 2, %s13
    // Predicated region
    $region57: #{multi_all_forward.3} parent=5 // pred_check
      %p543 = pneg %p542
    $region58: #{multi_all_forward.3} parent=5 // pred_check_branch
      %545 = sbr.rel (%p543) target = $region60
    $region59: #{multi_all_forward.3} parent=5 // pred_region
      %s546 = ssub.s32 %s13, 2
      // Predicated region
      $region61: #{multi_all_forward.3} parent=59 // pred_check
        %p547 = pneg %p136
      $region62: #{multi_all_forward.3} parent=59 // pred_check_branch
        %549 = sbr.rel (%p547) target = $region64
      $region63: #{multi_all_forward.3} parent=59 // pred_region
        %s550 = smul.u32 2, %s19
        %p551 = scmp.lt.s32.totalorder %s550, 5
        %s552 = scalar_select %p551, %s550, 5
        %s553 = smul.addr %s552, 8
        %s554 = scalar_lea.vmem %s4, %s553
      $region64: #{multi_all_forward.3} parent=59 // pred_fallthru
        _
      // Predicated region
      $region65: #{multi_all_forward.3} parent=59 // pred_check
        %p555 = pneg %p162
      $region66: #{multi_all_forward.3} parent=59 // pred_check_branch
        %557 = sbr.rel (%p555) target = $region68
      $region67: #{multi_all_forward.3} parent=59 // pred_region
        %s558 = smul.u32 2, %s19
        %p559 = scmp.lt.s32.totalorder %s558, 5
        %s560 = scalar_select %p559, %s558, 5
        %s561 = smul.addr %s560, 8
        %s562 = scalar_lea.vmem %s5, %s561
      $region68: #{multi_all_forward.3} parent=59 // pred_fallthru
        _
    $region60: #{multi_all_forward.3} parent=5 // pred_fallthru
      _
  $region6: #{multi_all_forward.3} parent=0 // loop_footer
    %s17 = sadd.s32 1, %s13
  $region7: #{multi_all_forward.3} parent=0 // loop_footer_branch
    %12 = sbr.rel target = $region3
  $region8: #{multi_all_forward.3} parent=0 // loop_exit
    _

// kernel: multi_all_forward.5
$region0: #{multi_all_forward.5}
  #allocation0 [shape = 'u32[]', space=smem, size = 0x4, offset = 0x4, fixed_abs, tag = 'smem constant byte address 0x4 - core index']
  #allocation1 [shape = 'u32[144,128]{1,0:T(1,128)}', space=vmem, size = 0x12000, scoped, tag = 'internal scratch']
  %s0 = inlined_call_operand.vmem [shape: f32[48,128], index: 0, kind: input, shape index: {}]
  %s1 = inlined_call_operand.vmem [shape: f32[8,128], index: 1, kind: input, shape index: {}]
  %s2 = inlined_call_operand.vmem [shape: f32[8,128], index: 2, kind: input, shape index: {}]
  %s3 = inlined_call_operand.vmem [shape: f32[16,128], index: 3, kind: input, shape index: {}]
  %s4 = inlined_call_operand.vmem [shape: bf16[128,128], index: 4, kind: input, shape index: {}]
  %s5 = inlined_call_operand.vmem [shape: f32[1,128], index: 5, kind: input, shape index: {}]
  %s6 = inlined_call_operand.vmem [shape: f32[48,128], index: 6, kind: output, shape index: {}]
  %s7 = sld [smem:[#allocation0]]
  $region57: #{multi_all_forward.5} parent=0
    _
  %s9 = ssub.s32 1, %s7
  %s10 = scalar_select 0, %s9, %s7
  loop: start=0, step=1, limit=5
  $region2: #{multi_all_forward.5} parent=0 // loop_pre_header
    _
  $region3: #{multi_all_forward.5} parent=0 // loop_header
    %s12 = sphi 0, %s16
    %p13 = scmp.ge.s32.totalorder %s12, 5
    %s22 = sphi 0, %s24
    %s25 = sphi 0, %s22
    %s26 = sphi 0, %s25
    %s42 = sphi 0, %s26
    %s46 = sphi 0, %s46
    %s48 = sphi 0, %s46
    %s49 = sphi 0, %s48
    %s63 = sphi 0, %s49
    %s67 = sphi 0, %s67
    %s69 = sphi 0, %s67
    %s70 = sphi 0, %s69
    %s84 = sphi 0, %s70
    %s88 = sphi 0, %s88
    %s90 = sphi 0, %s88
    %s91 = sphi 0, %s90
    %s105 = sphi 0, %s91
    %s109 = sphi 0, %s109
    %s111 = sphi 0, %s109
    %s112 = sphi 0, %s111
    %s126 = sphi 0, %s112
    %s130 = sphi 0, %s130
    %s132 = sphi 0, %s130
    %s133 = sphi 0, %s132
    %s147 = sphi 0, %s133
    %s153 = sphi 0, %s155
    %s156 = sphi 0, %s153
    %s157 = sphi 0, %s156
    %s173 = sphi 0, %s157
  $region4: #{multi_all_forward.5} parent=0 // loop_header_branch
    %15 = sbr.rel (%p13) target = $region8
  $region5: #{multi_all_forward.5} parent=0 // loop_body
    %s17 = ssub.s32 %s12, 1
    %s18 = ssub.s32 %s12, 2
    %s19 = sadd.s32 %s12, 1
    %s20 = ssub.s32 %s12, %s19
    %p21 = scmp.eq.s32.totalorder %s20, 0
    %s23 = sadd.s32 %s22, 1
    %s24 = scalar_select %p21, %s22, %s23
    %p27 = pneg %p21
    %p28 = scmp.eq.s32.totalorder %s12, 2
    %p29 = por %p27, %p28
    %p30 = scmp.ne.s32.totalorder %s22, %s25
    %p31 = scmp.eq.s32.totalorder %s12, 0
    %p32 = por %p30, %p31
    %p33 = scmp.ne.s32.totalorder %s22, %s25
    %p34 = scmp.eq.s32.totalorder %s17, 2
    %p35 = por %p33, %p34
    %p36 = scmp.ne.s32.totalorder %s25, %s26
    %p37 = scmp.eq.s32.totalorder %s17, 0
    %p38 = por %p36, %p37
    %p39 = scmp.ne.s32.totalorder %s25, %s26
    %p40 = scmp.eq.s32.totalorder %s18, 2
    %p41 = por %p39, %p40
    %p43 = scmp.ne.s32.totalorder %s26, %s42
    %p44 = scmp.eq.s32.totalorder %s18, 0
    %p45 = por %p43, %p44
    %s47 = sadd.s32 %s46, 1
    %p50 = scmp.eq.s32.totalorder %s12, 2
    %p51 = scmp.ne.s32.totalorder %s46, %s48
    %p52 = scmp.eq.s32.totalorder %s12, 0
    %p53 = por %p51, %p52
    %p54 = scmp.ne.s32.totalorder %s46, %s48
    %p55 = scmp.eq.s32.totalorder %s17, 2
    %p56 = por %p54, %p55
    %p57 = scmp.ne.s32.totalorder %s48, %s49
    %p58 = scmp.eq.s32.totalorder %s17, 0
    %p59 = por %p57, %p58
    %p60 = scmp.ne.s32.totalorder %s48, %s49
    %p61 = scmp.eq.s32.totalorder %s18, 2
    %p62 = por %p60, %p61
    %p64 = scmp.ne.s32.totalorder %s49, %s63
    %p65 = scmp.eq.s32.totalorder %s18, 0
    %p66 = por %p64, %p65
    %s68 = sadd.s32 %s67, 1
    %p71 = scmp.eq.s32.totalorder %s12, 2
    %p72 = scmp.ne.s32.totalorder %s67, %s69
    %p73 = scmp.eq.s32.totalorder %s12, 0
    %p74 = por %p72, %p73
    %p75 = scmp.ne.s32.totalorder %s67, %s69
    %p76 = scmp.eq.s32.totalorder %s17, 2
    %p77 = por %p75, %p76
    %p78 = scmp.ne.s32.totalorder %s69, %s70
    %p79 = scmp.eq.s32.totalorder %s17, 0
    %p80 = por %p78, %p79
    %p81 = scmp.ne.s32.totalorder %s69, %s70
    %p82 = scmp.eq.s32.totalorder %s18, 2
    %p83 = por %p81, %p82
    %p85 = scmp.ne.s32.totalorder %s70, %s84
    %p86 = scmp.eq.s32.totalorder %s18, 0
    %p87 = por %p85, %p86
    %s89 = sadd.s32 %s88, 1
    %p92 = scmp.eq.s32.totalorder %s12, 2
    %p93 = scmp.ne.s32.totalorder %s88, %s90
    %p94 = scmp.eq.s32.totalorder %s12, 0
    %p95 = por %p93, %p94
    %p96 = scmp.ne.s32.totalorder %s88, %s90
    %p97 = scmp.eq.s32.totalorder %s17, 2
    %p98 = por %p96, %p97
    %p99 = scmp.ne.s32.totalorder %s90, %s91
    %p100 = scmp.eq.s32.totalorder %s17, 0
    %p101 = por %p99, %p100
    %p102 = scmp.ne.s32.totalorder %s90, %s91
    %p103 = scmp.eq.s32.totalorder %s18, 2
    %p104 = por %p102, %p103
    %p106 = scmp.ne.s32.totalorder %s91, %s105
    %p107 = scmp.eq.s32.totalorder %s18, 0
    %p108 = por %p106, %p107
    %s110 = sadd.s32 %s109, 1
    %p113 = scmp.eq.s32.totalorder %s12, 2
    %p114 = scmp.ne.s32.totalorder %s109, %s111
    %p115 = scmp.eq.s32.totalorder %s12, 0
    %p116 = por %p114, %p115
    %p117 = scmp.ne.s32.totalorder %s109, %s111
    %p118 = scmp.eq.s32.totalorder %s17, 2
    %p119 = por %p117, %p118
    %p120 = scmp.ne.s32.totalorder %s111, %s112
    %p121 = scmp.eq.s32.totalorder %s17, 0
    %p122 = por %p120, %p121
    %p123 = scmp.ne.s32.totalorder %s111, %s112
    %p124 = scmp.eq.s32.totalorder %s18, 2
    %p125 = por %p123, %p124
    %p127 = scmp.ne.s32.totalorder %s112, %s126
    %p128 = scmp.eq.s32.totalorder %s18, 0
    %p129 = por %p127, %p128
    %s131 = sadd.s32 %s130, 1
    %p134 = scmp.eq.s32.totalorder %s12, 2
    %p135 = scmp.ne.s32.totalorder %s130, %s132
    %p136 = scmp.eq.s32.totalorder %s12, 0
    %p137 = por %p135, %p136
    %p138 = scmp.ne.s32.totalorder %s130, %s132
    %p139 = scmp.eq.s32.totalorder %s17, 2
    %p140 = por %p138, %p139
    %p141 = scmp.ne.s32.totalorder %s132, %s133
    %p142 = scmp.eq.s32.totalorder %s17, 0
    %p143 = por %p141, %p142
    %p144 = scmp.ne.s32.totalorder %s132, %s133
    %p145 = scmp.eq.s32.totalorder %s18, 2
    %p146 = por %p144, %p145
    %p148 = scmp.ne.s32.totalorder %s133, %s147
    %p149 = scmp.eq.s32.totalorder %s18, 0
    %p150 = por %p148, %p149
    %s151 = ssub.s32 %s12, %s19
    %p152 = scmp.eq.s32.totalorder %s151, 0
    %s154 = sadd.s32 %s153, 1
    %s155 = scalar_select %p152, %s153, %s154
    %p158 = pneg %p152
    %p159 = scmp.eq.s32.totalorder %s12, 2
    %p160 = por %p158, %p159
    %p161 = scmp.ne.s32.totalorder %s153, %s156
    %p162 = scmp.eq.s32.totalorder %s12, 0
    %p163 = por %p161, %p162
    %p164 = scmp.ne.s32.totalorder %s153, %s156
    %p165 = scmp.eq.s32.totalorder %s17, 2
    %p166 = por %p164, %p165
    %p167 = scmp.ne.s32.totalorder %s156, %s157
    %p168 = scmp.eq.s32.totalorder %s17, 0
    %p169 = por %p167, %p168
    %p170 = scmp.ne.s32.totalorder %s156, %s157
    %p171 = scmp.eq.s32.totalorder %s18, 2
    %p172 = por %p170, %p171
    %p174 = scmp.ne.s32.totalorder %s157, %s173
    %p175 = scmp.eq.s32.totalorder %s18, 0
    %p176 = por %p174, %p175
    %p177 = scmp.le.s32.totalorder 1, %s12
    %p178 = scmp.lt.s32.totalorder %s12, 4
    %p179 = pnand %p177, %p178
    %p180 = pneg %p179
    // Predicated region
    $region9: #{multi_all_forward.5} parent=5 // pred_check
      _
    $region10: #{multi_all_forward.5} parent=5 // pred_check_branch
      %182 = sbr.rel (%p179) target = $region12
    $region11: #{multi_all_forward.5} parent=5 // pred_region
      %s183 = ssub.s32 %s12, 1
      // Predicated region
      $region13: #{multi_all_forward.5} parent=11 // pred_check
        %p184 = pneg %p59
      $region14: #{multi_all_forward.5} parent=11 // pred_check_branch
        %186 = sbr.rel (%p184) target = $region16
      $region15: #{multi_all_forward.5} parent=11 // pred_region
        _
      $region16: #{multi_all_forward.5} parent=11 // pred_fallthru
        _
      // Predicated region
      $region17: #{multi_all_forward.5} parent=11 // pred_check
        %p187 = pneg %p80
      $region18: #{multi_all_forward.5} parent=11 // pred_check_branch
        %189 = sbr.rel (%p187) target = $region20
      $region19: #{multi_all_forward.5} parent=11 // pred_region
        _
      $region20: #{multi_all_forward.5} parent=11 // pred_fallthru
        _
      // Predicated region
      $region21: #{multi_all_forward.5} parent=11 // pred_check
        %p190 = pneg %p101
      $region22: #{multi_all_forward.5} parent=11 // pred_check_branch
        %192 = sbr.rel (%p190) target = $region24
      $region23: #{multi_all_forward.5} parent=11 // pred_region
        _
      $region24: #{multi_all_forward.5} parent=11 // pred_fallthru
        _
      // Predicated region
      $region25: #{multi_all_forward.5} parent=11 // pred_check
        %p193 = pneg %p122
      $region26: #{multi_all_forward.5} parent=11 // pred_check_branch
        %195 = sbr.rel (%p193) target = $region28
      $region27: #{multi_all_forward.5} parent=11 // pred_region
        _
      $region28: #{multi_all_forward.5} parent=11 // pred_fallthru
        _
      // Predicated region
      $region29: #{multi_all_forward.5} parent=11 // pred_check
        %p196 = pneg %p143
      $region30: #{multi_all_forward.5} parent=11 // pred_check_branch
        %198 = sbr.rel (%p196) target = $region32
      $region31: #{multi_all_forward.5} parent=11 // pred_region
        _
      $region32: #{multi_all_forward.5} parent=11 // pred_fallthru
        _
    $region12: #{multi_all_forward.5} parent=5 // pred_fallthru
      _
    %p199 = scmp.lt.s32.totalorder %s12, 3
    // Predicated region
    $region33: #{multi_all_forward.5} parent=5 // pred_check
      %p200 = pneg %p199
    $region34: #{multi_all_forward.5} parent=5 // pred_check_branch
      %202 = sbr.rel (%p200) target = $region36
    $region35: #{multi_all_forward.5} parent=5 // pred_region
      // Predicated region
      $region37: #{multi_all_forward.5} parent=35 // pred_check
        %p203 = pneg %p32
      $region38: #{multi_all_forward.5} parent=35 // pred_check_branch
        %205 = sbr.rel (%p203) target = $region40
      $region39: #{multi_all_forward.5} parent=35 // pred_region
        %s206 = smul.u32 2, %s12
        %p207 = scmp.lt.s32.totalorder %s206, 5
        %s208 = scalar_select %p207, %s206, 5
        %s209 = smul.addr %s208, 8
        %s210 = scalar_lea.vmem %s0, %s209
        %s211 = smul.u32 2, %s12
      $region40: #{multi_all_forward.5} parent=35 // pred_fallthru
        _
    $region36: #{multi_all_forward.5} parent=5 // pred_fallthru
      _
    %p212 = scmp.le.s32.totalorder 1, %s12
    %p213 = scmp.lt.s32.totalorder %s12, 4
    %p214 = pnand %p212, %p213
    %p215 = pneg %p214
    // Predicated region
    $region41: #{multi_all_forward.5} parent=5 // pred_check
      _
    $region42: #{multi_all_forward.5} parent=5 // pred_check_branch
      %217 = sbr.rel (%p214) target = $region44
    $region43: #{multi_all_forward.5} parent=5 // pred_region
      %s218 = ssub.s32 %s12, 1
      %s219 = smul.u32 2, %s17
      %p220 = scmp.lt.s32.totalorder %s219, 5
      %s221 = scalar_select %p220, %s219, 5
      %s222 = smul.addr %s221, 8
      %s223 = scalar_lea.vmem %s0, %s222
      %p224 = pneg %p38
      %p225 = pneg %p35
      %p226 = pneg %p59
      %p227 = pneg %p56
      %p228 = pneg %p80
      %p229 = pneg %p77
      %p230 = pneg %p101
      %p231 = pneg %p98
      %p232 = pneg %p122
      %p233 = pneg %p119
      %p234 = pneg %p143
      %p235 = pneg %p140
      %p236 = pneg %p169
      %p237 = pneg %p166
      %s238 = smul.u32 2, %s17
      %p239 = scmp.lt.s32.totalorder %s238, 5
      %s240 = scalar_select %p239, %s238, 5
      %s241 = smul.addr %s240, 8
      %s242 = scalar_lea.vmem %s6, %s241
      %s243 = smul.u32 2, %s17
      %p244 = scmp.lt.s32.totalorder %s243, 5
      %s245 = scalar_select %p244, %s243, 5
      %s246 = smul.addr %s245, 8
      %s247 = scalar_lea.vmem %s0, %s246
      %s248 = smul.u32 2, %s17
      %s249 = smul.u32 2, %s17
      %p250 = scmp.lt.s32.totalorder %s249, 5
      %s251 = scalar_select %p250, %s249, 5
      %s252 = smul.addr %s251, 8
      %s253 = scalar_lea.vmem %s6, %s252
      %s254 = smul.u32 2, %s17
      %v256 = vld [vmem:[%s1] sm:$0x1]
      %v257 = vmul.f32 %v256, 0.025
      %v258 = vld [vmem:[%s1 + $0x1] sm:$0x1]
      %v259 = vmul.f32 %v258, 0.025
      %v260 = vmul.f32 %v257, %v257
      %v261 = vsub.f32 %v259, %v260
      %v262 = vmax.f32 %v261, 0.0
      %v263 = vld [vmem:[%s247] sm:$0xff]
      %v264 = vld [vmem:[%s247 + $0x8] sm:$0xff]
      %v265 = vld [vmem:[%s3] sm:$0xff]
      %v266 = vld [vmem:[%s3 + $0x8] sm:$0xff]
      %vm267 = vcmask 130048
      %v269 = vsel %vm267, %v263, 0
      %v272 = vsel %vm267, %v264, 0
      %274 = vmatprep.subr.mxu0 0.0
      %275 = vmatpush1.msra.mxu0 0.0
      %276 = vmatprep.subr.mxu0 0.0
      %277 = vmatpush1.msra.mxu0 0.0
      %278 = vmatprep.subr.mxu0 0.0
      %279 = vmatpush1.msra.mxu0 0.0
      %280 = vmatprep.subr.mxu0 0.0
      %281 = vmatpush1.msra.mxu0 0.0
      %282 = vmatprep.subr.mxu0 0.0
      %283 = vmatpush1.msra.mxu0 0.0
      %284 = vmatprep.subr.mxu0 0.0
      %285 = vmatpush1.msra.mxu0 0.0
      %286 = vmatprep.subr.mxu0 0.0
      %287 = vmatpush1.msra.mxu0 0.0
      %288 = vmatprep.subr.mxu0 0.0
      %289 = vmatpush1.msra.mxu0 0.0
      %290 = vmatprep.subr.mxu0 0.0
      %291 = vmatpush1.msra.mxu0 0.0
      %292 = vmatprep.subr.mxu0 0.0
      %293 = vmatpush1.msra.mxu0 0.0
      %294 = vmatprep.subr.mxu0 0.0
      %295 = vmatpush1.msra.mxu0 0.0
      %296 = vmatprep.subr.mxu0 0.0
      %297 = vmatpush1.msra.mxu0 0.0
      %298 = vmatprep.subr.mxu0 0.0
      %299 = vmatpush1.msra.mxu0 0.0
      %300 = vmatprep.subr.mxu0 0.0
      %301 = vmatpush1.msra.mxu0 0.0
      %302 = vmatprep.subr.mxu0 0.0
      %303 = vmatpush1.msra.mxu0 %v266
      %304 = vmatprep.subr.mxu0 0.0
      %305 = vmatpush1.msra.mxu0 %v265
      %306 = vmatprep.subr.mxu0 0.0
      %307 = vmatpush2.msra.mxu0 0.0
      %308 = vmatprep.subr.mxu0 0.0
      %309 = vmatpush2.msra.mxu0 0.0
      %310 = vmatprep.subr.mxu0 0.0
      %311 = vmatpush2.msra.mxu0 0.0
      %312 = vmatprep.subr.mxu0 0.0
      %313 = vmatpush2.msra.mxu0 0.0
      %314 = vmatprep.subr.mxu0 0.0
      %315 = vmatpush2.msra.mxu0 0.0
      %316 = vmatprep.subr.mxu0 0.0
      %317 = vmatpush2.msra.mxu0 0.0
      %318 = vmatprep.subr.mxu0 0.0
      %319 = vmatpush2.msra.mxu0 0.0
      %320 = vmatprep.subr.mxu0 0.0
      %321 = vmatpush2.msra.mxu0 0.0
      %322 = vmatprep.subr.mxu0 0.0
      %323 = vmatpush2.msra.mxu0 0.0
      %324 = vmatprep.subr.mxu0 0.0
      %325 = vmatpush2.msra.mxu0 0.0
      %326 = vmatprep.subr.mxu0 0.0
      %327 = vmatpush2.msra.mxu0 0.0
      %328 = vmatprep.subr.mxu0 0.0
      %329 = vmatpush2.msra.mxu0 0.0
      %330 = vmatprep.subr.mxu0 0.0
      %331 = vmatpush2.msra.mxu0 0.0
      %332 = vmatprep.subr.mxu0 0.0
      %333 = vmatpush2.msra.mxu0 0.0
      %334 = vmatprep.subr.mxu0 0.0
      %335 = vmatpush2.msra.mxu0 0.0
      %336 = vmatprep.subr.mxu0 0.0
      %337 = vmatpush2.msra.mxu0 0.0
      %338 = vmatprep.mubr.f32.mxu0 0.0
      %339 = vmatmul.mubr.f32.gmra.mxu0 %v269
      %v340 = vpop.f32.mrf.mxu0
      %v341 = vadd.f32 0.0, %v340
      %v342 = vpop.f32.mrf.mxu0
      %343 = vmatprep.mubr.f32.mxu0 0.0
      %344 = vmatmul.mubr.f32.gmra.mxu0 %v272
      %v345 = vpop.f32.mrf.mxu0
      %v346 = vadd.f32 0.0, %v345
      %v347 = vpop.f32.mrf.mxu0
      %348 = vdwg.mxu0
      %v349 = vld [vmem:[%s2] sm:$0x1]
      %v350 = vlaneseq
      %v351 = vshrl.u32 %v350, 7
      %v352 = vsub.s32 0, %v351
      %v353 = vrot.slane %v257, %v352
      %v354 = vsub.f32 %v341, %v353
      %v355 = vsub.f32 %v346, %v353
      %v356 = vlaneseq
      %v357 = vshrl.u32 %v356, 7
      %v358 = vsub.s32 0, %v357
      %v359 = vrot.slane %v349, %v358
      %v360 = vmul.f32 %v359, %v354
      %v361 = vmul.f32 %v359, %v355
      %v362 = vadd.f32 %v262, 1e-05
      %v363 = vrsqrt.pop %v362
      %v364 = vlaneseq
      %v365 = vshrl.u32 %v364, 7
      %v366 = vsub.s32 0, %v365
      %v367 = vrot.slane %v363, %v366
      %v368 = vmul.f32 %v360, %v367
      %v369 = vmul.f32 %v361, %v367
      %v370 = vld [vmem:[%s2 + $0x1] sm:$0x1]
      %v371 = vlaneseq
      %v372 = vshrl.u32 %v371, 7
      %v373 = vsub.s32 0, %v372
      %v374 = vrot.slane %v370, %v373
      %v375 = vadd.f32 %v368, %v374
      %v376 = vadd.f32 %v369, %v374
      %v377 = vmax.f32 %v375, 0.0
      %v378 = vmax.f32 %v376, 0.0
      %v379 = vpack.c.bf16 %v378, %v377
      %v380 = vld [vmem:[%s4] sm:$0xf]
      %v381 = vld [vmem:[%s4 + $0x4] sm:$0xf]
      %v382 = vld [vmem:[%s4 + $0x8] sm:$0xf]
      %v383 = vld [vmem:[%s4 + $0xc] sm:$0xf]
      %v384 = vld [vmem:[%s4 + $0x10] sm:$0xf]
      %v385 = vld [vmem:[%s4 + $0x14] sm:$0xf]
      %v386 = vld [vmem:[%s4 + $0x18] sm:$0xf]
      %v387 = vld [vmem:[%s4 + $0x1c] sm:$0xf]
      %v388 = vld [vmem:[%s4 + $0x20] sm:$0xf]
      %v389 = vld [vmem:[%s4 + $0x24] sm:$0xf]
      %v390 = vld [vmem:[%s4 + $0x28] sm:$0xf]
      %v391 = vld [vmem:[%s4 + $0x2c] sm:$0xf]
      %v392 = vld [vmem:[%s4 + $0x30] sm:$0xf]
      %v393 = vld [vmem:[%s4 + $0x34] sm:$0xf]
      %v394 = vld [vmem:[%s4 + $0x38] sm:$0xf]
      %v395 = vld [vmem:[%s4 + $0x3c] sm:$0xf]
      %v396 = vld [vmem:[%s5] sm:$0x1]
      %v398 = vlaneseq
      %v399 = vshrl.u32 %v398, 7
      %v400 = vsub.s32 0, %v399
      %v401 = vrot.slane %v396, %v400
      %v419 = vunpack.c.l.b16 %v380
      %v420 = vunpack.c.l.b16 %v381
      %v421 = vunpack.c.l.b16 %v382
      %v422 = vunpack.c.l.b16 %v383
      %v423 = vunpack.c.l.b16 %v384
      %v424 = vunpack.c.l.b16 %v385
      %v425 = vunpack.c.l.b16 %v386
      %v426 = vunpack.c.l.b16 %v387
      %v427 = vunpack.c.l.b16 %v388
      %v428 = vunpack.c.l.b16 %v389
      %v429 = vunpack.c.l.b16 %v390
      %v430 = vunpack.c.l.b16 %v391
      %v431 = vunpack.c.l.b16 %v392
      %v432 = vunpack.c.l.b16 %v393
      %v433 = vunpack.c.l.b16 %v394
      %v434 = vunpack.c.l.b16 %v395
      %v435 = vpack.c.b16 %v420, %v419
      %v436 = vpack.c.b16 %v422, %v421
      %v437 = vpack.c.b16 %v424, %v423
      %v438 = vpack.c.b16 %v426, %v425
      %v439 = vpack.c.b16 %v428, %v427
      %v440 = vpack.c.b16 %v430, %v429
      %v441 = vpack.c.b16 %v432, %v431
      %v442 = vpack.c.b16 %v434, %v433
      %451 = vmatprep.subr.bf16.mxu0 0
      %452 = vmatpush1.bf16.msra.mxu0 %v442
      %453 = vmatprep.subr.bf16.mxu0 0
      %454 = vmatpush1.bf16.msra.mxu0 %v441
      %455 = vmatprep.subr.bf16.mxu0 0
      %456 = vmatpush1.bf16.msra.mxu0 %v440
      %457 = vmatprep.subr.bf16.mxu0 0
      %458 = vmatpush1.bf16.msra.mxu0 %v439
      %459 = vmatprep.subr.bf16.mxu0 0
      %460 = vmatpush1.bf16.msra.mxu0 %v438
      %461 = vmatprep.subr.bf16.mxu0 0
      %462 = vmatpush1.bf16.msra.mxu0 %v437
      %463 = vmatprep.subr.bf16.mxu0 0
      %464 = vmatpush1.bf16.msra.mxu0 %v436
      %465 = vmatprep.subr.bf16.mxu0 0
      %466 = vmatpush1.bf16.msra.mxu0 %v435
      %467 = vmatprep.subr.bf16.mxu0 0
      %468 = vmatpush2.bf16.msra.mxu0 0
      %469 = vmatprep.subr.bf16.mxu0 0
      %470 = vmatpush2.bf16.msra.mxu0 0
      %471 = vmatprep.subr.bf16.mxu0 0
      %472 = vmatpush2.bf16.msra.mxu0 0
      %473 = vmatprep.subr.bf16.mxu0 0
      %474 = vmatpush2.bf16.msra.mxu0 0
      %475 = vmatprep.subr.bf16.mxu0 0
      %476 = vmatpush2.bf16.msra.mxu0 0
      %477 = vmatprep.subr.bf16.mxu0 0
      %478 = vmatpush2.bf16.msra.mxu0 0
      %479 = vmatprep.subr.bf16.mxu0 0
      %480 = vmatpush2.bf16.msra.mxu0 0
      %481 = vmatprep.subr.bf16.mxu0 0
      %482 = vmatpush2.bf16.msra.mxu0 0
      %483 = vmatprep.mubr.bf16.mxu0 0
      %484 = vmatmul.mubr.bf16.gmra.mxu0 %v379
      %v485 = vpop.f32.mrf.mxu0
      %v486 = vadd.f32 %v401, %v485
      %v487 = vpop.f32.mrf.mxu0
      %v488 = vpop.f32.mrf.mxu0
      %v489 = vadd.f32 %v401, %v488
      %v490 = vpop.f32.mrf.mxu0
      %491 = vdwg.mxu0
      %492 = vst [vmem:[%s253] sm:$0xff] %v486
      %493 = vst [vmem:[%s253 + $0x8] sm:$0xff] %v489
      %s494 = smul.u32 2, %s17
      %p495 = scmp.lt.s32.totalorder %s494, 5
      %s496 = scalar_select %p495, %s494, 5
      %s497 = smul.addr %s496, 8
      %s498 = scalar_lea.vmem %s6, %s497
      // Predicated region
      $region45: #{multi_all_forward.5} parent=43 // pred_check
        %p499 = pneg %p166
      $region46: #{multi_all_forward.5} parent=43 // pred_check_branch
        %501 = sbr.rel (%p499) target = $region48
      $region47: #{multi_all_forward.5} parent=43 // pred_region
        %s502 = smul.u32 2, %s17
      $region48: #{multi_all_forward.5} parent=43 // pred_fallthru
        _
    $region44: #{multi_all_forward.5} parent=5 // pred_fallthru
      _
    %p503 = scmp.le.s32.totalorder 2, %s12
    // Predicated region
    $region49: #{multi_all_forward.5} parent=5 // pred_check
      %p504 = pneg %p503
    $region50: #{multi_all_forward.5} parent=5 // pred_check_branch
      %506 = sbr.rel (%p504) target = $region52
    $region51: #{multi_all_forward.5} parent=5 // pred_region
      %s507 = ssub.s32 %s12, 2
      // Predicated region
      $region53: #{multi_all_forward.5} parent=51 // pred_check
        %p508 = pneg %p172
      $region54: #{multi_all_forward.5} parent=51 // pred_check_branch
        %510 = sbr.rel (%p508) target = $region56
      $region55: #{multi_all_forward.5} parent=51 // pred_region
        %s511 = smul.u32 2, %s18
        %p512 = scmp.lt.s32.totalorder %s511, 5
        %s513 = scalar_select %p512, %s511, 5
        %s514 = smul.addr %s513, 8
        %s515 = scalar_lea.vmem %s6, %s514
      $region56: #{multi_all_forward.5} parent=51 // pred_fallthru
        _
    $region52: #{multi_all_forward.5} parent=5 // pred_fallthru
      _
  $region6: #{multi_all_forward.5} parent=0 // loop_footer
    %s16 = sadd.s32 1, %s12
  $region7: #{multi_all_forward.5} parent=0 // loop_footer_branch
    %11 = sbr.rel target = $region3
  $region8: #{multi_all_forward.5} parent=0 // loop_exit
    _

// kernel: multi_all_forward.4
$region0: #{multi_all_forward.4}
  #allocation0 [shape = 'u32[]', space=smem, size = 0x4, offset = 0x4, fixed_abs, tag = 'smem constant byte address 0x4 - core index']
  #allocation1 [shape = 'u32[144,128]{1,0:T(1,128)}', space=vmem, size = 0x12000, scoped, tag = 'internal scratch']
  #allocation2 [shape = 'f32[16,128]{1,0:T(8,128)}', space=vmem, size = 0x2000, scoped, tag = 'scratch operand']
  #allocation3 [shape = 'f32[16,128]{1,0:T(8,128)}', space=vmem, size = 0x2000, scoped, tag = 'scratch operand']
  #allocation4 [shape = 's32[2]{0}', space=sflag, size = 0x8, scoped, tag = 'scratch operand']
  #allocation5 [shape = 's32[1]{0}', space=sflag, size = 0x4, scoped, tag = 'scoped memory for multi_all_forward.4']
  #allocation6 [shape = 'u8[512]{0}', space=smem, size = 0x200, scoped, tag = 'prefetched SMEM operand 0']
  #allocation7 [shape = 'u8[512]{0}', space=smem, size = 0x200, scoped, tag = 'prefetched SMEM operand 1']
  #allocation8 [shape = 's32[]', space=sflag, size = 0x4, offset = 0, fixed_abs, tag = 'sflag constant byte address 0x0 - dummy sync flag']
  #allocation9 [shape = 's32[]', space=sflag, size = 0x4, offset = 0, fixed_abs, tag = 'sflag constant byte address 0x0 - dummy sync flag']
  %s0 = inlined_call_operand.vmem [shape: s32[48], index: 0, kind: input, shape index: {}]
  %s1 = inlined_call_operand.vmem [shape: s32[48], index: 1, kind: input, shape index: {}]
  %s2 = inlined_call_operand.vmem [shape: f32[48,128], index: 2, kind: input, shape index: {}]
  %s3 = inlined_call_operand.vmem [shape: f32[48,128], index: 3, kind: input, shape index: {}]
  %s4 = inlined_call_operand.vmem [shape: f32[48,16], index: 4, kind: input, shape index: {}]
  %s5 = inlined_call_operand.vmem [shape: f32[8,128], index: 5, kind: input, shape index: {}]
  %s6 = inlined_call_operand.vmem [shape: f32[8,128], index: 6, kind: input, shape index: {}]
  %s7 = inlined_call_operand.vmem [shape: bf16[128,256], index: 7, kind: input, shape index: {}]
  %s8 = inlined_call_operand.vmem [shape: f32[1,256], index: 8, kind: input, shape index: {}]
  %s9 = inlined_call_operand.vmem [shape: bf16[128,256], index: 9, kind: input, shape index: {}]
  %s10 = inlined_call_operand.vmem [shape: f32[1,256], index: 10, kind: input, shape index: {}]
  %s11 = inlined_call_operand.vmem [shape: f32[16,80], index: 11, kind: input, shape index: {}]
  %s12 = inlined_call_operand.vmem [shape: f32[1,80], index: 12, kind: input, shape index: {}]
  %s13 = inlined_call_operand.vmem [shape: f32[16,128], index: 13, kind: input, shape index: {}]
  %s14 = inlined_call_operand.vmem [shape: f32[48,128], index: 14, kind: output, shape index: {0}]
  %s15 = inlined_call_operand.vmem [shape: f32[8,128], index: 15, kind: output, shape index: {1}]
  %16 = xla_tuple %s14, %s15
  %s17 = sld [smem:[#allocation0]]
  $region159: #{multi_all_forward.4} parent=0
    _
  %s19 = ssub.s32 1, %s17
  %s20 = scalar_select 0, %s19, %s17
  %s21 = sshll.u32 %s0, 4
  %s22 = int_to_ptr.vmem [resolvable:$true] %s21
  %24 = dma.vmem_to_smem %s22, 16, [#allocation6], [#allocation5]
  %s25 = sshll.u32 %s1, 4
  %s26 = int_to_ptr.vmem [resolvable:$true] %s25
  %28 = dma.vmem_to_smem %s26, 16, [#allocation7], [#allocation5]
  %29 = dma.done [#allocation5], 32
  %30 = sfence
  loop: start=0, step=1, limit=5
  $region2: #{multi_all_forward.4} parent=0 // loop_pre_header
    _
  $region3: #{multi_all_forward.4} parent=0 // loop_header
    %s32 = sphi 0, %s36
    %p33 = scmp.ge.s32.totalorder %s32, 5
    %s42 = sphi 0, %s44
    %s45 = sphi 0, %s42
    %s46 = sphi 0, %s45
    %s62 = sphi 0, %s46
    %s66 = sphi 0, %s66
    %s68 = sphi 0, %s66
    %s69 = sphi 0, %s68
    %s83 = sphi 0, %s69
    %s87 = sphi 0, %s87
    %s89 = sphi 0, %s87
    %s90 = sphi 0, %s89
    %s104 = sphi 0, %s90
    %s108 = sphi 0, %s108
    %s110 = sphi 0, %s108
    %s111 = sphi 0, %s110
    %s125 = sphi 0, %s111
    %s129 = sphi 0, %s129
    %s131 = sphi 0, %s129
    %s132 = sphi 0, %s131
    %s146 = sphi 0, %s132
    %s150 = sphi 0, %s150
    %s152 = sphi 0, %s150
    %s153 = sphi 0, %s152
    %s167 = sphi 0, %s153
    %s171 = sphi 0, %s171
    %s173 = sphi 0, %s171
    %s174 = sphi 0, %s173
    %s188 = sphi 0, %s174
    %s192 = sphi 0, %s192
    %s194 = sphi 0, %s192
    %s195 = sphi 0, %s194
    %s209 = sphi 0, %s195
    %s213 = sphi 0, %s213
    %s215 = sphi 0, %s213
    %s216 = sphi 0, %s215
    %s230 = sphi 0, %s216
    %s234 = sphi 0, %s234
    %s236 = sphi 0, %s234
    %s237 = sphi 0, %s236
    %s251 = sphi 0, %s237
    %s257 = sphi 0, %s259
    %s260 = sphi 0, %s257
    %s261 = sphi 0, %s260
    %s277 = sphi 0, %s261
    %s281 = sphi 0, %s281
    %s283 = sphi 0, %s281
    %s284 = sphi 0, %s283
    %s298 = sphi 0, %s284
  $region4: #{multi_all_forward.4} parent=0 // loop_header_branch
    %35 = sbr.rel (%p33) target = $region8
  $region5: #{multi_all_forward.4} parent=0 // loop_body
    %s37 = ssub.s32 %s32, 1
    %s38 = ssub.s32 %s32, 2
    %s39 = sadd.s32 %s32, 1
    %s40 = ssub.s32 %s32, %s39
    %p41 = scmp.eq.s32.totalorder %s40, 0
    %s43 = sadd.s32 %s42, 1
    %s44 = scalar_select %p41, %s42, %s43
    %p47 = pneg %p41
    %p48 = scmp.eq.s32.totalorder %s32, 2
    %p49 = por %p47, %p48
    %p50 = scmp.ne.s32.totalorder %s42, %s45
    %p51 = scmp.eq.s32.totalorder %s32, 0
    %p52 = por %p50, %p51
    %p53 = scmp.ne.s32.totalorder %s42, %s45
    %p54 = scmp.eq.s32.totalorder %s37, 2
    %p55 = por %p53, %p54
    %p56 = scmp.ne.s32.totalorder %s45, %s46
    %p57 = scmp.eq.s32.totalorder %s37, 0
    %p58 = por %p56, %p57
    %p59 = scmp.ne.s32.totalorder %s45, %s46
    %p60 = scmp.eq.s32.totalorder %s38, 2
    %p61 = por %p59, %p60
    %p63 = scmp.ne.s32.totalorder %s46, %s62
    %p64 = scmp.eq.s32.totalorder %s38, 0
    %p65 = por %p63, %p64
    %s67 = sadd.s32 %s66, 1
    %p70 = scmp.eq.s32.totalorder %s32, 2
    %p71 = scmp.ne.s32.totalorder %s66, %s68
    %p72 = scmp.eq.s32.totalorder %s32, 0
    %p73 = por %p71, %p72
    %p74 = scmp.ne.s32.totalorder %s66, %s68
    %p75 = scmp.eq.s32.totalorder %s37, 2
    %p76 = por %p74, %p75
    %p77 = scmp.ne.s32.totalorder %s68, %s69
    %p78 = scmp.eq.s32.totalorder %s37, 0
    %p79 = por %p77, %p78
    %p80 = scmp.ne.s32.totalorder %s68, %s69
    %p81 = scmp.eq.s32.totalorder %s38, 2
    %p82 = por %p80, %p81
    %p84 = scmp.ne.s32.totalorder %s69, %s83
    %p85 = scmp.eq.s32.totalorder %s38, 0
    %p86 = por %p84, %p85
    %s88 = sadd.s32 %s87, 1
    %p91 = scmp.eq.s32.totalorder %s32, 2
    %p92 = scmp.ne.s32.totalorder %s87, %s89
    %p93 = scmp.eq.s32.totalorder %s32, 0
    %p94 = por %p92, %p93
    %p95 = scmp.ne.s32.totalorder %s87, %s89
    %p96 = scmp.eq.s32.totalorder %s37, 2
    %p97 = por %p95, %p96
    %p98 = scmp.ne.s32.totalorder %s89, %s90
    %p99 = scmp.eq.s32.totalorder %s37, 0
    %p100 = por %p98, %p99
    %p101 = scmp.ne.s32.totalorder %s89, %s90
    %p102 = scmp.eq.s32.totalorder %s38, 2
    %p103 = por %p101, %p102
    %p105 = scmp.ne.s32.totalorder %s90, %s104
    %p106 = scmp.eq.s32.totalorder %s38, 0
    %p107 = por %p105, %p106
    %s109 = sadd.s32 %s108, 1
    %p112 = scmp.eq.s32.totalorder %s32, 2
    %p113 = scmp.ne.s32.totalorder %s108, %s110
    %p114 = scmp.eq.s32.totalorder %s32, 0
    %p115 = por %p113, %p114
    %p116 = scmp.ne.s32.totalorder %s108, %s110
    %p117 = scmp.eq.s32.totalorder %s37, 2
    %p118 = por %p116, %p117
    %p119 = scmp.ne.s32.totalorder %s110, %s111
    %p120 = scmp.eq.s32.totalorder %s37, 0
    %p121 = por %p119, %p120
    %p122 = scmp.ne.s32.totalorder %s110, %s111
    %p123 = scmp.eq.s32.totalorder %s38, 2
    %p124 = por %p122, %p123
    %p126 = scmp.ne.s32.totalorder %s111, %s125
    %p127 = scmp.eq.s32.totalorder %s38, 0
    %p128 = por %p126, %p127
    %s130 = sadd.s32 %s129, 1
    %p133 = scmp.eq.s32.totalorder %s32, 2
    %p134 = scmp.ne.s32.totalorder %s129, %s131
    %p135 = scmp.eq.s32.totalorder %s32, 0
    %p136 = por %p134, %p135
    %p137 = scmp.ne.s32.totalorder %s129, %s131
    %p138 = scmp.eq.s32.totalorder %s37, 2
    %p139 = por %p137, %p138
    %p140 = scmp.ne.s32.totalorder %s131, %s132
    %p141 = scmp.eq.s32.totalorder %s37, 0
    %p142 = por %p140, %p141
    %p143 = scmp.ne.s32.totalorder %s131, %s132
    %p144 = scmp.eq.s32.totalorder %s38, 2
    %p145 = por %p143, %p144
    %p147 = scmp.ne.s32.totalorder %s132, %s146
    %p148 = scmp.eq.s32.totalorder %s38, 0
    %p149 = por %p147, %p148
    %s151 = sadd.s32 %s150, 1
    %p154 = scmp.eq.s32.totalorder %s32, 2
    %p155 = scmp.ne.s32.totalorder %s150, %s152
    %p156 = scmp.eq.s32.totalorder %s32, 0
    %p157 = por %p155, %p156
    %p158 = scmp.ne.s32.totalorder %s150, %s152
    %p159 = scmp.eq.s32.totalorder %s37, 2
    %p160 = por %p158, %p159
    %p161 = scmp.ne.s32.totalorder %s152, %s153
    %p162 = scmp.eq.s32.totalorder %s37, 0
    %p163 = por %p161, %p162
    %p164 = scmp.ne.s32.totalorder %s152, %s153
    %p165 = scmp.eq.s32.totalorder %s38, 2
    %p166 = por %p164, %p165
    %p168 = scmp.ne.s32.totalorder %s153, %s167
    %p169 = scmp.eq.s32.totalorder %s38, 0
    %p170 = por %p168, %p169
    %s172 = sadd.s32 %s171, 1
    %p175 = scmp.eq.s32.totalorder %s32, 2
    %p176 = scmp.ne.s32.totalorder %s171, %s173
    %p177 = scmp.eq.s32.totalorder %s32, 0
    %p178 = por %p176, %p177
    %p179 = scmp.ne.s32.totalorder %s171, %s173
    %p180 = scmp.eq.s32.totalorder %s37, 2
    %p181 = por %p179, %p180
    %p182 = scmp.ne.s32.totalorder %s173, %s174
    %p183 = scmp.eq.s32.totalorder %s37, 0
    %p184 = por %p182, %p183
    %p185 = scmp.ne.s32.totalorder %s173, %s174
    %p186 = scmp.eq.s32.totalorder %s38, 2
    %p187 = por %p185, %p186
    %p189 = scmp.ne.s32.totalorder %s174, %s188
    %p190 = scmp.eq.s32.totalorder %s38, 0
    %p191 = por %p189, %p190
    %s193 = sadd.s32 %s192, 1
    %p196 = scmp.eq.s32.totalorder %s32, 2
    %p197 = scmp.ne.s32.totalorder %s192, %s194
    %p198 = scmp.eq.s32.totalorder %s32, 0
    %p199 = por %p197, %p198
    %p200 = scmp.ne.s32.totalorder %s192, %s194
    %p201 = scmp.eq.s32.totalorder %s37, 2
    %p202 = por %p200, %p201
    %p203 = scmp.ne.s32.totalorder %s194, %s195
    %p204 = scmp.eq.s32.totalorder %s37, 0
    %p205 = por %p203, %p204
    %p206 = scmp.ne.s32.totalorder %s194, %s195
    %p207 = scmp.eq.s32.totalorder %s38, 2
    %p208 = por %p206, %p207
    %p210 = scmp.ne.s32.totalorder %s195, %s209
    %p211 = scmp.eq.s32.totalorder %s38, 0
    %p212 = por %p210, %p211
    %s214 = sadd.s32 %s213, 1
    %p217 = scmp.eq.s32.totalorder %s32, 2
    %p218 = scmp.ne.s32.totalorder %s213, %s215
    %p219 = scmp.eq.s32.totalorder %s32, 0
    %p220 = por %p218, %p219
    %p221 = scmp.ne.s32.totalorder %s213, %s215
    %p222 = scmp.eq.s32.totalorder %s37, 2
    %p223 = por %p221, %p222
    %p224 = scmp.ne.s32.totalorder %s215, %s216
    %p225 = scmp.eq.s32.totalorder %s37, 0
    %p226 = por %p224, %p225
    %p227 = scmp.ne.s32.totalorder %s215, %s216
    %p228 = scmp.eq.s32.totalorder %s38, 2
    %p229 = por %p227, %p228
    %p231 = scmp.ne.s32.totalorder %s216, %s230
    %p232 = scmp.eq.s32.totalorder %s38, 0
    %p233 = por %p231, %p232
    %s235 = sadd.s32 %s234, 1
    %p238 = scmp.eq.s32.totalorder %s32, 2
    %p239 = scmp.ne.s32.totalorder %s234, %s236
    %p240 = scmp.eq.s32.totalorder %s32, 0
    %p241 = por %p239, %p240
    %p242 = scmp.ne.s32.totalorder %s234, %s236
    %p243 = scmp.eq.s32.totalorder %s37, 2
    %p244 = por %p242, %p243
    %p245 = scmp.ne.s32.totalorder %s236, %s237
    %p246 = scmp.eq.s32.totalorder %s37, 0
    %p247 = por %p245, %p246
    %p248 = scmp.ne.s32.totalorder %s236, %s237
    %p249 = scmp.eq.s32.totalorder %s38, 2
    %p250 = por %p248, %p249
    %p252 = scmp.ne.s32.totalorder %s237, %s251
    %p253 = scmp.eq.s32.totalorder %s38, 0
    %p254 = por %p252, %p253
    %s255 = ssub.s32 %s32, %s39
    %p256 = scmp.eq.s32.totalorder %s255, 0
    %s258 = sadd.s32 %s257, 1
    %s259 = scalar_select %p256, %s257, %s258
    %p262 = pneg %p256
    %p263 = scmp.eq.s32.totalorder %s32, 2
    %p264 = por %p262, %p263
    %p265 = scmp.ne.s32.totalorder %s257, %s260
    %p266 = scmp.eq.s32.totalorder %s32, 0
    %p267 = por %p265, %p266
    %p268 = scmp.ne.s32.totalorder %s257, %s260
    %p269 = scmp.eq.s32.totalorder %s37, 2
    %p270 = por %p268, %p269
    %p271 = scmp.ne.s32.totalorder %s260, %s261
    %p272 = scmp.eq.s32.totalorder %s37, 0
    %p273 = por %p271, %p272
    %p274 = scmp.ne.s32.totalorder %s260, %s261
    %p275 = scmp.eq.s32.totalorder %s38, 2
    %p276 = por %p274, %p275
    %p278 = scmp.ne.s32.totalorder %s261, %s277
    %p279 = scmp.eq.s32.totalorder %s38, 0
    %p280 = por %p278, %p279
    %s282 = sadd.s32 %s281, 1
    %p285 = scmp.eq.s32.totalorder %s32, 2
    %p286 = scmp.ne.s32.totalorder %s281, %s283
    %p287 = scmp.eq.s32.totalorder %s32, 0
    %p288 = por %p286, %p287
    %p289 = scmp.ne.s32.totalorder %s281, %s283
    %p290 = scmp.eq.s32.totalorder %s37, 2
    %p291 = por %p289, %p290
    %p292 = scmp.ne.s32.totalorder %s283, %s284
    %p293 = scmp.eq.s32.totalorder %s37, 0
    %p294 = por %p292, %p293
    %p295 = scmp.ne.s32.totalorder %s283, %s284
    %p296 = scmp.eq.s32.totalorder %s38, 2
    %p297 = por %p295, %p296
    %p299 = scmp.ne.s32.totalorder %s284, %s298
    %p300 = scmp.eq.s32.totalorder %s38, 0
    %p301 = por %p299, %p300
    %p302 = scmp.le.s32.totalorder 1, %s32
    %p303 = scmp.lt.s32.totalorder %s32, 4
    %p304 = pnand %p302, %p303
    %p305 = pneg %p304
    // Predicated region
    $region9: #{multi_all_forward.4} parent=5 // pred_check
      _
    $region10: #{multi_all_forward.4} parent=5 // pred_check_branch
      %307 = sbr.rel (%p304) target = $region12
    $region11: #{multi_all_forward.4} parent=5 // pred_region
      %s308 = ssub.s32 %s32, 1
      // Predicated region
      $region13: #{multi_all_forward.4} parent=11 // pred_check
        %p309 = pneg %p79
      $region14: #{multi_all_forward.4} parent=11 // pred_check_branch
        %311 = sbr.rel (%p309) target = $region16
      $region15: #{multi_all_forward.4} parent=11 // pred_region
        _
      $region16: #{multi_all_forward.4} parent=11 // pred_fallthru
        _
      // Predicated region
      $region17: #{multi_all_forward.4} parent=11 // pred_check
        %p312 = pneg %p100
      $region18: #{multi_all_forward.4} parent=11 // pred_check_branch
        %314 = sbr.rel (%p312) target = $region20
      $region19: #{multi_all_forward.4} parent=11 // pred_region
        _
      $region20: #{multi_all_forward.4} parent=11 // pred_fallthru
        _
      // Predicated region
      $region21: #{multi_all_forward.4} parent=11 // pred_check
        %p315 = pneg %p121
      $region22: #{multi_all_forward.4} parent=11 // pred_check_branch
        %317 = sbr.rel (%p315) target = $region24
      $region23: #{multi_all_forward.4} parent=11 // pred_region
        _
      $region24: #{multi_all_forward.4} parent=11 // pred_fallthru
        _
      // Predicated region
      $region25: #{multi_all_forward.4} parent=11 // pred_check
        %p318 = pneg %p142
      $region26: #{multi_all_forward.4} parent=11 // pred_check_branch
        %320 = sbr.rel (%p318) target = $region28
      $region27: #{multi_all_forward.4} parent=11 // pred_region
        _
      $region28: #{multi_all_forward.4} parent=11 // pred_fallthru
        _
      // Predicated region
      $region29: #{multi_all_forward.4} parent=11 // pred_check
        %p321 = pneg %p163
      $region30: #{multi_all_forward.4} parent=11 // pred_check_branch
        %323 = sbr.rel (%p321) target = $region32
      $region31: #{multi_all_forward.4} parent=11 // pred_region
        _
      $region32: #{multi_all_forward.4} parent=11 // pred_fallthru
        _
      // Predicated region
      $region33: #{multi_all_forward.4} parent=11 // pred_check
        %p324 = pneg %p184
      $region34: #{multi_all_forward.4} parent=11 // pred_check_branch
        %326 = sbr.rel (%p324) target = $region36
      $region35: #{multi_all_forward.4} parent=11 // pred_region
        _
      $region36: #{multi_all_forward.4} parent=11 // pred_fallthru
        _
      // Predicated region
      $region37: #{multi_all_forward.4} parent=11 // pred_check
        %p327 = pneg %p205
      $region38: #{multi_all_forward.4} parent=11 // pred_check_branch
        %329 = sbr.rel (%p327) target = $region40
      $region39: #{multi_all_forward.4} parent=11 // pred_region
        _
      $region40: #{multi_all_forward.4} parent=11 // pred_fallthru
        _
      // Predicated region
      $region41: #{multi_all_forward.4} parent=11 // pred_check
        %p330 = pneg %p226
      $region42: #{multi_all_forward.4} parent=11 // pred_check_branch
        %332 = sbr.rel (%p330) target = $region44
      $region43: #{multi_all_forward.4} parent=11 // pred_region
        _
      $region44: #{multi_all_forward.4} parent=11 // pred_fallthru
        _
      // Predicated region
      $region45: #{multi_all_forward.4} parent=11 // pred_check
        %p333 = pneg %p247
      $region46: #{multi_all_forward.4} parent=11 // pred_check_branch
        %335 = sbr.rel (%p333) target = $region48
      $region47: #{multi_all_forward.4} parent=11 // pred_region
        _
      $region48: #{multi_all_forward.4} parent=11 // pred_fallthru
        _
    $region12: #{multi_all_forward.4} parent=5 // pred_fallthru
      _
    %p336 = scmp.lt.s32.totalorder %s32, 3
    // Predicated region
    $region49: #{multi_all_forward.4} parent=5 // pred_check
      %p337 = pneg %p336
    $region50: #{multi_all_forward.4} parent=5 // pred_check_branch
      %339 = sbr.rel (%p337) target = $region52
    $region51: #{multi_all_forward.4} parent=5 // pred_region
      // Predicated region
      $region53: #{multi_all_forward.4} parent=51 // pred_check
        %p340 = pneg %p52
      $region54: #{multi_all_forward.4} parent=51 // pred_check_branch
        %342 = sbr.rel (%p340) target = $region56
      $region55: #{multi_all_forward.4} parent=51 // pred_region
        %s343 = smul.u32 2, %s32
        %p344 = scmp.lt.s32.totalorder %s343, 5
        %s345 = scalar_select %p344, %s343, 5
        %s346 = smul.addr %s345, 8
        %s347 = scalar_lea.vmem %s4, %s346
        %s348 = smul.u32 2, %s32
      $region56: #{multi_all_forward.4} parent=51 // pred_fallthru
        _
    $region52: #{multi_all_forward.4} parent=5 // pred_fallthru
      _
    %p349 = scmp.le.s32.totalorder 1, %s32
    %p350 = scmp.lt.s32.totalorder %s32, 4
    %p351 = pnand %p349, %p350
    %p352 = pneg %p351
    // Predicated region
    $region57: #{multi_all_forward.4} parent=5 // pred_check
      _
    $region58: #{multi_all_forward.4} parent=5 // pred_check_branch
      %354 = sbr.rel (%p351) target = $region60
    $region59: #{multi_all_forward.4} parent=5 // pred_region
      %s355 = ssub.s32 %s32, 1
      %s356 = smul.u32 2, %s37
      %p357 = scmp.lt.s32.totalorder %s356, 5
      %s358 = scalar_select %p357, %s356, 5
      %s359 = smul.addr %s358, 8
      %s360 = scalar_lea.vmem %s4, %s359
      %p361 = pneg %p58
      %p362 = pneg %p55
      %p363 = pneg %p79
      %p364 = pneg %p76
      %p365 = pneg %p100
      %p366 = pneg %p97
      %p367 = pneg %p121
      %p368 = pneg %p118
      %p369 = pneg %p142
      %p370 = pneg %p139
      %p371 = pneg %p163
      %p372 = pneg %p160
      %p373 = pneg %p184
      %p374 = pneg %p181
      %p375 = pneg %p205
      %p376 = pneg %p202
      %p377 = pneg %p226
      %p378 = pneg %p223
      %p379 = pneg %p247
      %p380 = pneg %p244
      %p381 = pneg %p273
      %p382 = pneg %p270
      %s383 = smul.u32 2, %s37
      %p384 = scmp.lt.s32.totalorder %s383, 5
      %s385 = scalar_select %p384, %s383, 5
      %s386 = smul.addr %s385, 8
      %s387 = scalar_lea.vmem %s14, %s386
      %p388 = pneg %p294
      %p389 = pneg %p291
      %s390 = smul.u32 2, %s37
      %p391 = scmp.lt.s32.totalorder %s390, 5
      %s392 = scalar_select %p391, %s390, 5
      %s393 = smul.addr %s392, 8
      %s394 = scalar_lea.vmem %s4, %s393
      %s395 = smul.u32 2, %s37
      %s396 = smul.u32 2, %s37
      %p397 = scmp.lt.s32.totalorder %s396, 5
      %s398 = scalar_select %p397, %s396, 5
      %s399 = smul.addr %s398, 8
      %s400 = scalar_lea.vmem %s14, %s399
      %s401 = smul.u32 2, %s37
      %s403 = smul.u32 %s37, 16
      loop: start=0, step=1, limit=16
      $region61: #{multi_all_forward.4} parent=59 // loop_pre_header
        _
      $region62: #{multi_all_forward.4} parent=59 // loop_header
        %s405 = sphi 0, %s409
        %p406 = scmp.ge.s32.totalorder %s405, 16
      $region63: #{multi_all_forward.4} parent=59 // loop_header_branch
        %408 = sbr.rel (%p406) target = $region67
      $region64: #{multi_all_forward.4} parent=59 // loop_body
        %s410 = sadd.s32 %s403, %s405
        %s411 = sld [smem:[#allocation6 + %s410]]
        %s412 = scalar_lea.vmem %s2, %s411
        %s413 = scalar_lea.vmem [#allocation2], %s405
        %p415 = scmp.lt.u32.totalorder 1, 8
        %p416 = pneg %p415
        // Predicated region
        $region68: #{multi_all_forward.4} parent=64 // pred_check
          _
        $region69: #{multi_all_forward.4} parent=64 // pred_check_branch
          %418 = sbr.rel (%p415) target = $region71
        $region70: #{multi_all_forward.4} parent=64 // pred_region
          %s434 = sand.u32 1, 7
          %p435 = scmp.eq.s32.totalorder %s434, 0
          %p436 = pneg %p435
          // Predicated region
          $region83: #{multi_all_forward.4} parent=70 // pred_check
            _
          $region84: #{multi_all_forward.4} parent=70 // pred_check_branch
            %438 = sbr.rel (%p435) target = $region86
          $region85: #{multi_all_forward.4} parent=70 // pred_region
            %s439 = sand.u32 1, 7
            %s440 = ssub.s32 1, %s439
            %s441 = scalar_lea.vmem %s412, %s440
            %s442 = ssub.s32 1, %s439
            %s443 = scalar_lea.vmem %s413, %s442 [#allocation2]
            %s444 = sshll.u32 1, %s439
            %s445 = ssub.s32 %s444, 1
            loop: start=0, step=1, limit=1
            $region87: #{multi_all_forward.4} parent=85 // loop_pre_header
              _
            $region88: #{multi_all_forward.4} parent=85 // loop_header
              %s447 = sphi 0, %s451
              %p448 = scmp.ge.s32.totalorder %s447, 1
              %s452 = sphi %s441, %s441
              %s453 = sphi %s443, %s443
            $region89: #{multi_all_forward.4} parent=85 // loop_header_branch
              %450 = sbr.rel (%p448) target = $region93
            $region90: #{multi_all_forward.4} parent=85 // loop_body
              %v454 = vld [vmem:[%s452] sm:%s445]
              %455 = vst [vmem:[%s453] sm:%s445] %v454
            $region91: #{multi_all_forward.4} parent=85 // loop_footer
              %s451 = sadd.s32 1, %s447
            $region92: #{multi_all_forward.4} parent=85 // loop_footer_branch
              %446 = sbr.rel target = $region88
            $region93: #{multi_all_forward.4} parent=85 // loop_exit
              _
          $region86: #{multi_all_forward.4} parent=70 // pred_fallthru
            _
        $region71: #{multi_all_forward.4} parent=64 // pred_fallthru
          _
        // Predicated region
        $region72: #{multi_all_forward.4} parent=64 // pred_check
          %p419 = pneg %p415
        $region73: #{multi_all_forward.4} parent=64 // pred_check_branch
          %421 = sbr.rel (%p419) target = $region75
        $region74: #{multi_all_forward.4} parent=64 // pred_region
          %s422 = sshll.u32 1, 1
          %s423 = ssub.s32 %s422, 1
          loop: start=0, step=1, limit=1
          $region76: #{multi_all_forward.4} parent=74 // loop_pre_header
            _
          $region77: #{multi_all_forward.4} parent=74 // loop_header
            %s425 = sphi 0, %s429
            %p426 = scmp.ge.s32.totalorder %s425, 1
            %s430 = sphi %s412, %s412
            %s431 = sphi %s413, %s413
          $region78: #{multi_all_forward.4} parent=74 // loop_header_branch
            %428 = sbr.rel (%p426) target = $region82
          $region79: #{multi_all_forward.4} parent=74 // loop_body
            %v432 = vld [vmem:[%s430] sm:%s423]
            %433 = vst [vmem:[%s431] sm:%s423] %v432
          $region80: #{multi_all_forward.4} parent=74 // loop_footer
            %s429 = sadd.s32 1, %s425
          $region81: #{multi_all_forward.4} parent=74 // loop_footer_branch
            %424 = sbr.rel target = $region77
          $region82: #{multi_all_forward.4} parent=74 // loop_exit
            _
        $region75: #{multi_all_forward.4} parent=64 // pred_fallthru
          _
        // Predicated region
        $region94: #{multi_all_forward.4} parent=64 // pred_check
          _
        $region95: #{multi_all_forward.4} parent=64 // pred_check_branch
          %458 = sbr.rel (0) target = $region97
        $region96: #{multi_all_forward.4} parent=64 // pred_region
          %459 = vsyncadd [#allocation4], 16
        $region97: #{multi_all_forward.4} parent=64 // pred_fallthru
          _
        %s460 = sld [smem:[#allocation7 + %s410]]
        %s461 = scalar_lea.vmem %s3, %s460
        %s462 = scalar_lea.vmem [#allocation3], %s405
        %s463 = scalar_lea.sflag [#allocation4], 1
        %p465 = scmp.lt.u32.totalorder 1, 8
        %p466 = pneg %p465
        // Predicated region
        $region98: #{multi_all_forward.4} parent=64 // pred_check
          _
        $region99: #{multi_all_forward.4} parent=64 // pred_check_branch
          %468 = sbr.rel (%p465) target = $region101
        $region100: #{multi_all_forward.4} parent=64 // pred_region
          %s484 = sand.u32 1, 7
          %p485 = scmp.eq.s32.totalorder %s484, 0
          %p486 = pneg %p485
          // Predicated region
          $region113: #{multi_all_forward.4} parent=100 // pred_check
            _
          $region114: #{multi_all_forward.4} parent=100 // pred_check_branch
            %488 = sbr.rel (%p485) target = $region116
          $region115: #{multi_all_forward.4} parent=100 // pred_region
            %s489 = sand.u32 1, 7
            %s490 = ssub.s32 1, %s489
            %s491 = scalar_lea.vmem %s461, %s490
            %s492 = ssub.s32 1, %s489
            %s493 = scalar_lea.vmem %s462, %s492 [#allocation3]
            %s494 = sshll.u32 1, %s489
            %s495 = ssub.s32 %s494, 1
            loop: start=0, step=1, limit=1
            $region117: #{multi_all_forward.4} parent=115 // loop_pre_header
              _
            $region118: #{multi_all_forward.4} parent=115 // loop_header
              %s497 = sphi 0, %s501
              %p498 = scmp.ge.s32.totalorder %s497, 1
              %s502 = sphi %s491, %s491
              %s503 = sphi %s493, %s493
            $region119: #{multi_all_forward.4} parent=115 // loop_header_branch
              %500 = sbr.rel (%p498) target = $region123
            $region120: #{multi_all_forward.4} parent=115 // loop_body
              %v504 = vld [vmem:[%s502] sm:%s495]
              %505 = vst [vmem:[%s503] sm:%s495] %v504
            $region121: #{multi_all_forward.4} parent=115 // loop_footer
              %s501 = sadd.s32 1, %s497
            $region122: #{multi_all_forward.4} parent=115 // loop_footer_branch
              %496 = sbr.rel target = $region118
            $region123: #{multi_all_forward.4} parent=115 // loop_exit
              _
          $region116: #{multi_all_forward.4} parent=100 // pred_fallthru
            _
        $region101: #{multi_all_forward.4} parent=64 // pred_fallthru
          _
        // Predicated region
        $region102: #{multi_all_forward.4} parent=64 // pred_check
          %p469 = pneg %p465
        $region103: #{multi_all_forward.4} parent=64 // pred_check_branch
          %471 = sbr.rel (%p469) target = $region105
        $region104: #{multi_all_forward.4} parent=64 // pred_region
          %s472 = sshll.u32 1, 1
          %s473 = ssub.s32 %s472, 1
          loop: start=0, step=1, limit=1
          $region106: #{multi_all_forward.4} parent=104 // loop_pre_header
            _
          $region107: #{multi_all_forward.4} parent=104 // loop_header
            %s475 = sphi 0, %s479
            %p476 = scmp.ge.s32.totalorder %s475, 1
            %s480 = sphi %s461, %s461
            %s481 = sphi %s462, %s462
          $region108: #{multi_all_forward.4} parent=104 // loop_header_branch
            %478 = sbr.rel (%p476) target = $region112
          $region109: #{multi_all_forward.4} parent=104 // loop_body
            %v482 = vld [vmem:[%s480] sm:%s473]
            %483 = vst [vmem:[%s481] sm:%s473] %v482
          $region110: #{multi_all_forward.4} parent=104 // loop_footer
            %s479 = sadd.s32 1, %s475
          $region111: #{multi_all_forward.4} parent=104 // loop_footer_branch
            %474 = sbr.rel target = $region107
          $region112: #{multi_all_forward.4} parent=104 // loop_exit
            _
        $region105: #{multi_all_forward.4} parent=64 // pred_fallthru
          _
        // Predicated region
        $region124: #{multi_all_forward.4} parent=64 // pred_check
          _
        $region125: #{multi_all_forward.4} parent=64 // pred_check_branch
          %508 = sbr.rel (0) target = $region127
        $region126: #{multi_all_forward.4} parent=64 // pred_region
          %509 = vsyncadd %s463, 16
        $region127: #{multi_all_forward.4} parent=64 // pred_fallthru
          _
      $region65: #{multi_all_forward.4} parent=59 // loop_footer
        %s409 = sadd.s32 1, %s405
      $region66: #{multi_all_forward.4} parent=59 // loop_footer_branch
        %404 = sbr.rel target = $region62
      $region67: #{multi_all_forward.4} parent=59 // loop_exit
        _
      loop: start=0, step=1, limit=16
      $region128: #{multi_all_forward.4} parent=59 // loop_pre_header
        _
      $region129: #{multi_all_forward.4} parent=59 // loop_header
        %s511 = sphi 0, %s515
        %p512 = scmp.ge.s32.totalorder %s511, 16
      $region130: #{multi_all_forward.4} parent=59 // loop_header_branch
        %514 = sbr.rel (%p512) target = $region134
      $region131: #{multi_all_forward.4} parent=59 // loop_body
        %s516 = smul.u32 1, 1
        %s517 = sshll.u32 %s516, 4
        %518 = dma.done [#allocation4], %s517
        %s519 = scalar_lea.sflag [#allocation4], 1
        %s520 = sshll.u32 %s516, 4
        %521 = dma.done %s519, %s520
      $region132: #{multi_all_forward.4} parent=59 // loop_footer
        %s515 = sadd.s32 1, %s511
      $region133: #{multi_all_forward.4} parent=59 // loop_footer_branch
        %510 = sbr.rel target = $region129
      $region134: #{multi_all_forward.4} parent=59 // loop_exit
        _
      %v522 = vld [vmem:[%s5] sm:$0x1]
      %v523 = vmul.f32 %v522, 0.025
      %v524 = vld [vmem:[%s5 + $0x1] sm:$0x1]
      %v525 = vmul.f32 %v524, 0.025
      %v526 = vmul.f32 %v523, %v523
      %v527 = vsub.f32 %v525, %v526
      %v528 = vmax.f32 %v527, 0.0
      %v529 = vld [vmem:[%s6] sm:$0x1]
      %v530 = vld [vmem:[%s6 + $0x1] sm:$0x1]
      %v531 = vld [vmem:[#allocation2] sm:$0xff]
      %v532 = vld [vmem:[#allocation2 + $0x8] sm:$0xff]
      %v533 = vlaneseq
      %v534 = vshrl.u32 %v533, 7
      %v535 = vsub.s32 0, %v534
      %v536 = vrot.slane %v523, %v535
      %v537 = vsub.f32 %v531, %v536
      %v538 = vsub.f32 %v532, %v536
      %v539 = vlaneseq
      %v540 = vshrl.u32 %v539, 7
      %v541 = vsub.s32 0, %v540
      %v542 = vrot.slane %v529, %v541
      %v543 = vmul.f32 %v542, %v537
      %v544 = vmul.f32 %v542, %v538
      %v545 = vadd.f32 %v528, 1e-05
      %v546 = vrsqrt.pop %v545
      %v547 = vlaneseq
      %v548 = vshrl.u32 %v547, 7
      %v549 = vsub.s32 0, %v548
      %v550 = vrot.slane %v546, %v549
      %v551 = vmul.f32 %v543, %v550
      %v552 = vmul.f32 %v544, %v550
      %v553 = vlaneseq
      %v554 = vshrl.u32 %v553, 7
      %v555 = vsub.s32 0, %v554
      %v556 = vrot.slane %v530, %v555
      %v557 = vadd.f32 %v551, %v556
      %v558 = vadd.f32 %v552, %v556
      %v559 = vmax.f32 %v557, 0.0
      %v560 = vmax.f32 %v558, 0.0
      %v561 = vpack.c.bf16 %v560, %v559
      %v562 = vld [vmem:[%s7] sm:$0xff]
      %v563 = vld [vmem:[%s7 + $0x8] sm:$0xff]
      %v564 = vld [vmem:[%s7 + $0x10] sm:$0xff]
      %v565 = vld [vmem:[%s7 + $0x18] sm:$0xff]
      %v566 = vld [vmem:[%s7 + $0x20] sm:$0xff]
      %v567 = vld [vmem:[%s7 + $0x28] sm:$0xff]
      %v568 = vld [vmem:[%s7 + $0x30] sm:$0xff]
      %v569 = vld [vmem:[%s7 + $0x38] sm:$0xff]
      %v570 = vld [vmem:[%s7 + $0x40] sm:$0xff]
      %v571 = vld [vmem:[%s7 + $0x48] sm:$0xff]
      %v572 = vld [vmem:[%s7 + $0x50] sm:$0xff]
      %v573 = vld [vmem:[%s7 + $0x58] sm:$0xff]
      %v574 = vld [vmem:[%s7 + $0x60] sm:$0xff]
      %v575 = vld [vmem:[%s7 + $0x68] sm:$0xff]
      %v576 = vld [vmem:[%s7 + $0x70] sm:$0xff]
      %v577 = vld [vmem:[%s7 + $0x78] sm:$0xff]
      %v578 = vld [vmem:[%s8] sm:$0x3]
      %v580 = vlaneseq
      %v581 = vshrl.u32 %v580, 7
      %v582 = vsub.s32 0, %v581
      %v583 = vrot.slane %v578, %v582
      %v584 = vlaneseq
      %v585 = vshrl.u32 %v584, 7
      %v586 = vsub.s32 1, %v585
      %v587 = vrot.slane %v578, %v586
      %v606 = vunpack.c.l.b16 %v562
      %v607 = vunpack.c.h.b16 %v562
      %v608 = vunpack.c.l.b16 %v563
      %v609 = vunpack.c.h.b16 %v563
      %v610 = vunpack.c.l.b16 %v564
      %v611 = vunpack.c.h.b16 %v564
      %v612 = vunpack.c.l.b16 %v565
      %v613 = vunpack.c.h.b16 %v565
      %v614 = vunpack.c.l.b16 %v566
      %v615 = vunpack.c.h.b16 %v566
      %v616 = vunpack.c.l.b16 %v567
      %v617 = vunpack.c.h.b16 %v567
      %v618 = vunpack.c.l.b16 %v568
      %v619 = vunpack.c.h.b16 %v568
      %v620 = vunpack.c.l.b16 %v569
      %v621 = vunpack.c.h.b16 %v569
      %v622 = vunpack.c.l.b16 %v570
      %v623 = vunpack.c.h.b16 %v570
      %v624 = vunpack.c.l.b16 %v571
      %v625 = vunpack.c.h.b16 %v571
      %v626 = vunpack.c.l.b16 %v572
      %v627 = vunpack.c.h.b16 %v572
      %v628 = vunpack.c.l.b16 %v573
      %v629 = vunpack.c.h.b16 %v573
      %v630 = vunpack.c.l.b16 %v574
      %v631 = vunpack.c.h.b16 %v574
      %v632 = vunpack.c.l.b16 %v575
      %v633 = vunpack.c.h.b16 %v575
      %v634 = vunpack.c.l.b16 %v576
      %v635 = vunpack.c.h.b16 %v576
      %v636 = vunpack.c.l.b16 %v577
      %v637 = vunpack.c.h.b16 %v577
      %v638 = vpack.c.b16 %v608, %v606
      %v639 = vpack.c.b16 %v609, %v607
      %v640 = vpack.c.b16 %v612, %v610
      %v641 = vpack.c.b16 %v613, %v611
      %v642 = vpack.c.b16 %v616, %v614
      %v643 = vpack.c.b16 %v617, %v615
      %v644 = vpack.c.b16 %v620, %v618
      %v645 = vpack.c.b16 %v621, %v619
      %v646 = vpack.c.b16 %v624, %v622
      %v647 = vpack.c.b16 %v625, %v623
      %v648 = vpack.c.b16 %v628, %v626
      %v649 = vpack.c.b16 %v629, %v627
      %v650 = vpack.c.b16 %v632, %v630
      %v651 = vpack.c.b16 %v633, %v631
      %v652 = vpack.c.b16 %v636, %v634
      %v653 = vpack.c.b16 %v637, %v635
      %670 = vmatprep.subr.bf16.mxu0 %v653
      %671 = vmatpush1.bf16.msra.mxu0 %v652
      %672 = vmatprep.subr.bf16.mxu0 %v651
      %673 = vmatpush1.bf16.msra.mxu0 %v650
      %674 = vmatprep.subr.bf16.mxu0 %v649
      %675 = vmatpush1.bf16.msra.mxu0 %v648
      %676 = vmatprep.subr.bf16.mxu0 %v647
      %677 = vmatpush1.bf16.msra.mxu0 %v646
      %678 = vmatprep.subr.bf16.mxu0 %v645
      %679 = vmatpush1.bf16.msra.mxu0 %v644
      %680 = vmatprep.subr.bf16.mxu0 %v643
      %681 = vmatpush1.bf16.msra.mxu0 %v642
      %682 = vmatprep.subr.bf16.mxu0 %v641
      %683 = vmatpush1.bf16.msra.mxu0 %v640
      %684 = vmatprep.subr.bf16.mxu0 %v639
      %685 = vmatpush1.bf16.msra.mxu0 %v638
      %686 = vmatprep.subr.bf16.mxu0 0
      %687 = vmatpush2.bf16.msra.mxu0 0
      %688 = vmatprep.subr.bf16.mxu0 0
      %689 = vmatpush2.bf16.msra.mxu0 0
      %690 = vmatprep.subr.bf16.mxu0 0
      %691 = vmatpush2.bf16.msra.mxu0 0
      %692 = vmatprep.subr.bf16.mxu0 0
      %693 = vmatpush2.bf16.msra.mxu0 0
      %694 = vmatprep.subr.bf16.mxu0 0
      %695 = vmatpush2.bf16.msra.mxu0 0
      %696 = vmatprep.subr.bf16.mxu0 0
      %697 = vmatpush2.bf16.msra.mxu0 0
      %698 = vmatprep.subr.bf16.mxu0 0
      %699 = vmatpush2.bf16.msra.mxu0 0
      %700 = vmatprep.subr.bf16.mxu0 0
      %701 = vmatpush2.bf16.msra.mxu0 0
      %702 = vmatprep.mubr.bf16.mxu0 0
      %703 = vmatmul.mubr.bf16.gmra.mxu0 %v561
      %v704 = vpop.f32.mrf.mxu0
      %v705 = vadd.f32 %v583, %v704
      %v706 = vpop.f32.mrf.mxu0
      %v707 = vadd.f32 %v587, %v706
      %v708 = vpop.f32.mrf.mxu0
      %v709 = vadd.f32 %v583, %v708
      %v710 = vpop.f32.mrf.mxu0
      %v711 = vadd.f32 %v587, %v710
      %712 = vdwg.mxu0
      %v713 = vmul.f32 %v707, 1.442695
      %v714 = vpow.pop %v713
      %v715 = vmul.f32 %v711, 1.442695
      %v716 = vpow.pop %v715
      %v717 = vld [vmem:[%s5 + $0x2] sm:$0x1]
      %v718 = vmul.f32 %v717, 0.025
      %v719 = vld [vmem:[%s5 + $0x3] sm:$0x1]
      %v720 = vmul.f32 %v719, 0.025
      %v721 = vmul.f32 %v718, %v718
      %v722 = vsub.f32 %v720, %v721
      %v723 = vmax.f32 %v722, 0.0
      %v724 = vld [vmem:[%s6 + $0x2] sm:$0x1]
      %v725 = vld [vmem:[%s6 + $0x3] sm:$0x1]
      %v726 = vld [vmem:[#allocation3] sm:$0xff]
      %v727 = vld [vmem:[#allocation3 + $0x8] sm:$0xff]
      %v728 = vlaneseq
      %v729 = vshrl.u32 %v728, 7
      %v730 = vsub.s32 0, %v729
      %v731 = vrot.slane %v718, %v730
      %v732 = vsub.f32 %v726, %v731
      %v733 = vsub.f32 %v727, %v731
      %v734 = vlaneseq
      %v735 = vshrl.u32 %v734, 7
      %v736 = vsub.s32 0, %v735
      %v737 = vrot.slane %v724, %v736
      %v738 = vmul.f32 %v737, %v732
      %v739 = vmul.f32 %v737, %v733
      %v740 = vadd.f32 %v723, 1e-05
      %v741 = vrsqrt.pop %v740
      %v742 = vlaneseq
      %v743 = vshrl.u32 %v742, 7
      %v744 = vsub.s32 0, %v743
      %v745 = vrot.slane %v741, %v744
      %v746 = vmul.f32 %v738, %v745
      %v747 = vmul.f32 %v739, %v745
      %v748 = vlaneseq
      %v749 = vshrl.u32 %v748, 7
      %v750 = vsub.s32 0, %v749
      %v751 = vrot.slane %v725, %v750
      %v752 = vadd.f32 %v746, %v751
      %v753 = vadd.f32 %v747, %v751
      %v754 = vmax.f32 %v752, 0.0
      %v755 = vmax.f32 %v753, 0.0
      %v756 = vpack.c.bf16 %v755, %v754
      %v757 = vld [vmem:[%s9] sm:$0xff]
      %v758 = vld [vmem:[%s9 + $0x8] sm:$0xff]
      %v759 = vld [vmem:[%s9 + $0x10] sm:$0xff]
      %v760 = vld [vmem:[%s9 + $0x18] sm:$0xff]
      %v761 = vld [vmem:[%s9 + $0x20] sm:$0xff]
      %v762 = vld [vmem:[%s9 + $0x28] sm:$0xff]
      %v763 = vld [vmem:[%s9 + $0x30] sm:$0xff]
      %v764 = vld [vmem:[%s9 + $0x38] sm:$0xff]
      %v765 = vld [vmem:[%s9 + $0x40] sm:$0xff]
      %v766 = vld [vmem:[%s9 + $0x48] sm:$0xff]
      %v767 = vld [vmem:[%s9 + $0x50] sm:$0xff]
      %v768 = vld [vmem:[%s9 + $0x58] sm:$0xff]
      %v769 = vld [vmem:[%s9 + $0x60] sm:$0xff]
      %v770 = vld [vmem:[%s9 + $0x68] sm:$0xff]
      %v771 = vld [vmem:[%s9 + $0x70] sm:$0xff]
      %v772 = vld [vmem:[%s9 + $0x78] sm:$0xff]
      %v773 = vld [vmem:[%s10] sm:$0x3]
      %v775 = vlaneseq
      %v776 = vshrl.u32 %v775, 7
      %v777 = vsub.s32 0, %v776
      %v778 = vrot.slane %v773, %v777
      %v779 = vlaneseq
      %v780 = vshrl.u32 %v779, 7
      %v781 = vsub.s32 1, %v780
      %v782 = vrot.slane %v773, %v781
      %v801 = vunpack.c.l.b16 %v757
      %v802 = vunpack.c.h.b16 %v757
      %v803 = vunpack.c.l.b16 %v758
      %v804 = vunpack.c.h.b16 %v758
      %v805 = vunpack.c.l.b16 %v759
      %v806 = vunpack.c.h.b16 %v759
      %v807 = vunpack.c.l.b16 %v760
      %v808 = vunpack.c.h.b16 %v760
      %v809 = vunpack.c.l.b16 %v761
      %v810 = vunpack.c.h.b16 %v761
      %v811 = vunpack.c.l.b16 %v762
      %v812 = vunpack.c.h.b16 %v762
      %v813 = vunpack.c.l.b16 %v763
      %v814 = vunpack.c.h.b16 %v763
      %v815 = vunpack.c.l.b16 %v764
      %v816 = vunpack.c.h.b16 %v764
      %v817 = vunpack.c.l.b16 %v765
      %v818 = vunpack.c.h.b16 %v765
      %v819 = vunpack.c.l.b16 %v766
      %v820 = vunpack.c.h.b16 %v766
      %v821 = vunpack.c.l.b16 %v767
      %v822 = vunpack.c.h.b16 %v767
      %v823 = vunpack.c.l.b16 %v768
      %v824 = vunpack.c.h.b16 %v768
      %v825 = vunpack.c.l.b16 %v769
      %v826 = vunpack.c.h.b16 %v769
      %v827 = vunpack.c.l.b16 %v770
      %v828 = vunpack.c.h.b16 %v770
      %v829 = vunpack.c.l.b16 %v771
      %v830 = vunpack.c.h.b16 %v771
      %v831 = vunpack.c.l.b16 %v772
      %v832 = vunpack.c.h.b16 %v772
      %v833 = vpack.c.b16 %v803, %v801
      %v834 = vpack.c.b16 %v804, %v802
      %v835 = vpack.c.b16 %v807, %v805
      %v836 = vpack.c.b16 %v808, %v806
      %v837 = vpack.c.b16 %v811, %v809
      %v838 = vpack.c.b16 %v812, %v810
      %v839 = vpack.c.b16 %v815, %v813
      %v840 = vpack.c.b16 %v816, %v814
      %v841 = vpack.c.b16 %v819, %v817
      %v842 = vpack.c.b16 %v820, %v818
      %v843 = vpack.c.b16 %v823, %v821
      %v844 = vpack.c.b16 %v824, %v822
      %v845 = vpack.c.b16 %v827, %v825
      %v846 = vpack.c.b16 %v828, %v826
      %v847 = vpack.c.b16 %v831, %v829
      %v848 = vpack.c.b16 %v832, %v830
      %865 = vmatprep.subr.bf16.mxu0 %v848
      %866 = vmatpush1.bf16.msra.mxu0 %v847
      %867 = vmatprep.subr.bf16.mxu0 %v846
      %868 = vmatpush1.bf16.msra.mxu0 %v845
      %869 = vmatprep.subr.bf16.mxu0 %v844
      %870 = vmatpush1.bf16.msra.mxu0 %v843
      %871 = vmatprep.subr.bf16.mxu0 %v842
      %872 = vmatpush1.bf16.msra.mxu0 %v841
      %873 = vmatprep.subr.bf16.mxu0 %v840
      %874 = vmatpush1.bf16.msra.mxu0 %v839
      %875 = vmatprep.subr.bf16.mxu0 %v838
      %876 = vmatpush1.bf16.msra.mxu0 %v837
      %877 = vmatprep.subr.bf16.mxu0 %v836
      %878 = vmatpush1.bf16.msra.mxu0 %v835
      %879 = vmatprep.subr.bf16.mxu0 %v834
      %880 = vmatpush1.bf16.msra.mxu0 %v833
      %881 = vmatprep.subr.bf16.mxu0 0
      %882 = vmatpush2.bf16.msra.mxu0 0
      %883 = vmatprep.subr.bf16.mxu0 0
      %884 = vmatpush2.bf16.msra.mxu0 0
      %885 = vmatprep.subr.bf16.mxu0 0
      %886 = vmatpush2.bf16.msra.mxu0 0
      %887 = vmatprep.subr.bf16.mxu0 0
      %888 = vmatpush2.bf16.msra.mxu0 0
      %889 = vmatprep.subr.bf16.mxu0 0
      %890 = vmatpush2.bf16.msra.mxu0 0
      %891 = vmatprep.subr.bf16.mxu0 0
      %892 = vmatpush2.bf16.msra.mxu0 0
      %893 = vmatprep.subr.bf16.mxu0 0
      %894 = vmatpush2.bf16.msra.mxu0 0
      %895 = vmatprep.subr.bf16.mxu0 0
      %896 = vmatpush2.bf16.msra.mxu0 0
      %897 = vmatprep.mubr.bf16.mxu0 0
      %898 = vmatmul.mubr.bf16.gmra.mxu0 %v756
      %v899 = vpop.f32.mrf.mxu0
      %v900 = vadd.f32 %v778, %v899
      %v901 = vpop.f32.mrf.mxu0
      %v902 = vadd.f32 %v782, %v901
      %v903 = vpop.f32.mrf.mxu0
      %v904 = vadd.f32 %v778, %v903
      %v905 = vpop.f32.mrf.mxu0
      %v906 = vadd.f32 %v782, %v905
      %907 = vdwg.mxu0
      %v908 = vmul.f32 %v902, 1.442695
      %v909 = vpow.pop %v908
      %v910 = vmul.f32 %v906, 1.442695
      %v911 = vpow.pop %v910
      %v912 = vrcp.pop %v714
      %v913 = vmul.f32 1.0, %v912
      %v914 = vrcp.pop %v716
      %v915 = vmul.f32 1.0, %v914
      %v916 = vrcp.pop %v909
      %v917 = vmul.f32 1.0, %v916
      %v918 = vrcp.pop %v911
      %v919 = vmul.f32 1.0, %v918
      %v920 = vadd.f32 %v913, %v917
      %v921 = vadd.f32 %v915, %v919
      %v922 = vadd.f32 %v920, 1.0
      %v923 = vadd.f32 %v921, 1.0
      %v924 = vrcp.pop %v922
      %v925 = vmul.f32 1.0, %v924
      %v926 = vrcp.pop %v923
      %v927 = vmul.f32 1.0, %v926
      %v928 = vmul.f32 %v705, %v913
      %v929 = vmul.f32 %v709, %v915
      %v930 = vmul.f32 %v900, %v917
      %v931 = vmul.f32 %v904, %v919
      %v932 = vadd.f32 %v928, %v930
      %v933 = vadd.f32 %v929, %v931
      %v934 = vmul.f32 %v932, %v925
      %v935 = vmul.f32 %v933, %v927
      %v936 = vld [vmem:[%s394] sm:$0xff]
      %v937 = vld [vmem:[%s394 + $0x8] sm:$0xff]
      %v938 = vmul.f32 %v925, %v936
      %v939 = vmul.f32 %v927, %v937
      %v940 = vadd.f32 %v934, %v938
      %v941 = vadd.f32 %v935, %v939
      %v942 = vld [vmem:[%s11] sm:$0xff]
      %v943 = vld [vmem:[%s11 + $0x8] sm:$0xff]
      %vm944 = vcmask 130048
      %v946 = vsel %vm944, %v940, 0
      %v949 = vsel %vm944, %v941, 0
      %951 = vmatprep.subr.mxu0 0.0
      %952 = vmatpush1.msra.mxu0 0.0
      %953 = vmatprep.subr.mxu0 0.0
      %954 = vmatpush1.msra.mxu0 0.0
      %955 = vmatprep.subr.mxu0 0.0
      %956 = vmatpush1.msra.mxu0 0.0
      %957 = vmatprep.subr.mxu0 0.0
      %958 = vmatpush1.msra.mxu0 0.0
      %959 = vmatprep.subr.mxu0 0.0
      %960 = vmatpush1.msra.mxu0 0.0
      %961 = vmatprep.subr.mxu0 0.0
      %962 = vmatpush1.msra.mxu0 0.0
      %963 = vmatprep.subr.mxu0 0.0
      %964 = vmatpush1.msra.mxu0 0.0
      %965 = vmatprep.subr.mxu0 0.0
      %966 = vmatpush1.msra.mxu0 0.0
      %967 = vmatprep.subr.mxu0 0.0
      %968 = vmatpush1.msra.mxu0 0.0
      %969 = vmatprep.subr.mxu0 0.0
      %970 = vmatpush1.msra.mxu0 0.0
      %971 = vmatprep.subr.mxu0 0.0
      %972 = vmatpush1.msra.mxu0 0.0
      %973 = vmatprep.subr.mxu0 0.0
      %974 = vmatpush1.msra.mxu0 0.0
      %975 = vmatprep.subr.mxu0 0.0
      %976 = vmatpush1.msra.mxu0 0.0
      %977 = vmatprep.subr.mxu0 0.0
      %978 = vmatpush1.msra.mxu0 0.0
      %979 = vmatprep.subr.mxu0 0.0
      %980 = vmatpush1.msra.mxu0 %v943
      %981 = vmatprep.subr.mxu0 0.0
      %982 = vmatpush1.msra.mxu0 %v942
      %983 = vmatprep.subr.mxu0 0.0
      %984 = vmatpush2.msra.mxu0 0.0
      %985 = vmatprep.subr.mxu0 0.0
      %986 = vmatpush2.msra.mxu0 0.0
      %987 = vmatprep.subr.mxu0 0.0
      %988 = vmatpush2.msra.mxu0 0.0
      %989 = vmatprep.subr.mxu0 0.0
      %990 = vmatpush2.msra.mxu0 0.0
      %991 = vmatprep.subr.mxu0 0.0
      %992 = vmatpush2.msra.mxu0 0.0
      %993 = vmatprep.subr.mxu0 0.0
      %994 = vmatpush2.msra.mxu0 0.0
      %995 = vmatprep.subr.mxu0 0.0
      %996 = vmatpush2.msra.mxu0 0.0
      %997 = vmatprep.subr.mxu0 0.0
      %998 = vmatpush2.msra.mxu0 0.0
      %999 = vmatprep.subr.mxu0 0.0
      %1000 = vmatpush2.msra.mxu0 0.0
      %1001 = vmatprep.subr.mxu0 0.0
      %1002 = vmatpush2.msra.mxu0 0.0
      %1003 = vmatprep.subr.mxu0 0.0
      %1004 = vmatpush2.msra.mxu0 0.0
      %1005 = vmatprep.subr.mxu0 0.0
      %1006 = vmatpush2.msra.mxu0 0.0
      %1007 = vmatprep.subr.mxu0 0.0
      %1008 = vmatpush2.msra.mxu0 0.0
      %1009 = vmatprep.subr.mxu0 0.0
      %1010 = vmatpush2.msra.mxu0 0.0
      %1011 = vmatprep.subr.mxu0 0.0
      %1012 = vmatpush2.msra.mxu0 0.0
      %1013 = vmatprep.subr.mxu0 0.0
      %1014 = vmatpush2.msra.mxu0 0.0
      %1015 = vmatprep.mubr.f32.mxu0 0.0
      %1016 = vmatmul.mubr.f32.gmra.mxu0 %v946
      %v1017 = vpop.f32.mrf.mxu0
      %v1018 = vadd.f32 0.0, %v1017
      %v1019 = vpop.f32.mrf.mxu0
      %1020 = vmatprep.mubr.f32.mxu0 0.0
      %1021 = vmatmul.mubr.f32.gmra.mxu0 %v949
      %v1022 = vpop.f32.mrf.mxu0
      %v1023 = vadd.f32 0.0, %v1022
      %v1024 = vpop.f32.mrf.mxu0
      %1025 = vdwg.mxu0
      %v1026 = vmul.f32 %v940, %v940
      %v1027 = vmul.f32 %v941, %v941
      %v1028 = vsel %vm944, %v1026, 0.0
      %1029 = vadd.xlane.f32.xlu0 %v1028
      %v1030 = vpop.xlane.xlu0 %1029
      %v1031 = vsel %vm944, %v1027, 0.0
      %1032 = vadd.xlane.f32.xlu0 %v1031
      %v1033 = vpop.xlane.xlu0 %1032
      %v1034 = vmul.f32 %v1018, 2.0
      %v1035 = vmul.f32 %v1023, 2.0
      %v1036 = vsub.f32 %v1030, %v1034
      %v1037 = vsub.f32 %v1033, %v1035
      %v1038 = vld [vmem:[%s12] sm:$0x1]
      %v1040 = vlaneseq
      %v1041 = vshrl.u32 %v1040, 7
      %v1042 = vsub.s32 0, %v1041
      %v1043 = vrot.slane %v1038, %v1042
      %v1045 = vadd.f32 %v1036, %v1043
      %v1046 = vadd.f32 %v1037, %v1043
      %v1047 = vmax.f32 %v1045, 0.0
      %v1048 = vmax.f32 %v1046, 0.0
      %v1049 = vadd.f32 %v1047, 1.0
      %v1050 = vadd.f32 %v1048, 1.0
      %v1051 = vrcp.pop %v1049
      %v1052 = vmul.f32 1.0, %v1051
      %v1053 = vrcp.pop %v1050
      %v1054 = vmul.f32 1.0, %v1053
      %vm1055 = vcmask 654336
      %v1056 = vsel %vm1055, %v1052, 0.0
      %1057 = vadd.xlane.f32.xlu0 %v1056
      %v1058 = vpop.xlane.xlu0 %1057
      %v1059 = vsel %vm1055, %v1054, 0.0
      %1060 = vadd.xlane.f32.xlu0 %v1059
      %v1061 = vpop.xlane.xlu0 %1060
      %v1062 = vrcp.pop %v1058
      %v1063 = vrcp.pop %v1061
      %v1064 = vmul.f32 %v1052, %v1062
      %v1065 = vmul.f32 %v1054, %v1063
      %1068 = vrot.lane.b32.xlu0 %v934, 16
      %v1069 = vpop.permute.xlu0 %1068
      %1070 = vrot.lane.b32.xlu0 %v935, 16
      %v1071 = vpop.permute.xlu0 %1070
      %1076 = vrot.lane.b32.xlu0 %v925, 32
      %v1077 = vpop.permute.xlu0 %1076
      %1078 = vrot.lane.b32.xlu0 %v927, 32
      %v1079 = vpop.permute.xlu0 %1078
      %1084 = vrot.lane.b32.xlu0 %v1064, 48
      %v1085 = vpop.permute.xlu0 %1084
      %1086 = vrot.lane.b32.xlu0 %v1065, 48
      %v1087 = vpop.permute.xlu0 %1086
      %v1090 = vsel %vm944, %v940, %v1069
      %v1091 = vsel %vm944, %v941, %v1071
      %vm1092 = vcmask 261120
      %v1093 = vsel %vm1092, %v1090, %v1077
      %v1094 = vsel %vm1092, %v1091, %v1079
      %vm1095 = vcmask 392192
      %v1096 = vsel %vm1095, %v1093, %v1085
      %v1097 = vsel %vm1095, %v1094, %v1087
      %1098 = vst [vmem:[%s400] sm:$0xff] %v1096
      %1099 = vst [vmem:[%s400 + $0x8] sm:$0xff] %v1097
      %v1100 = vld [vmem:[%s13] sm:$0xff]
      %v1101 = vld [vmem:[%s13 + $0x8] sm:$0xff]
      %1102 = vmatprep.subr.mxu0 0.0
      %1103 = vmatpush1.msra.mxu0 0.0
      %1104 = vmatprep.subr.mxu0 0.0
      %1105 = vmatpush1.msra.mxu0 0.0
      %1106 = vmatprep.subr.mxu0 0.0
      %1107 = vmatpush1.msra.mxu0 0.0
      %1108 = vmatprep.subr.mxu0 0.0
      %1109 = vmatpush1.msra.mxu0 0.0
      %1110 = vmatprep.subr.mxu0 0.0
      %1111 = vmatpush1.msra.mxu0 0.0
      %1112 = vmatprep.subr.mxu0 0.0
      %1113 = vmatpush1.msra.mxu0 0.0
      %1114 = vmatprep.subr.mxu0 0.0
      %1115 = vmatpush1.msra.mxu0 0.0
      %1116 = vmatprep.subr.mxu0 0.0
      %1117 = vmatpush1.msra.mxu0 0.0
      %1118 = vmatprep.subr.mxu0 0.0
      %1119 = vmatpush1.msra.mxu0 0.0
      %1120 = vmatprep.subr.mxu0 0.0
      %1121 = vmatpush1.msra.mxu0 0.0
      %1122 = vmatprep.subr.mxu0 0.0
      %1123 = vmatpush1.msra.mxu0 0.0
      %1124 = vmatprep.subr.mxu0 0.0
      %1125 = vmatpush1.msra.mxu0 0.0
      %1126 = vmatprep.subr.mxu0 0.0
      %1127 = vmatpush1.msra.mxu0 0.0
      %1128 = vmatprep.subr.mxu0 0.0
      %1129 = vmatpush1.msra.mxu0 0.0
      %1130 = vmatprep.subr.mxu0 0.0
      %1131 = vmatpush1.msra.mxu0 %v1101
      %1132 = vmatprep.subr.mxu0 0.0
      %1133 = vmatpush1.msra.mxu0 %v1100
      %1134 = vmatprep.subr.mxu0 0.0
      %1135 = vmatpush2.msra.mxu0 0.0
      %1136 = vmatprep.subr.mxu0 0.0
      %1137 = vmatpush2.msra.mxu0 0.0
      %1138 = vmatprep.subr.mxu0 0.0
      %1139 = vmatpush2.msra.mxu0 0.0
      %1140 = vmatprep.subr.mxu0 0.0
      %1141 = vmatpush2.msra.mxu0 0.0
      %1142 = vmatprep.subr.mxu0 0.0
      %1143 = vmatpush2.msra.mxu0 0.0
      %1144 = vmatprep.subr.mxu0 0.0
      %1145 = vmatpush2.msra.mxu0 0.0
      %1146 = vmatprep.subr.mxu0 0.0
      %1147 = vmatpush2.msra.mxu0 0.0
      %1148 = vmatprep.subr.mxu0 0.0
      %1149 = vmatpush2.msra.mxu0 0.0
      %1150 = vmatprep.subr.mxu0 0.0
      %1151 = vmatpush2.msra.mxu0 0.0
      %1152 = vmatprep.subr.mxu0 0.0
      %1153 = vmatpush2.msra.mxu0 0.0
      %1154 = vmatprep.subr.mxu0 0.0
      %1155 = vmatpush2.msra.mxu0 0.0
      %1156 = vmatprep.subr.mxu0 0.0
      %1157 = vmatpush2.msra.mxu0 0.0
      %1158 = vmatprep.subr.mxu0 0.0
      %1159 = vmatpush2.msra.mxu0 0.0
      %1160 = vmatprep.subr.mxu0 0.0
      %1161 = vmatpush2.msra.mxu0 0.0
      %1162 = vmatprep.subr.mxu0 0.0
      %1163 = vmatpush2.msra.mxu0 0.0
      %1164 = vmatprep.subr.mxu0 0.0
      %1165 = vmatpush2.msra.mxu0 0.0
      %1166 = vmatprep.mubr.f32.mxu0 0.0
      %1167 = vmatmul.mubr.f32.gmra.mxu0 %v946
      %v1168 = vpop.f32.mrf.mxu0
      %v1169 = vadd.f32 0.0, %v1168
      %v1170 = vpop.f32.mrf.mxu0
      %1171 = vmatprep.mubr.f32.mxu0 0.0
      %1172 = vmatmul.mubr.f32.gmra.mxu0 %v949
      %v1173 = vpop.f32.mrf.mxu0
      %v1174 = vadd.f32 0.0, %v1173
      %v1175 = vpop.f32.mrf.mxu0
      %1176 = vdwg.mxu0
      %v1177 = vlaneseq
      %v1178 = vshrl.u32 %v1177, 7
      %v1179 = vadd.s32 %v1178, 8
      %v1180 = vstv %s403
      %v1181 = vadd.s32 %v1180, %v1178
      %v1182 = vadd.s32 %v1180, %v1179
      %vm1183 = vcmp.lt.s32.totalorder %v1181, 40
      %vm1184 = vcmp.lt.s32.totalorder %v1182, 40
      %v1185 = vsel %vm1183, 1, 0
      %v1186 = vsel %vm1184, 1, 0
      %vm1187 = vcmp.eq.s32.totalorder %v1185, 1
      %vm1188 = vcmp.eq.s32.totalorder %v1186, 1
      %v1189 = vsel %vm1187, %v1169, 0.0
      %v1190 = vsel %vm1188, %v1174, 0.0
      %p1191 = scmp.eq.s32.totalorder %s37, 0
      // Predicated region
      $region135: #{multi_all_forward.4} parent=59 // pred_check
        %p1192 = pneg %p1191
      $region136: #{multi_all_forward.4} parent=59 // pred_check_branch
        %1194 = sbr.rel (%p1192) target = $region138
      $region137: #{multi_all_forward.4} parent=59 // pred_region
        %1195 = vst [vmem:[%s15] sm:$0xff] 0.0
      $region138: #{multi_all_forward.4} parent=59 // pred_fallthru
        _
      %v1196 = vld [vmem:[%s15] sm:$0x1]
      %v1197 = vadd.f32 %v1189, %v1190
      %v1198 = vrot.slane %v1197, 4
      %v1199 = vadd.f32 %v1197, %v1198
      %v1200 = vrot.slane %v1199, 2
      %v1201 = vadd.f32 %v1199, %v1200
      %v1202 = vrot.slane %v1201, 1
      %v1203 = vadd.f32 %v1201, %v1202
      %v1204 = vadd.f32 %v1196, %v1203
      %1205 = vst [vmem:[%s15] sm:$0x1] %v1204
      %v1206 = vld [vmem:[%s15 + $0x1] sm:$0x1]
      %v1207 = vmul.f32 %v1189, %v1189
      %v1208 = vmul.f32 %v1190, %v1190
      %v1209 = vadd.f32 %v1207, %v1208
      %v1210 = vrot.slane %v1209, 4
      %v1211 = vadd.f32 %v1209, %v1210
      %v1212 = vrot.slane %v1211, 2
      %v1213 = vadd.f32 %v1211, %v1212
      %v1214 = vrot.slane %v1213, 1
      %v1215 = vadd.f32 %v1213, %v1214
      %v1216 = vadd.f32 %v1206, %v1215
      %1217 = vst [vmem:[%s15 + $0x1] sm:$0x1] %v1216
      %s1218 = smul.u32 2, %s37
      %p1219 = scmp.lt.s32.totalorder %s1218, 5
      %s1220 = scalar_select %p1219, %s1218, 5
      %s1221 = smul.addr %s1220, 8
      %s1222 = scalar_lea.vmem %s14, %s1221
      // Predicated region
      $region139: #{multi_all_forward.4} parent=59 // pred_check
        %p1223 = pneg %p270
      $region140: #{multi_all_forward.4} parent=59 // pred_check_branch
        %1225 = sbr.rel (%p1223) target = $region142
      $region141: #{multi_all_forward.4} parent=59 // pred_region
        %s1226 = smul.u32 2, %s37
      $region142: #{multi_all_forward.4} parent=59 // pred_fallthru
        _
      // Predicated region
      $region143: #{multi_all_forward.4} parent=59 // pred_check
        %p1227 = pneg %p291
      $region144: #{multi_all_forward.4} parent=59 // pred_check_branch
        %1229 = sbr.rel (%p1227) target = $region146
      $region145: #{multi_all_forward.4} parent=59 // pred_region
        _
      $region146: #{multi_all_forward.4} parent=59 // pred_fallthru
        _
      // Predicated region
      $region147: #{multi_all_forward.4} parent=59 // pred_check
        %p1230 = pneg %p291
      $region148: #{multi_all_forward.4} parent=59 // pred_check_branch
        %1232 = sbr.rel (%p1230) target = $region150
      $region149: #{multi_all_forward.4} parent=59 // pred_region
        _
      $region150: #{multi_all_forward.4} parent=59 // pred_fallthru
        _
    $region60: #{multi_all_forward.4} parent=5 // pred_fallthru
      _
    %p1233 = scmp.le.s32.totalorder 2, %s32
    // Predicated region
    $region151: #{multi_all_forward.4} parent=5 // pred_check
      %p1234 = pneg %p1233
    $region152: #{multi_all_forward.4} parent=5 // pred_check_branch
      %1236 = sbr.rel (%p1234) target = $region154
    $region153: #{multi_all_forward.4} parent=5 // pred_region
      %s1237 = ssub.s32 %s32, 2
      // Predicated region
      $region155: #{multi_all_forward.4} parent=153 // pred_check
        %p1238 = pneg %p276
      $region156: #{multi_all_forward.4} parent=153 // pred_check_branch
        %1240 = sbr.rel (%p1238) target = $region158
      $region157: #{multi_all_forward.4} parent=153 // pred_region
        %s1241 = smul.u32 2, %s38
        %p1242 = scmp.lt.s32.totalorder %s1241, 5
        %s1243 = scalar_select %p1242, %s1241, 5
        %s1244 = smul.addr %s1243, 8
        %s1245 = scalar_lea.vmem %s14, %s1244
      $region158: #{multi_all_forward.4} parent=153 // pred_fallthru
        _
    $region154: #{multi_all_forward.4} parent=5 // pred_fallthru
      _
  $region6: #{multi_all_forward.4} parent=0 // loop_footer
    %s36 = sadd.s32 1, %s32
  $region7: #{multi_all_forward.4} parent=0 // loop_footer_branch
    %31 = sbr.rel target = $region3
  $region8: #{multi_all_forward.4} parent=0 // loop_exit
    _
  %1246 = vsyncmov [#allocation4]
  %s1247 = vpop.sfrf %1246
  %p1248 = scmp.eq.s32.totalorder %s1247, 0
  %p1249 = pneg %p1248
  %1251 = shalt.err (%p1249)
  %s1252 = scalar_lea.sflag [#allocation4], 1
  %1253 = vsyncmov %s1252
  %s1254 = vpop.sfrf %1253
  %p1255 = scmp.eq.s32.totalorder %s1254, 0
  %p1256 = pneg %p1255
  %1258 = shalt.err (%p1256)

</llo_original>
